<compile_context>
chip_gen: v7x
topology: tpu7x:2x2x1
jax: 0.10.0
libtpu: 0.0.40
codegen_flags: <defaults>
</compile_context>

<pallas_src>
import functools

import jax
import jax.numpy as jnp
from jax.experimental import pallas as pl
from jax.experimental.pallas import tpu as pltpu


def _up_conv_kernel(x_ref, w_ref, shift_ref, o_ref, *,
                    apply_relu, th, w_in, cin, cout, split_k):
    """One (batch, row-tile) grid step.

    x_ref:     (1, H+2, W+2, Cin)  bf16 1-padded ORIGINAL-resolution input
                                   (same block for every row tile of a batch
                                   element).
    w_ref:     (4, 4*Cin, Cout) or (4, 4, Cin, Cout)  bf16 per-phase folded,
                                   BN-scale-folded weights (dense -- no zeros).
    shift_ref: (1, 4*Cout)         f32 folded BN shift (+ conv bias) per phase.
    o_ref:     (1, TH*W, 4*Cout)   bf16; rows = original-res pixels (i, j) of
                                   this row tile; cols = (phase 2a+b, Cout).
    """
    t = pl.program_id(1)
    row0 = t * th
    if th % 8 == 0:
        row0 = pl.multiple_of(row0, 8)      # sublane-aligned tap loads

    # 3 halo'd row slabs loaded once; 9 unique im2col taps built once; all 4
    # phases reuse them.
    rows = [x_ref[0, pl.ds(row0 + u, th), :, :] for u in range(3)]
    tap = [[rows[u][:, v:v + w_in, :].reshape(th * w_in, cin) for v in range(3)]
           for u in range(3)]

    accs = []
    for a in range(2):
        for b in range(2):
            ab = 2 * a + b
            if split_k:
                # Cin is large enough for efficient K=Cin matmuls: skip the
                # concatenated patch (saves TH*W*4*Cin VMEM copies per phase).
                parts = [jnp.dot(tap[a + d][b + e], w_ref[ab, 2 * d + e],
                                 preferred_element_type=jnp.float32)
                         for d in range(2) for e in range(2)]
                acc = (parts[0] + parts[1]) + (parts[2] + parts[3])
            else:
                patch = jnp.concatenate(
                    [tap[a][b], tap[a][b + 1], tap[a + 1][b], tap[a + 1][b + 1]],
                    axis=-1)                                   # (TH*W, 4*Cin)
                acc = jnp.dot(patch, w_ref[ab],
                              preferred_element_type=jnp.float32)
            accs.append(acc)                                   # (TH*W, Cout)

    y = jnp.concatenate(accs, axis=-1) + shift_ref[...]        # (TH*W, 4*Cout)
    if apply_relu:
        y = jnp.maximum(y, 0.0)
    o_ref[...] = y.reshape(o_ref.shape).astype(o_ref.dtype)


def _fold_phase_weights(weight_hwio, scale, cout_pad, split_k):
    """Fold 2x-nearest upsample + 3x3 conv (+ BN scale) into 4 DENSE phase
    weights (no zero K rows).

    Output pixel (2i+a, 2j+b) = sum_{d,e in {0,1}} xpad[i+a+d, j+b+e, :] @
    Wphase[2a+b, d, e], xpad = 1-padded ORIGINAL-res input.

    Returns (4, 4*Cin, Cout_pad) (or (4, 4, Cin, Cout_pad) when split_k) with
    the K axis ordered (d, e, cin) to match the kernel's tap concatenation.
    """
    cin, cout = weight_hwio.shape[2], weight_hwio.shape[3]
    w = weight_hwio.astype(jnp.float32) * scale.astype(jnp.float32)
    if cout_pad > cout:
        w = jnp.pad(w, ((0, 0), (0, 0), (0, 0), (0, cout_pad - cout)))
    # fold[a, d, r]: kernel row r collapses onto 2x2-window row offset d for
    # output-row phase a (same matrix reused for columns).
    fold = jnp.array([[[1., 0., 0.],
                       [0., 1., 1.]],
                      [[1., 1., 0.],
                       [0., 0., 1.]]], jnp.float32)            # (a, d, r)
    wf = jnp.einsum('adr,bec,rcio->abdeio', fold, fold, w)     # (2,2,2,2,Ci,Co)
    if split_k:
        return wf.reshape(4, 4, cin, cout_pad)
    return wf.reshape(4, 4 * cin, cout_pad)


def _vmem_capacity_bytes():
    cap = 64 * 1024 * 1024          # conservative default (v7x per-TC VMEM)
    try:
        info = pltpu.get_tpu_info()
        cap = int(getattr(info, "vmem_capacity_bytes", cap) or cap)
    except Exception:
        pass
    return cap


def _estimate_vmem_bytes(th, h, w, cin, cout_p, single_buffer):
    """Rough resident-set estimate for one grid step (bytes)."""
    hp, wp = h + 2, w + 2
    nbuf = 1 if single_buffer else 2
    x_blk = hp * wp * cin * 2 * nbuf            # padded image block
    w_blk = 16 * cin * cout_p * 2 * nbuf        # folded phase weights
    s_blk = 4 * cout_p * 4 * nbuf               # shift
    o_blk = th * w * 4 * cout_p * 2 * 2         # bf16 output, double-buffered
    tmp = (3 * th * wp * cin * 2                # row slabs
           + 9 * th * w * cin * 2               # im2col taps
           + th * w * 4 * cin * 2               # one phase patch at a time
           + 2 * th * w * 4 * cout_p * 4        # f32 phase accs + concat
           + th * w * 4 * cout_p * 2)           # bf16 store staging
    return x_blk + w_blk + s_blk + o_blk + tmp


def _pick_row_tile(n, h, w, cin, cout_p, single_buffer, budget):
    """Largest VMEM-fitting, (8,128)-aligned row tile that still provides
    enough grid steps for the 2 v7x TensorCores and the DMA pipeline."""
    cands = [th for th in range(1, h + 1)
             if h % th == 0 and (th == h or th % 8 == 0)]
    fitting = [th for th in cands
               if _estimate_vmem_bytes(th, h, w, cin, cout_p,
                                       single_buffer) <= budget]
    if not fitting:
        # TODO(synk): halo'd manual-DMA row window for configs whose padded
        # image alone blows the VMEM budget.
        fitting = [min(cands)]
    enough = [th for th in fitting if n * (h // th) >= 8]
    if enough:
        return max(enough)          # biggest tile that still fills the pipeline
    return min(fitting)             # tiny images: maximize step count instead


def _block_spec(block_shape, index_map, *, single_buffer):
    """BlockSpec with optional single-buffering (pl.Buffered(1)) for blocks
    whose index is (mostly) grid-invariant -- bounds VMEM on v7x.  Falls back
    to a plain BlockSpec if this build lacks pipeline_mode / Buffered."""
    if single_buffer:
        try:
            return pl.BlockSpec(block_shape, index_map,
                                pipeline_mode=pl.Buffered(1))
        except Exception:
            pass
    return pl.BlockSpec(block_shape, index_map)


@functools.partial(jax.jit,
                   static_argnames=("activation", "row_tile", "single_buffer"))
def up_forward(x1, x2, weight_hwio, bias, gamma, beta, running_mean,
               running_var, eps=1e-5, activation=True, row_tile=None,
               single_buffer=True):
    """Pallas implementation of Up.forward.  x1/x2 are NCHW (PyTorch layout)."""
    # Matches the module: concat on channels first, then upsample/conv.  The
    # concat is done AFTER the NCHW->NHWC transpose so it is a cheap last-axis
    # concat that fuses with the transpose/convert.
    def to_nhwc_bf16(t):
        return jnp.transpose(t, (0, 2, 3, 1)).astype(jnp.bfloat16)

    x = to_nhwc_bf16(x1) if x2 is None else jnp.concatenate(
        (to_nhwc_bf16(x1), to_nhwc_bf16(x2)), axis=-1)
    n, h, w, cin = x.shape
    cout = weight_hwio.shape[-1]
    cout_p = -(-cout // 32) * 32        # 4*cout_p % 128 == 0 -> dense stores
    split_k = cin >= 128                # skip the concatenated im2col patch

    # 1-pixel zero halo at ORIGINAL resolution; the upsampled tensor is never
    # written to HBM.
    # TODO(synk): drop this pad (one extra HBM read+write of the input) by
    # masking the border taps inside the kernel.
    x = jnp.pad(x, ((0, 0), (1, 1), (1, 1), (0, 0)))

    if activation:
        scale = gamma / jnp.sqrt(running_var + eps)
        shift = beta + (bias - running_mean) * scale
    else:                               # BatchNorm2d / ReLU replaced by Identity
        scale = jnp.ones((cout,), jnp.float32)
        shift = bias.astype(jnp.float32)
    wbig = _fold_phase_weights(weight_hwio, scale, cout_p,
                               split_k).astype(jnp.bfloat16)
    shift_p = jnp.pad(shift.astype(jnp.float32), (0, cout_p - cout))
    shift4 = jnp.tile(shift_p, 4).reshape(1, 4 * cout_p)

    vmem_cap = _vmem_capacity_bytes()
    if row_tile is not None:
        th = row_tile
        assert h % th == 0 and (th == h or th % 8 == 0), (h, th)
    else:
        th = _pick_row_tile(n, h, w, cin, cout_p, single_buffer,
                            budget=int(0.7 * vmem_cap))
    est = _estimate_vmem_bytes(th, h, w, cin, cout_p, single_buffer)
    vmem_limit = int(min(0.9 * vmem_cap, max(2 * est, 32 << 20)))
    vmem_limit = max(vmem_limit, 16 << 20)

    hp, wp = h + 2, w + 2
    wshape = (4, 4, cin, cout_p) if split_k else (4, 4 * cin, cout_p)
    w_imap = (lambda i, t: (0, 0, 0, 0)) if split_k else (lambda i, t: (0, 0, 0))

    kernel = functools.partial(_up_conv_kernel, apply_relu=activation, th=th,
                               w_in=w, cin=cin, cout=cout_p, split_k=split_k)
    out_k = pl.pallas_call(
        kernel,
        out_shape=jax.ShapeDtypeStruct((n, h * w, 4 * cout_p), jnp.bfloat16),
        grid=(n, h // th),
        in_specs=[
            # Whole padded image: index invariant across the row-tile axis.
            _block_spec((1, hp, wp, cin), lambda i, t: (i, 0, 0, 0),
                        single_buffer=single_buffer),
            # Grid-invariant weights / shift: never worth double-buffering.
            _block_spec(wshape, w_imap, single_buffer=single_buffer),
            _block_spec((1, 4 * cout_p), lambda i, t: (0, 0),
                        single_buffer=single_buffer),
        ],
        out_specs=pl.BlockSpec((1, th * w, 4 * cout_p), lambda i, t: (i, t, 0)),
        compiler_params=pltpu.CompilerParams(
            dimension_semantics=("parallel", "parallel"),
            vmem_limit_bytes=vmem_limit),
    )(x, wbig, shift4)

    # (n, i*W+j, (2a+b)*Cout_p + c) -> NCHW (n, c, 2i+a, 2j+b).  The phase
    # de-interleave and the padded-channel slice ride along for free in the
    # one NHWC->NCHW transpose we had to do anyway; it reads bf16, writes f32.
    out = out_k.reshape(n, h, w, 2, 2, cout_p)[..., :cout]
    out = jnp.transpose(out, (0, 5, 1, 3, 2, 4)).astype(jnp.float32)
    return out.reshape(n, cout, 2 * h, 2 * w)


def up_reference(x1, x2, weight_hwio, bias, gamma, beta, running_mean,
                 running_var, eps=1e-5, activation=True):
    """Pure-JAX f32 reference (lax conv) with PyTorch eval-mode semantics.

    The input is rounded through bf16 (like the kernel path) so the comparison
    tolerance can stay tight; conv / BN run in f32.
    """
    x = x1 if x2 is None else jnp.concatenate((x1, x2), axis=1)
    x = jnp.transpose(x, (0, 2, 3, 1))
    x = x.astype(jnp.bfloat16).astype(jnp.float32)
    x = jnp.repeat(jnp.repeat(x, 2, axis=1), 2, axis=2)        # nearest 2x
    y = jax.lax.conv_general_dilated(
        x, weight_hwio.astype(jnp.float32), window_strides=(1, 1),
        padding=((1, 1), (1, 1)),
        dimension_numbers=("NHWC", "HWIO", "NHWC"))
    y = y + bias
    if activation:
        y = gamma * (y - running_mean) / jnp.sqrt(running_var + eps) + beta
        y = jnp.maximum(y, 0.0)
    return jnp.transpose(y, (0, 3, 1, 2))


if __name__ == "__main__":
    key = jax.random.PRNGKey(0)
    k_x1, k_x2, k_w, k_b, k_g, k_be = jax.random.split(key, 6)

    # Module config: Up(in_channels=4, out_channels=8); input 16x16 -> 32x32.
    N, Cin, H, W = 2, 4, 16, 16
    Cout = 8

    x1 = jax.random.normal(k_x1, (N, Cin, H, W), jnp.float32)            # NCHW
    weight = 0.1 * jax.random.normal(k_w, (3, 3, Cin, Cout), jnp.float32)  # HWIO
    bias = 0.05 * jax.random.normal(k_b, (Cout,), jnp.float32)
    gamma = 1.0 + 0.1 * jax.random.normal(k_g, (Cout,), jnp.float32)
    beta = 0.1 * jax.random.normal(k_be, (Cout,), jnp.float32)
    running_mean = 0.01 * jnp.arange(Cout, dtype=jnp.float32)
    running_var = 1.0 + 0.05 * jnp.arange(Cout, dtype=jnp.float32)

    tol = dict(rtol=2e-2, atol=2e-2)
    ref = up_reference(x1, None, weight, bias, gamma, beta,
                       running_mean, running_var)

    # --- forward(x1), multi row-tile grid.  Prefer single-buffered
    # (pl.Buffered(1)) grid-invariant blocks; fall back if unsupported. ---
    sb = True
    try:
        out = jax.block_until_ready(
            up_forward(x1, None, weight, bias, gamma, beta, running_mean,
                       running_var, row_tile=8, single_buffer=sb))
    except Exception:
        sb = False
        out = jax.block_until_ready(
            up_forward(x1, None, weight, bias, gamma, beta, running_mean,
                       running_var, row_tile=8, single_buffer=sb))
    assert out.shape == (N, Cout, 2 * H, 2 * W), out.shape
    assert jnp.allclose(out, ref, **tol), "mismatch (x2=None)"

    # --- forward(x1, x2) concat path (2 + 2 channels), auto-picked tile ---
    x1a = x1[:, :2]
    x2a = 0.5 * jax.random.normal(k_x2, (N, 2, H, W), jnp.float32)
    out_cat = jax.block_until_ready(
        up_forward(x1a, x2a, weight, bias, gamma, beta, running_mean,
                   running_var, single_buffer=sb))
    ref_cat = up_reference(x1a, x2a, weight, bias, gamma, beta,
                           running_mean, running_var)
    assert jnp.allclose(out_cat, ref_cat, **tol), "mismatch (concat path)"

    # --- activation=False path (Conv + bias only), single row tile (th == H) ---
    out_na = jax.block_until_ready(
        up_forward(x1, None, weight, bias, gamma, beta, running_mean,
                   running_var, activation=False, row_tile=16,
                   single_buffer=sb))
    ref_na = up_reference(x1, None, weight, bias, gamma, beta,
                          running_mean, running_var, activation=False)
    assert jnp.allclose(out_na, ref_na, **tol), "mismatch (activation=False)"

    print("KERNEL_OK")
</pallas_src>

<mosaic_0001>
module attributes {stable_mosaic.version = 11 : i64} {
  func.func @_up_conv_kernel(%arg0: i32, %arg1: i32, %arg2: memref<1x18x18x4xbf16, #tpu.memory_space<vmem>>, %arg3: memref<4x16x32xbf16, #tpu.memory_space<vmem>>, %arg4: memref<1x128xf32, #tpu.memory_space<vmem>>, %arg5: memref<1x128x128xbf16, #tpu.memory_space<vmem>>) attributes {dimension_semantics = [#tpu.dimension_semantics<parallel>, #tpu.dimension_semantics<parallel>], iteration_bounds = array<i64: 2, 2>, scalar_prefetch = 0 : i64, scratch_operands = 0 : i64, tpu.core_type = #tpu.core_type<tc>, window_params = [{pipeline_mode = #tpu.pipeline_mode<synchronous>, transform_indices = @transform_0, window_bounds = array<i64: 1, 18, 18, 4>}, {pipeline_mode = #tpu.pipeline_mode<synchronous>, transform_indices = @transform_1, window_bounds = array<i64: 4, 16, 32>}, {pipeline_mode = #tpu.pipeline_mode<synchronous>, transform_indices = @transform_2, window_bounds = array<i64: 1, 128>}, {transform_indices = @transform_3, window_bounds = array<i64: 1, 128, 128>}]} {
    %c8_i32 = arith.constant 8 : i32
    %0 = arith.muli %arg1, %c8_i32 : i32
    %1 = tpu.assume_multiple %0, 8 : i32
    %c0_i32 = arith.constant 0 : i32
    %2 = arith.addi %1, %c0_i32 : i32
    %c0 = arith.constant 0 : index
    %3 = arith.index_cast %2 : i32 to index
    %c0_0 = arith.constant 0 : index
    %c0_1 = arith.constant 0 : index
    %4 = vector.load %arg2[%c0, %3, %c0_0, %c0_1] : memref<1x18x18x4xbf16, #tpu.memory_space<vmem>>, vector<1x8x18x4xbf16>
    %5 = vector.shape_cast %4 : vector<1x8x18x4xbf16> to vector<8x18x4xbf16>
    %c1_i32 = arith.constant 1 : i32
    %6 = arith.addi %1, %c1_i32 : i32
    %c0_2 = arith.constant 0 : index
    %7 = arith.index_cast %6 : i32 to index
    %c0_3 = arith.constant 0 : index
    %c0_4 = arith.constant 0 : index
    %8 = vector.load %arg2[%c0_2, %7, %c0_3, %c0_4] : memref<1x18x18x4xbf16, #tpu.memory_space<vmem>>, vector<1x8x18x4xbf16>
    %9 = vector.shape_cast %8 : vector<1x8x18x4xbf16> to vector<8x18x4xbf16>
    %c2_i32 = arith.constant 2 : i32
    %10 = arith.addi %1, %c2_i32 : i32
    %c0_5 = arith.constant 0 : index
    %11 = arith.index_cast %10 : i32 to index
    %c0_6 = arith.constant 0 : index
    %c0_7 = arith.constant 0 : index
    %12 = vector.load %arg2[%c0_5, %11, %c0_6, %c0_7] : memref<1x18x18x4xbf16, #tpu.memory_space<vmem>>, vector<1x8x18x4xbf16>
    %13 = vector.shape_cast %12 : vector<1x8x18x4xbf16> to vector<8x18x4xbf16>
    %14 = vector.extract_strided_slice %5 {offsets = [0, 0, 0], sizes = [8, 16, 4], strides = [1, 1, 1]} : vector<8x18x4xbf16> to vector<8x16x4xbf16>
    %15 = vector.shape_cast %14 : vector<8x16x4xbf16> to vector<128x4xbf16>
    %16 = vector.extract_strided_slice %5 {offsets = [0, 1, 0], sizes = [8, 16, 4], strides = [1, 1, 1]} : vector<8x18x4xbf16> to vector<8x16x4xbf16>
    %17 = vector.shape_cast %16 : vector<8x16x4xbf16> to vector<128x4xbf16>
    %18 = vector.extract_strided_slice %5 {offsets = [0, 2, 0], sizes = [8, 16, 4], strides = [1, 1, 1]} : vector<8x18x4xbf16> to vector<8x16x4xbf16>
    %19 = vector.shape_cast %18 : vector<8x16x4xbf16> to vector<128x4xbf16>
    %20 = vector.extract_strided_slice %9 {offsets = [0, 0, 0], sizes = [8, 16, 4], strides = [1, 1, 1]} : vector<8x18x4xbf16> to vector<8x16x4xbf16>
    %21 = vector.shape_cast %20 : vector<8x16x4xbf16> to vector<128x4xbf16>
    %22 = vector.extract_strided_slice %9 {offsets = [0, 1, 0], sizes = [8, 16, 4], strides = [1, 1, 1]} : vector<8x18x4xbf16> to vector<8x16x4xbf16>
    %23 = vector.shape_cast %22 : vector<8x16x4xbf16> to vector<128x4xbf16>
    %24 = vector.extract_strided_slice %9 {offsets = [0, 2, 0], sizes = [8, 16, 4], strides = [1, 1, 1]} : vector<8x18x4xbf16> to vector<8x16x4xbf16>
    %25 = vector.shape_cast %24 : vector<8x16x4xbf16> to vector<128x4xbf16>
    %26 = vector.extract_strided_slice %13 {offsets = [0, 0, 0], sizes = [8, 16, 4], strides = [1, 1, 1]} : vector<8x18x4xbf16> to vector<8x16x4xbf16>
    %27 = vector.shape_cast %26 : vector<8x16x4xbf16> to vector<128x4xbf16>
    %28 = vector.extract_strided_slice %13 {offsets = [0, 1, 0], sizes = [8, 16, 4], strides = [1, 1, 1]} : vector<8x18x4xbf16> to vector<8x16x4xbf16>
    %29 = vector.shape_cast %28 : vector<8x16x4xbf16> to vector<128x4xbf16>
    %30 = vector.extract_strided_slice %13 {offsets = [0, 2, 0], sizes = [8, 16, 4], strides = [1, 1, 1]} : vector<8x18x4xbf16> to vector<8x16x4xbf16>
    %31 = vector.shape_cast %30 : vector<8x16x4xbf16> to vector<128x4xbf16>
    %32 = tpu.concatenate %15, %17, %21, %23 in 1 : vector<128x4xbf16>, vector<128x4xbf16>, vector<128x4xbf16>, vector<128x4xbf16> -> vector<128x16xbf16>
    %c0_8 = arith.constant 0 : index
    %c0_9 = arith.constant 0 : index
    %c0_10 = arith.constant 0 : index
    %33 = vector.load %arg3[%c0_8, %c0_9, %c0_10] : memref<4x16x32xbf16, #tpu.memory_space<vmem>>, vector<1x16x32xbf16>
    %34 = vector.shape_cast %33 : vector<1x16x32xbf16> to vector<16x32xbf16>
    %cst = arith.constant dense<0.000000e+00> : vector<128x32xf32>
    %35 = tpu.matmul %32, %34, %cst {dimension_numbers = #tpu.dot_dimension_numbers<[1], [0], [0], [1], [0, 0, 1, 1], [], []>} : vector<128x16xbf16>, vector<16x32xbf16>, vector<128x32xf32> -> vector<128x32xf32>
    %36 = tpu.concatenate %17, %19, %23, %25 in 1 : vector<128x4xbf16>, vector<128x4xbf16>, vector<128x4xbf16>, vector<128x4xbf16> -> vector<128x16xbf16>
    %c1 = arith.constant 1 : index
    %c0_11 = arith.constant 0 : index
    %c0_12 = arith.constant 0 : index
    %37 = vector.load %arg3[%c1, %c0_11, %c0_12] : memref<4x16x32xbf16, #tpu.memory_space<vmem>>, vector<1x16x32xbf16>
    %38 = vector.shape_cast %37 : vector<1x16x32xbf16> to vector<16x32xbf16>
    %cst_13 = arith.constant dense<0.000000e+00> : vector<128x32xf32>
    %39 = tpu.matmul %36, %38, %cst_13 {dimension_numbers = #tpu.dot_dimension_numbers<[1], [0], [0], [1], [0, 0, 1, 1], [], []>} : vector<128x16xbf16>, vector<16x32xbf16>, vector<128x32xf32> -> vector<128x32xf32>
    %40 = tpu.concatenate %21, %23, %27, %29 in 1 : vector<128x4xbf16>, vector<128x4xbf16>, vector<128x4xbf16>, vector<128x4xbf16> -> vector<128x16xbf16>
    %c2 = arith.constant 2 : index
    %c0_14 = arith.constant 0 : index
    %c0_15 = arith.constant 0 : index
    %41 = vector.load %arg3[%c2, %c0_14, %c0_15] : memref<4x16x32xbf16, #tpu.memory_space<vmem>>, vector<1x16x32xbf16>
    %42 = vector.shape_cast %41 : vector<1x16x32xbf16> to vector<16x32xbf16>
    %cst_16 = arith.constant dense<0.000000e+00> : vector<128x32xf32>
    %43 = tpu.matmul %40, %42, %cst_16 {dimension_numbers = #tpu.dot_dimension_numbers<[1], [0], [0], [1], [0, 0, 1, 1], [], []>} : vector<128x16xbf16>, vector<16x32xbf16>, vector<128x32xf32> -> vector<128x32xf32>
    %44 = tpu.concatenate %23, %25, %29, %31 in 1 : vector<128x4xbf16>, vector<128x4xbf16>, vector<128x4xbf16>, vector<128x4xbf16> -> vector<128x16xbf16>
    %c3 = arith.constant 3 : index
    %c0_17 = arith.constant 0 : index
    %c0_18 = arith.constant 0 : index
    %45 = vector.load %arg3[%c3, %c0_17, %c0_18] : memref<4x16x32xbf16, #tpu.memory_space<vmem>>, vector<1x16x32xbf16>
    %46 = vector.shape_cast %45 : vector<1x16x32xbf16> to vector<16x32xbf16>
    %cst_19 = arith.constant dense<0.000000e+00> : vector<128x32xf32>
    %47 = tpu.matmul %44, %46, %cst_19 {dimension_numbers = #tpu.dot_dimension_numbers<[1], [0], [0], [1], [0, 0, 1, 1], [], []>} : vector<128x16xbf16>, vector<16x32xbf16>, vector<128x32xf32> -> vector<128x32xf32>
    %48 = tpu.concatenate %35, %39, %43, %47 in 1 : vector<128x32xf32>, vector<128x32xf32>, vector<128x32xf32>, vector<128x32xf32> -> vector<128x128xf32>
    %c0_20 = arith.constant 0 : index
    %c0_21 = arith.constant 0 : index
    %49 = vector.load %arg4[%c0_20, %c0_21] : memref<1x128xf32, #tpu.memory_space<vmem>>, vector<1x128xf32>
    %50 = vector.broadcast %49 : vector<1x128xf32> to vector<128x128xf32>
    %51 = arith.addf %48, %50 : vector<128x128xf32>
    %cst_22 = arith.constant 0.000000e+00 : f32
    %52 = vector.broadcast %cst_22 : f32 to vector<128x128xf32>
    %53 = arith.maximumf %51, %52 : vector<128x128xf32>
    %54 = vector.shape_cast %53 : vector<128x128xf32> to vector<1x128x128xf32>
    %55 = arith.truncf %54 : vector<1x128x128xf32> to vector<1x128x128xbf16>
    %c0_23 = arith.constant 0 : index
    %c0_24 = arith.constant 0 : index
    %c0_25 = arith.constant 0 : index
    %56 = vector.load %arg5[%c0_23, %c0_24, %c0_25] : memref<1x128x128xbf16, #tpu.memory_space<vmem>>, vector<1x128x128xbf16>
    tpu.vector_store %arg5[%c0_23, %c0_24, %c0_25], %55 {strides = array<i32>} : memref<1x128x128xbf16, #tpu.memory_space<vmem>>, vector<1x128x128xbf16>,
    return
  }
  func.func @transform_0(%arg0: i32, %arg1: i32) -> (i32, i32, i32, i32) {
    %c0_i32 = arith.constant 0 : i32
    %c0_i32_0 = arith.constant 0 : i32
    %c0_i32_1 = arith.constant 0 : i32
    %c0_i32_2 = arith.constant 0 : i32
    return %arg0, %c0_i32, %c0_i32_0, %c0_i32_1 : i32, i32, i32, i32
  }
  func.func @transform_1(%arg0: i32, %arg1: i32) -> (i32, i32, i32) {
    %c0_i32 = arith.constant 0 : i32
    %c0_i32_0 = arith.constant 0 : i32
    %c0_i32_1 = arith.constant 0 : i32
    %c0_i32_2 = arith.constant 0 : i32
    return %c0_i32, %c0_i32_0, %c0_i32_1 : i32, i32, i32
  }
  func.func @transform_2(%arg0: i32, %arg1: i32) -> (i32, i32) {
    %c0_i32 = arith.constant 0 : i32
    %c0_i32_0 = arith.constant 0 : i32
    %c0_i32_1 = arith.constant 0 : i32
    return %c0_i32, %c0_i32_0 : i32, i32
  }
  func.func @transform_3(%arg0: i32, %arg1: i32) -> (i32, i32, i32) {
    %c0_i32 = arith.constant 0 : i32
    %c0_i32_0 = arith.constant 0 : i32
    return %arg0, %arg1, %c0_i32 : i32, i32, i32
  }
}

module attributes {stable_mosaic.version = 11 : i64} {
  func.func @_up_conv_kernel(%arg0: i32, %arg1: i32, %arg2: memref<1x18x18x4xbf16, #tpu.memory_space<vmem>>, %arg3: memref<4x16x32xbf16, #tpu.memory_space<vmem>>, %arg4: memref<1x128xf32, #tpu.memory_space<vmem>>, %arg5: memref<1x128x128xbf16, #tpu.memory_space<vmem>>) attributes {dimension_semantics = [#tpu.dimension_semantics<parallel>, #tpu.dimension_semantics<parallel>], iteration_bounds = array<i64: 2, 2>, scalar_prefetch = 0 : i64, scratch_operands = 0 : i64, tpu.core_type = #tpu.core_type<tc>, window_params = [{transform_indices = @transform_0, window_bounds = array<i64: 1, 18, 18, 4>}, {pipeline_mode = #tpu.pipeline_mode<synchronous>, transform_indices = @transform_1, window_bounds = array<i64: 4, 16, 32>}, {pipeline_mode = #tpu.pipeline_mode<synchronous>, transform_indices = @transform_2, window_bounds = array<i64: 1, 128>}, {transform_indices = @transform_3, window_bounds = array<i64: 1, 128, 128>}]} {
    %c8_i32 = arith.constant 8 : i32
    %0 = arith.muli %arg1, %c8_i32 : i32
    %1 = tpu.assume_multiple %0, 8 : i32
    %c0_i32 = arith.constant 0 : i32
    %2 = arith.addi %1, %c0_i32 : i32
    %c0 = arith.constant 0 : index
    %3 = arith.index_cast %2 : i32 to index
    %c0_0 = arith.constant 0 : index
    %c0_1 = arith.constant 0 : index
    %4 = vector.load %arg2[%c0, %3, %c0_0, %c0_1] : memref<1x18x18x4xbf16, #tpu.memory_space<vmem>>, vector<1x8x18x4xbf16>
    %5 = vector.shape_cast %4 : vector<1x8x18x4xbf16> to vector<8x18x4xbf16>
    %c1_i32 = arith.constant 1 : i32
    %6 = arith.addi %1, %c1_i32 : i32
    %c0_2 = arith.constant 0 : index
    %7 = arith.index_cast %6 : i32 to index
    %c0_3 = arith.constant 0 : index
    %c0_4 = arith.constant 0 : index
    %8 = vector.load %arg2[%c0_2, %7, %c0_3, %c0_4] : memref<1x18x18x4xbf16, #tpu.memory_space<vmem>>, vector<1x8x18x4xbf16>
    %9 = vector.shape_cast %8 : vector<1x8x18x4xbf16> to vector<8x18x4xbf16>
    %c2_i32 = arith.constant 2 : i32
    %10 = arith.addi %1, %c2_i32 : i32
    %c0_5 = arith.constant 0 : index
    %11 = arith.index_cast %10 : i32 to index
    %c0_6 = arith.constant 0 : index
    %c0_7 = arith.constant 0 : index
    %12 = vector.load %arg2[%c0_5, %11, %c0_6, %c0_7] : memref<1x18x18x4xbf16, #tpu.memory_space<vmem>>, vector<1x8x18x4xbf16>
    %13 = vector.shape_cast %12 : vector<1x8x18x4xbf16> to vector<8x18x4xbf16>
    %14 = vector.extract_strided_slice %5 {offsets = [0, 0, 0], sizes = [8, 16, 4], strides = [1, 1, 1]} : vector<8x18x4xbf16> to vector<8x16x4xbf16>
    %15 = vector.shape_cast %14 : vector<8x16x4xbf16> to vector<128x4xbf16>
    %16 = vector.extract_strided_slice %5 {offsets = [0, 1, 0], sizes = [8, 16, 4], strides = [1, 1, 1]} : vector<8x18x4xbf16> to vector<8x16x4xbf16>
    %17 = vector.shape_cast %16 : vector<8x16x4xbf16> to vector<128x4xbf16>
    %18 = vector.extract_strided_slice %5 {offsets = [0, 2, 0], sizes = [8, 16, 4], strides = [1, 1, 1]} : vector<8x18x4xbf16> to vector<8x16x4xbf16>
    %19 = vector.shape_cast %18 : vector<8x16x4xbf16> to vector<128x4xbf16>
    %20 = vector.extract_strided_slice %9 {offsets = [0, 0, 0], sizes = [8, 16, 4], strides = [1, 1, 1]} : vector<8x18x4xbf16> to vector<8x16x4xbf16>
    %21 = vector.shape_cast %20 : vector<8x16x4xbf16> to vector<128x4xbf16>
    %22 = vector.extract_strided_slice %9 {offsets = [0, 1, 0], sizes = [8, 16, 4], strides = [1, 1, 1]} : vector<8x18x4xbf16> to vector<8x16x4xbf16>
    %23 = vector.shape_cast %22 : vector<8x16x4xbf16> to vector<128x4xbf16>
    %24 = vector.extract_strided_slice %9 {offsets = [0, 2, 0], sizes = [8, 16, 4], strides = [1, 1, 1]} : vector<8x18x4xbf16> to vector<8x16x4xbf16>
    %25 = vector.shape_cast %24 : vector<8x16x4xbf16> to vector<128x4xbf16>
    %26 = vector.extract_strided_slice %13 {offsets = [0, 0, 0], sizes = [8, 16, 4], strides = [1, 1, 1]} : vector<8x18x4xbf16> to vector<8x16x4xbf16>
    %27 = vector.shape_cast %26 : vector<8x16x4xbf16> to vector<128x4xbf16>
    %28 = vector.extract_strided_slice %13 {offsets = [0, 1, 0], sizes = [8, 16, 4], strides = [1, 1, 1]} : vector<8x18x4xbf16> to vector<8x16x4xbf16>
    %29 = vector.shape_cast %28 : vector<8x16x4xbf16> to vector<128x4xbf16>
    %30 = vector.extract_strided_slice %13 {offsets = [0, 2, 0], sizes = [8, 16, 4], strides = [1, 1, 1]} : vector<8x18x4xbf16> to vector<8x16x4xbf16>
    %31 = vector.shape_cast %30 : vector<8x16x4xbf16> to vector<128x4xbf16>
    %32 = tpu.concatenate %15, %17, %21, %23 in 1 : vector<128x4xbf16>, vector<128x4xbf16>, vector<128x4xbf16>, vector<128x4xbf16> -> vector<128x16xbf16>
    %c0_8 = arith.constant 0 : index
    %c0_9 = arith.constant 0 : index
    %c0_10 = arith.constant 0 : index
    %33 = vector.load %arg3[%c0_8, %c0_9, %c0_10] : memref<4x16x32xbf16, #tpu.memory_space<vmem>>, vector<1x16x32xbf16>
    %34 = vector.shape_cast %33 : vector<1x16x32xbf16> to vector<16x32xbf16>
    %cst = arith.constant dense<0.000000e+00> : vector<128x32xf32>
    %35 = tpu.matmul %32, %34, %cst {dimension_numbers = #tpu.dot_dimension_numbers<[1], [0], [0], [1], [0, 0, 1, 1], [], []>} : vector<128x16xbf16>, vector<16x32xbf16>, vector<128x32xf32> -> vector<128x32xf32>
    %36 = tpu.concatenate %17, %19, %23, %25 in 1 : vector<128x4xbf16>, vector<128x4xbf16>, vector<128x4xbf16>, vector<128x4xbf16> -> vector<128x16xbf16>
    %c1 = arith.constant 1 : index
    %c0_11 = arith.constant 0 : index
    %c0_12 = arith.constant 0 : index
    %37 = vector.load %arg3[%c1, %c0_11, %c0_12] : memref<4x16x32xbf16, #tpu.memory_space<vmem>>, vector<1x16x32xbf16>
    %38 = vector.shape_cast %37 : vector<1x16x32xbf16> to vector<16x32xbf16>
    %cst_13 = arith.constant dense<0.000000e+00> : vector<128x32xf32>
    %39 = tpu.matmul %36, %38, %cst_13 {dimension_numbers = #tpu.dot_dimension_numbers<[1], [0], [0], [1], [0, 0, 1, 1], [], []>} : vector<128x16xbf16>, vector<16x32xbf16>, vector<128x32xf32> -> vector<128x32xf32>
    %40 = tpu.concatenate %21, %23, %27, %29 in 1 : vector<128x4xbf16>, vector<128x4xbf16>, vector<128x4xbf16>, vector<128x4xbf16> -> vector<128x16xbf16>
    %c2 = arith.constant 2 : index
    %c0_14 = arith.constant 0 : index
    %c0_15 = arith.constant 0 : index
    %41 = vector.load %arg3[%c2, %c0_14, %c0_15] : memref<4x16x32xbf16, #tpu.memory_space<vmem>>, vector<1x16x32xbf16>
    %42 = vector.shape_cast %41 : vector<1x16x32xbf16> to vector<16x32xbf16>
    %cst_16 = arith.constant dense<0.000000e+00> : vector<128x32xf32>
    %43 = tpu.matmul %40, %42, %cst_16 {dimension_numbers = #tpu.dot_dimension_numbers<[1], [0], [0], [1], [0, 0, 1, 1], [], []>} : vector<128x16xbf16>, vector<16x32xbf16>, vector<128x32xf32> -> vector<128x32xf32>
    %44 = tpu.concatenate %23, %25, %29, %31 in 1 : vector<128x4xbf16>, vector<128x4xbf16>, vector<128x4xbf16>, vector<128x4xbf16> -> vector<128x16xbf16>
    %c3 = arith.constant 3 : index
    %c0_17 = arith.constant 0 : index
    %c0_18 = arith.constant 0 : index
    %45 = vector.load %arg3[%c3, %c0_17, %c0_18] : memref<4x16x32xbf16, #tpu.memory_space<vmem>>, vector<1x16x32xbf16>
    %46 = vector.shape_cast %45 : vector<1x16x32xbf16> to vector<16x32xbf16>
    %cst_19 = arith.constant dense<0.000000e+00> : vector<128x32xf32>
    %47 = tpu.matmul %44, %46, %cst_19 {dimension_numbers = #tpu.dot_dimension_numbers<[1], [0], [0], [1], [0, 0, 1, 1], [], []>} : vector<128x16xbf16>, vector<16x32xbf16>, vector<128x32xf32> -> vector<128x32xf32>
    %48 = tpu.concatenate %35, %39, %43, %47 in 1 : vector<128x32xf32>, vector<128x32xf32>, vector<128x32xf32>, vector<128x32xf32> -> vector<128x128xf32>
    %c0_20 = arith.constant 0 : index
    %c0_21 = arith.constant 0 : index
    %49 = vector.load %arg4[%c0_20, %c0_21] : memref<1x128xf32, #tpu.memory_space<vmem>>, vector<1x128xf32>
    %50 = vector.broadcast %49 : vector<1x128xf32> to vector<128x128xf32>
    %51 = arith.addf %48, %50 : vector<128x128xf32>
    %cst_22 = arith.constant 0.000000e+00 : f32
    %52 = vector.broadcast %cst_22 : f32 to vector<128x128xf32>
    %53 = arith.maximumf %51, %52 : vector<128x128xf32>
    %54 = vector.shape_cast %53 : vector<128x128xf32> to vector<1x128x128xf32>
    %55 = arith.truncf %54 : vector<1x128x128xf32> to vector<1x128x128xbf16>
    %c0_23 = arith.constant 0 : index
    %c0_24 = arith.constant 0 : index
    %c0_25 = arith.constant 0 : index
    %56 = vector.load %arg5[%c0_23, %c0_24, %c0_25] : memref<1x128x128xbf16, #tpu.memory_space<vmem>>, vector<1x128x128xbf16>
    tpu.vector_store %arg5[%c0_23, %c0_24, %c0_25], %55 {strides = array<i32>} : memref<1x128x128xbf16, #tpu.memory_space<vmem>>, vector<1x128x128xbf16>,
    return
  }
  func.func @transform_0(%arg0: i32, %arg1: i32) -> (i32, i32, i32, i32) {
    %c0_i32 = arith.constant 0 : i32
    %c0_i32_0 = arith.constant 0 : i32
    %c0_i32_1 = arith.constant 0 : i32
    %c0_i32_2 = arith.constant 0 : i32
    return %arg0, %c0_i32, %c0_i32_0, %c0_i32_1 : i32, i32, i32, i32
  }
  func.func @transform_1(%arg0: i32, %arg1: i32) -> (i32, i32, i32) {
    %c0_i32 = arith.constant 0 : i32
    %c0_i32_0 = arith.constant 0 : i32
    %c0_i32_1 = arith.constant 0 : i32
    %c0_i32_2 = arith.constant 0 : i32
    return %c0_i32, %c0_i32_0, %c0_i32_1 : i32, i32, i32
  }
  func.func @transform_2(%arg0: i32, %arg1: i32) -> (i32, i32) {
    %c0_i32 = arith.constant 0 : i32
    %c0_i32_0 = arith.constant 0 : i32
    %c0_i32_1 = arith.constant 0 : i32
    return %c0_i32, %c0_i32_0 : i32, i32
  }
  func.func @transform_3(%arg0: i32, %arg1: i32) -> (i32, i32, i32) {
    %c0_i32 = arith.constant 0 : i32
    %c0_i32_0 = arith.constant 0 : i32
    return %arg0, %arg1, %c0_i32 : i32, i32, i32
  }
}

</mosaic_0001>

<llo_original>
// kernel: tile.8
$region0: #{tile.8}
  #allocation0 [shape = 's32[1]{0}', space=sflag, size = 0x4, scoped, tag = 'scoped memory for tile.8']
  %s0 = inlined_call_operand.vmem [shape: f32[32], index: 0, kind: input, shape index: {}]
  %s1 = inlined_call_operand.vmem [shape: f32[4,32], index: 1, kind: output, shape index: {}]
  // Predicated region
  $region2: #{tile.8} parent=0 // pred_check
    _
  $region3: #{tile.8} parent=0 // pred_check_branch
    %3 = sbr.rel (0) target = $region5
  $region4: #{tile.8} parent=0 // pred_region
    _
  $region5: #{tile.8} parent=0 // pred_fallthru
    _
  %v4 = vld [vmem:[%s0] ss:$0 sm:$0xff]
  %5 = vst [vmem:[%s1] sm:$0xf] %v4

// kernel: tile.9
$region0: #{tile.9}
  %s0 = inlined_call_operand.vmem [shape: f32[4,32], index: 0, kind: input, shape index: {}]
  %s1 = inlined_call_operand.vmem [shape: f32[1,128], index: 1, kind: output, shape index: {}]
  $region1: #{tile.9} parent=0
    #allocation0 [shape = 'u8[4096]{0}', space=vmem, size = 0x1000, scoped, tag = 'scoped mem for output reshape']
    #allocation1 [shape = 'u8[4096]{0}', space=vmem, size = 0x1000, scoped, tag = 'scoped mem for input reshape']
    %s3 = sshllo.u32 0, 4
    %v4 = vld [vmem:[%s0] sm:%s3]
    %5 = vst [vmem:[#allocation1] sm:%s3] %v4
    %v6 = vld [vmem:[#allocation1] sm:$0x1]
    %vm7 = vcmask 261120
    %8 = vst.msk [vmem:[#allocation0] sm:$0x1] %vm7, %v6
    %s9 = scalar_lea.vmem [#allocation1], 3
    %v10 = vld [vmem:[%s9] sm:$0x1]
    %11 = vrot.lane.b32.xlu0 %v10, 96
    %v12 = vpop.permute.xlu0 %11
    %vm13 = vcmask 1048320
    %14 = vst.msk [vmem:[#allocation0] sm:$0x1] %vm13, %v12
    %s15 = scalar_lea.vmem [#allocation1], 2
    %v16 = vld [vmem:[%s15] sm:$0x1]
    %17 = vrot.lane.b32.xlu0 %v16, 64
    %v18 = vpop.permute.xlu0 %17
    %vm19 = vcmask 785920
    %20 = vst.msk [vmem:[#allocation0] sm:$0x1] %vm19, %v18
    %s21 = scalar_lea.vmem [#allocation1], 1
    %v22 = vld [vmem:[%s21] sm:$0x1]
    %23 = vrot.lane.b32.xlu0 %v22, 32
    %v24 = vpop.permute.xlu0 %23
    %vm25 = vcmask 523520
    %26 = vst.msk [vmem:[#allocation0] sm:$0x1] %vm25, %v24
    %s28 = sshllo.u32 0, 1
    %v30 = vld [vmem:[#allocation0] sm:%s28]
    %s31 = sshllo.u32 0, 1
    %32 = vst [vmem:[%s1] sm:%s31] %v30

// kernel: up_forward.1
$region0: #{up_forward.1}
  #allocation0 [shape = 'u32[]', space=smem, size = 0x4, offset = 0x4, fixed_abs, tag = 'smem constant byte address 0x4 - core index']
  #allocation1 [shape = 'u32[144,128]{1,0:T(1,128)}', space=vmem, size = 0x12000, scoped, tag = 'internal scratch']
  %s0 = inlined_call_operand.vmem [shape: bf16[2,18,18,4], index: 0, kind: input, shape index: {}]
  %s1 = inlined_call_operand.vmem [shape: bf16[4,16,32], index: 1, kind: input, shape index: {}]
  %s2 = inlined_call_operand.vmem [shape: f32[1,128], index: 2, kind: input, shape index: {}]
  %s3 = inlined_call_operand.vmem [shape: bf16[2,256,128], index: 3, kind: output, shape index: {}]
  %s4 = sld [smem:[#allocation0]]
  $region45: #{up_forward.1} parent=0
    _
  %s6 = ssub.s32 1, %s4
  %s7 = scalar_select 0, %s6, %s4
  loop: start=0, step=1, limit=6
  $region2: #{up_forward.1} parent=0 // loop_pre_header
    _
  $region3: #{up_forward.1} parent=0 // loop_header
    %s9 = sphi 0, %s13
    %p10 = scmp.ge.s32.totalorder %s9, 6
    %s16 = sphi 0, %s28
    %s17 = sphi 0, %s24
    %s18 = sphi 0, %s16
    %s19 = sphi 0, %s17
    %s20 = sphi 0, %s18
    %s21 = sphi 0, %s19
    %s31 = sphi 0, %s33
    %s34 = sphi 0, %s31
    %s35 = sphi 0, %s34
    %s51 = sphi 0, %s35
    %s55 = sphi 0, %s55
    %s57 = sphi 0, %s55
    %s58 = sphi 0, %s57
    %s72 = sphi 0, %s58
    %s76 = sphi 0, %s76
    %s78 = sphi 0, %s76
    %s79 = sphi 0, %s78
    %s93 = sphi 0, %s79
    %s101 = sphi 0, %s103
    %s104 = sphi 0, %s101
    %s105 = sphi 0, %s104
    %s121 = sphi 0, %s105
  $region4: #{up_forward.1} parent=0 // loop_header_branch
    %12 = sbr.rel (%p10) target = $region8
  $region5: #{up_forward.1} parent=0 // loop_body
    %s14 = ssub.s32 %s9, 1
    %s15 = ssub.s32 %s9, 2
    %s22 = sadd.s32 1, %s17
    %p23 = scmp.ge.s32.totalorder %s22, 2
    %s24 = scalar_select %p23, 0, %s22
    %s25 = sadd.s32 1, %s16
    %s26 = scalar_select %p23, %s25, %s16
    %p27 = scmp.ge.s32.totalorder %s26, 2
    %s28 = scalar_select %p27, 0, %s26
    %s29 = ssub.s32 %s16, %s28
    %p30 = scmp.eq.s32.totalorder %s29, 0
    %s32 = sadd.s32 %s31, 1
    %s33 = scalar_select %p30, %s31, %s32
    %p36 = pneg %p30
    %p37 = scmp.eq.s32.totalorder %s9, 3
    %p38 = por %p36, %p37
    %p39 = scmp.ne.s32.totalorder %s31, %s34
    %p40 = scmp.eq.s32.totalorder %s9, 0
    %p41 = por %p39, %p40
    %p42 = scmp.ne.s32.totalorder %s31, %s34
    %p43 = scmp.eq.s32.totalorder %s14, 3
    %p44 = por %p42, %p43
    %p45 = scmp.ne.s32.totalorder %s34, %s35
    %p46 = scmp.eq.s32.totalorder %s14, 0
    %p47 = por %p45, %p46
    %p48 = scmp.ne.s32.totalorder %s34, %s35
    %p49 = scmp.eq.s32.totalorder %s15, 3
    %p50 = por %p48, %p49
    %p52 = scmp.ne.s32.totalorder %s35, %s51
    %p53 = scmp.eq.s32.totalorder %s15, 0
    %p54 = por %p52, %p53
    %s56 = sadd.s32 %s55, 1
    %p59 = scmp.eq.s32.totalorder %s9, 3
    %p60 = scmp.ne.s32.totalorder %s55, %s57
    %p61 = scmp.eq.s32.totalorder %s9, 0
    %p62 = por %p60, %p61
    %p63 = scmp.ne.s32.totalorder %s55, %s57
    %p64 = scmp.eq.s32.totalorder %s14, 3
    %p65 = por %p63, %p64
    %p66 = scmp.ne.s32.totalorder %s57, %s58
    %p67 = scmp.eq.s32.totalorder %s14, 0
    %p68 = por %p66, %p67
    %p69 = scmp.ne.s32.totalorder %s57, %s58
    %p70 = scmp.eq.s32.totalorder %s15, 3
    %p71 = por %p69, %p70
    %p73 = scmp.ne.s32.totalorder %s58, %s72
    %p74 = scmp.eq.s32.totalorder %s15, 0
    %p75 = por %p73, %p74
    %s77 = sadd.s32 %s76, 1
    %p80 = scmp.eq.s32.totalorder %s9, 3
    %p81 = scmp.ne.s32.totalorder %s76, %s78
    %p82 = scmp.eq.s32.totalorder %s9, 0
    %p83 = por %p81, %p82
    %p84 = scmp.ne.s32.totalorder %s76, %s78
    %p85 = scmp.eq.s32.totalorder %s14, 3
    %p86 = por %p84, %p85
    %p87 = scmp.ne.s32.totalorder %s78, %s79
    %p88 = scmp.eq.s32.totalorder %s14, 0
    %p89 = por %p87, %p88
    %p90 = scmp.ne.s32.totalorder %s78, %s79
    %p91 = scmp.eq.s32.totalorder %s15, 3
    %p92 = por %p90, %p91
    %p94 = scmp.ne.s32.totalorder %s79, %s93
    %p95 = scmp.eq.s32.totalorder %s15, 0
    %p96 = por %p94, %p95
    %s97 = ssub.s32 %s16, %s28
    %s98 = ssub.s32 %s17, %s24
    %s99 = sor.u32 %s97, %s98
    %p100 = scmp.eq.s32.totalorder %s99, 0
    %s102 = sadd.s32 %s101, 1
    %s103 = scalar_select %p100, %s101, %s102
    %p106 = pneg %p100
    %p107 = scmp.eq.s32.totalorder %s9, 3
    %p108 = por %p106, %p107
    %p109 = scmp.ne.s32.totalorder %s101, %s104
    %p110 = scmp.eq.s32.totalorder %s9, 0
    %p111 = por %p109, %p110
    %p112 = scmp.ne.s32.totalorder %s101, %s104
    %p113 = scmp.eq.s32.totalorder %s14, 3
    %p114 = por %p112, %p113
    %p115 = scmp.ne.s32.totalorder %s104, %s105
    %p116 = scmp.eq.s32.totalorder %s14, 0
    %p117 = por %p115, %p116
    %p118 = scmp.ne.s32.totalorder %s104, %s105
    %p119 = scmp.eq.s32.totalorder %s15, 3
    %p120 = por %p118, %p119
    %p122 = scmp.ne.s32.totalorder %s105, %s121
    %p123 = scmp.eq.s32.totalorder %s15, 0
    %p124 = por %p122, %p123
    %p125 = scmp.le.s32.totalorder 1, %s9
    %p126 = scmp.lt.s32.totalorder %s9, 5
    %p127 = pnand %p125, %p126
    %p128 = pneg %p127
    // Predicated region
    $region9: #{up_forward.1} parent=5 // pred_check
      _
    $region10: #{up_forward.1} parent=5 // pred_check_branch
      %130 = sbr.rel (%p127) target = $region12
    $region11: #{up_forward.1} parent=5 // pred_region
      %s131 = ssub.s32 %s9, 1
      // Predicated region
      $region13: #{up_forward.1} parent=11 // pred_check
        %p132 = pneg %p47
      $region14: #{up_forward.1} parent=11 // pred_check_branch
        %134 = sbr.rel (%p132) target = $region16
      $region15: #{up_forward.1} parent=11 // pred_region
        %p135 = scmp.lt.s32.totalorder %s18, 1
        %s136 = scalar_select %p135, %s18, 1
        %s137 = smul.addr %s136, 54
        %s138 = smul.addr %s137, 4
        %s139 = scalar_lea.vmem %s0, %s138
      $region16: #{up_forward.1} parent=11 // pred_fallthru
        _
      // Predicated region
      $region17: #{up_forward.1} parent=11 // pred_check
        %p140 = pneg %p68
      $region18: #{up_forward.1} parent=11 // pred_check_branch
        %142 = sbr.rel (%p140) target = $region20
      $region19: #{up_forward.1} parent=11 // pred_region
        _
      $region20: #{up_forward.1} parent=11 // pred_fallthru
        _
      // Predicated region
      $region21: #{up_forward.1} parent=11 // pred_check
        %p143 = pneg %p89
      $region22: #{up_forward.1} parent=11 // pred_check_branch
        %145 = sbr.rel (%p143) target = $region24
      $region23: #{up_forward.1} parent=11 // pred_region
        _
      $region24: #{up_forward.1} parent=11 // pred_fallthru
        _
    $region12: #{up_forward.1} parent=5 // pred_fallthru
      _
    %p146 = scmp.lt.s32.totalorder %s9, 4
    // Predicated region
    $region25: #{up_forward.1} parent=5 // pred_check
      %p147 = pneg %p146
    $region26: #{up_forward.1} parent=5 // pred_check_branch
      %149 = sbr.rel (%p147) target = $region28
    $region27: #{up_forward.1} parent=5 // pred_region
      _
    $region28: #{up_forward.1} parent=5 // pred_fallthru
      _
    %p150 = scmp.le.s32.totalorder 1, %s9
    %p151 = scmp.lt.s32.totalorder %s9, 5
    %p152 = pnand %p150, %p151
    %p153 = pneg %p152
    // Predicated region
    $region29: #{up_forward.1} parent=5 // pred_check
      _
    $region30: #{up_forward.1} parent=5 // pred_check_branch
      %155 = sbr.rel (%p152) target = $region32
    $region31: #{up_forward.1} parent=5 // pred_region
      %s156 = ssub.s32 %s9, 1
      %p157 = scmp.lt.s32.totalorder %s18, 1
      %s158 = scalar_select %p157, %s18, 1
      %s159 = smul.addr %s158, 54
      %s160 = smul.addr %s159, 4
      %s161 = scalar_lea.vmem %s0, %s160
      %p162 = pneg %p47
      %p163 = pneg %p44
      %p164 = pneg %p68
      %p165 = pneg %p65
      %p166 = pneg %p89
      %p167 = pneg %p86
      %p168 = pneg %p117
      %p169 = pneg %p114
      %s170 = smul.u32 16, %s19
      %p171 = scmp.lt.s32.totalorder %s18, 1
      %s172 = scalar_select %p171, %s18, 1
      %p173 = scmp.lt.s32.totalorder %s170, 31
      %s174 = scalar_select %p173, %s170, 31
      %s175 = smul.addr %s172, 32
      %s176 = sadd.s32 %s174, %s175
      %s177 = smul.addr %s176, 4
      %s178 = scalar_lea.vmem %s3, %s177
      %p179 = scmp.lt.s32.totalorder %s18, 1
      %s180 = scalar_select %p179, %s18, 1
      %s181 = smul.addr %s180, 54
      %s182 = smul.addr %s181, 4
      %s183 = scalar_lea.vmem %s0, %s182
      %s184 = smul.u32 16, %s19
      %p185 = scmp.lt.s32.totalorder %s18, 1
      %s186 = scalar_select %p185, %s18, 1
      %p187 = scmp.lt.s32.totalorder %s184, 31
      %s188 = scalar_select %p187, %s184, 31
      %s189 = smul.addr %s186, 32
      %s190 = sadd.s32 %s188, %s189
      %s191 = smul.addr %s190, 4
      %s192 = scalar_lea.vmem %s3, %s191
      %s193 = smul.u32 16, %s19
      %s195 = smul.u32 %s19, 8
      %s196 = smul.u32 %s195, 3
      %s197 = smul.addr %s196, 4
      %s198 = scalar_lea.vmem %s183, %s197
      %v199 = vld [vmem:[%s198] sm:$0xf]
      %v200 = vld [vmem:[%s198 + $0x4] sm:$0xf]
      %v201 = vld [vmem:[%s198 + $0x8] sm:$0x1]
      %v202 = vld [vmem:[%s198 + $0xc] sm:$0xf]
      %v203 = vld [vmem:[%s198 + $0x10] sm:$0xf]
      %v204 = vld [vmem:[%s198 + $0x14] sm:$0x1]
      %v205 = vld [vmem:[%s198 + $0x18] sm:$0xf]
      %v206 = vld [vmem:[%s198 + $0x1c] sm:$0xf]
      %v207 = vld [vmem:[%s198 + $0x20] sm:$0x1]
      %v208 = vld [vmem:[%s198 + $0x24] sm:$0xf]
      %v209 = vld [vmem:[%s198 + $0x28] sm:$0xf]
      %v210 = vld [vmem:[%s198 + $0x2c] sm:$0x1]
      %v211 = vld [vmem:[%s198 + $0x30] sm:$0xf]
      %v212 = vld [vmem:[%s198 + $0x34] sm:$0xf]
      %v213 = vld [vmem:[%s198 + $0x38] sm:$0x1]
      %v214 = vld [vmem:[%s198 + $0x3c] sm:$0xf]
      %v215 = vld [vmem:[%s198 + $0x40] sm:$0xf]
      %v216 = vld [vmem:[%s198 + $0x44] sm:$0x1]
      %v217 = vld [vmem:[%s198 + $0x48] sm:$0xf]
      %v218 = vld [vmem:[%s198 + $0x4c] sm:$0xf]
      %v219 = vld [vmem:[%s198 + $0x50] sm:$0x1]
      %v220 = vld [vmem:[%s198 + $0x54] sm:$0xf]
      %v221 = vld [vmem:[%s198 + $0x58] sm:$0xf]
      %v222 = vld [vmem:[%s198 + $0x5c] sm:$0x1]
      %s223 = sadd.s32 %s195, 1
      %s224 = smul.u32 %s223, 3
      %s225 = smul.addr %s224, 4
      %s226 = scalar_lea.vmem %s183, %s225
      %v227 = vld [vmem:[%s226] sm:$0xf]
      %v228 = vld [vmem:[%s226 + $0x4] sm:$0xf]
      %v229 = vld [vmem:[%s226 + $0x8] sm:$0x1]
      %v230 = vld [vmem:[%s226 + $0xc] sm:$0xf]
      %v231 = vld [vmem:[%s226 + $0x10] sm:$0xf]
      %v232 = vld [vmem:[%s226 + $0x14] sm:$0x1]
      %v233 = vld [vmem:[%s226 + $0x18] sm:$0xf]
      %v234 = vld [vmem:[%s226 + $0x1c] sm:$0xf]
      %v235 = vld [vmem:[%s226 + $0x20] sm:$0x1]
      %v236 = vld [vmem:[%s226 + $0x24] sm:$0xf]
      %v237 = vld [vmem:[%s226 + $0x28] sm:$0xf]
      %v238 = vld [vmem:[%s226 + $0x2c] sm:$0x1]
      %v239 = vld [vmem:[%s226 + $0x30] sm:$0xf]
      %v240 = vld [vmem:[%s226 + $0x34] sm:$0xf]
      %v241 = vld [vmem:[%s226 + $0x38] sm:$0x1]
      %v242 = vld [vmem:[%s226 + $0x3c] sm:$0xf]
      %v243 = vld [vmem:[%s226 + $0x40] sm:$0xf]
      %v244 = vld [vmem:[%s226 + $0x44] sm:$0x1]
      %v245 = vld [vmem:[%s226 + $0x48] sm:$0xf]
      %v246 = vld [vmem:[%s226 + $0x4c] sm:$0xf]
      %v247 = vld [vmem:[%s226 + $0x50] sm:$0x1]
      %v248 = vld [vmem:[%s226 + $0x54] sm:$0xf]
      %v249 = vld [vmem:[%s226 + $0x58] sm:$0xf]
      %v250 = vld [vmem:[%s226 + $0x5c] sm:$0x1]
      %s251 = sadd.s32 %s195, 2
      %s252 = smul.u32 %s251, 3
      %s253 = smul.addr %s252, 4
      %s254 = scalar_lea.vmem %s183, %s253
      %v255 = vld [vmem:[%s254] sm:$0xf]
      %v256 = vld [vmem:[%s254 + $0x4] sm:$0xf]
      %v257 = vld [vmem:[%s254 + $0x8] sm:$0x1]
      %v258 = vld [vmem:[%s254 + $0xc] sm:$0xf]
      %v259 = vld [vmem:[%s254 + $0x10] sm:$0xf]
      %v260 = vld [vmem:[%s254 + $0x14] sm:$0x1]
      %v261 = vld [vmem:[%s254 + $0x18] sm:$0xf]
      %v262 = vld [vmem:[%s254 + $0x1c] sm:$0xf]
      %v263 = vld [vmem:[%s254 + $0x20] sm:$0x1]
      %v264 = vld [vmem:[%s254 + $0x24] sm:$0xf]
      %v265 = vld [vmem:[%s254 + $0x28] sm:$0xf]
      %v266 = vld [vmem:[%s254 + $0x2c] sm:$0x1]
      %v267 = vld [vmem:[%s254 + $0x30] sm:$0xf]
      %v268 = vld [vmem:[%s254 + $0x34] sm:$0xf]
      %v269 = vld [vmem:[%s254 + $0x38] sm:$0x1]
      %v270 = vld [vmem:[%s254 + $0x3c] sm:$0xf]
      %v271 = vld [vmem:[%s254 + $0x40] sm:$0xf]
      %v272 = vld [vmem:[%s254 + $0x44] sm:$0x1]
      %v273 = vld [vmem:[%s254 + $0x48] sm:$0xf]
      %v274 = vld [vmem:[%s254 + $0x4c] sm:$0xf]
      %v275 = vld [vmem:[%s254 + $0x50] sm:$0x1]
      %v276 = vld [vmem:[%s254 + $0x54] sm:$0xf]
      %v277 = vld [vmem:[%s254 + $0x58] sm:$0xf]
      %v278 = vld [vmem:[%s254 + $0x5c] sm:$0x1]
      %vm279 = vsmask.f32 3328
      %vm280 = vsmask.f32 7440
      %vm281 = vmor %vm279, %vm280
      %v283 = vshrl.u32 %v199, 16
      %v285 = vrot.slane %v283, 4
      %v286 = vshll.u32 %v199, 16
      %v288 = vrot.slane %v286, 5
      %v289 = vor.u32 %v285, %v288
      %v290 = vrot.slane %v289, 4
      %v292 = vshll.u32 %v200, 16
      %v294 = vrot.slane %v292, 5
      %v295 = vsel %vm281, %v290, %v294
      %v296 = vshrl.u32 %v200, 16
      %v298 = vrot.slane %v296, 4
      %v299 = vor.u32 %v298, %v294
      %v300 = vrot.slane %v299, 4
      %v302 = vshll.u32 %v201, 16
      %v304 = vrot.slane %v302, 5
      %v305 = vsel %vm281, %v300, %v304
      %v307 = vshrl.u32 %v202, 16
      %v309 = vrot.slane %v307, 4
      %v310 = vshll.u32 %v202, 16
      %v312 = vrot.slane %v310, 5
      %v313 = vor.u32 %v309, %v312
      %v314 = vrot.slane %v313, 4
      %v316 = vshll.u32 %v203, 16
      %v318 = vrot.slane %v316, 5
      %v319 = vsel %vm281, %v314, %v318
      %v320 = vshrl.u32 %v203, 16
      %v322 = vrot.slane %v320, 4
      %v323 = vor.u32 %v322, %v318
      %v324 = vrot.slane %v323, 4
      %v326 = vshll.u32 %v204, 16
      %v328 = vrot.slane %v326, 5
      %v329 = vsel %vm281, %v324, %v328
      %v331 = vshrl.u32 %v205, 16
      %v333 = vrot.slane %v331, 4
      %v334 = vshll.u32 %v205, 16
      %v336 = vrot.slane %v334, 5
      %v337 = vor.u32 %v333, %v336
      %v338 = vrot.slane %v337, 4
      %v340 = vshll.u32 %v206, 16
      %v342 = vrot.slane %v340, 5
      %v343 = vsel %vm281, %v338, %v342
      %v344 = vshrl.u32 %v206, 16
      %v346 = vrot.slane %v344, 4
      %v347 = vor.u32 %v346, %v342
      %v348 = vrot.slane %v347, 4
      %v350 = vshll.u32 %v207, 16
      %v352 = vrot.slane %v350, 5
      %v353 = vsel %vm281, %v348, %v352
      %v355 = vshrl.u32 %v208, 16
      %v357 = vrot.slane %v355, 4
      %v358 = vshll.u32 %v208, 16
      %v360 = vrot.slane %v358, 5
      %v361 = vor.u32 %v357, %v360
      %v362 = vrot.slane %v361, 4
      %v364 = vshll.u32 %v209, 16
      %v366 = vrot.slane %v364, 5
      %v367 = vsel %vm281, %v362, %v366
      %v368 = vshrl.u32 %v209, 16
      %v370 = vrot.slane %v368, 4
      %v371 = vor.u32 %v370, %v366
      %v372 = vrot.slane %v371, 4
      %v374 = vshll.u32 %v210, 16
      %v376 = vrot.slane %v374, 5
      %v377 = vsel %vm281, %v372, %v376
      %v379 = vshrl.u32 %v211, 16
      %v381 = vrot.slane %v379, 4
      %v382 = vshll.u32 %v211, 16
      %v384 = vrot.slane %v382, 5
      %v385 = vor.u32 %v381, %v384
      %v386 = vrot.slane %v385, 4
      %v388 = vshll.u32 %v212, 16
      %v390 = vrot.slane %v388, 5
      %v391 = vsel %vm281, %v386, %v390
      %v392 = vshrl.u32 %v212, 16
      %v394 = vrot.slane %v392, 4
      %v395 = vor.u32 %v394, %v390
      %v396 = vrot.slane %v395, 4
      %v398 = vshll.u32 %v213, 16
      %v400 = vrot.slane %v398, 5
      %v401 = vsel %vm281, %v396, %v400
      %v403 = vshrl.u32 %v214, 16
      %v405 = vrot.slane %v403, 4
      %v406 = vshll.u32 %v214, 16
      %v408 = vrot.slane %v406, 5
      %v409 = vor.u32 %v405, %v408
      %v410 = vrot.slane %v409, 4
      %v412 = vshll.u32 %v215, 16
      %v414 = vrot.slane %v412, 5
      %v415 = vsel %vm281, %v410, %v414
      %v416 = vshrl.u32 %v215, 16
      %v418 = vrot.slane %v416, 4
      %v419 = vor.u32 %v418, %v414
      %v420 = vrot.slane %v419, 4
      %v422 = vshll.u32 %v216, 16
      %v424 = vrot.slane %v422, 5
      %v425 = vsel %vm281, %v420, %v424
      %v427 = vshrl.u32 %v217, 16
      %v429 = vrot.slane %v427, 4
      %v430 = vshll.u32 %v217, 16
      %v432 = vrot.slane %v430, 5
      %v433 = vor.u32 %v429, %v432
      %v434 = vrot.slane %v433, 4
      %v436 = vshll.u32 %v218, 16
      %v438 = vrot.slane %v436, 5
      %v439 = vsel %vm281, %v434, %v438
      %v440 = vshrl.u32 %v218, 16
      %v442 = vrot.slane %v440, 4
      %v443 = vor.u32 %v442, %v438
      %v444 = vrot.slane %v443, 4
      %v446 = vshll.u32 %v219, 16
      %v448 = vrot.slane %v446, 5
      %v449 = vsel %vm281, %v444, %v448
      %v451 = vshrl.u32 %v220, 16
      %v453 = vrot.slane %v451, 4
      %v454 = vshll.u32 %v220, 16
      %v456 = vrot.slane %v454, 5
      %v457 = vor.u32 %v453, %v456
      %v458 = vrot.slane %v457, 4
      %v460 = vshll.u32 %v221, 16
      %v462 = vrot.slane %v460, 5
      %v463 = vsel %vm281, %v458, %v462
      %v464 = vshrl.u32 %v221, 16
      %v466 = vrot.slane %v464, 4
      %v467 = vor.u32 %v466, %v462
      %v468 = vrot.slane %v467, 4
      %v470 = vshll.u32 %v222, 16
      %v472 = vrot.slane %v470, 5
      %v473 = vsel %vm281, %v468, %v472
      %vm498 = vcmask 1042432
      %vm499 = vcmask 1046532
      %vm500 = vmor %vm498, %vm499
      %v501 = vrot.slane %v199, 5
      %v502 = vrot.slane %v501, 4
      %v503 = vrot.slane %v200, 5
      %v504 = vsel %vm500, %v502, %v503
      %v505 = vrot.slane %v503, 4
      %v506 = vrot.slane %v201, 5
      %v507 = vsel %vm500, %v505, %v506
      %v508 = vrot.slane %v202, 5
      %v509 = vrot.slane %v508, 4
      %v510 = vrot.slane %v203, 5
      %v511 = vsel %vm500, %v509, %v510
      %v512 = vrot.slane %v510, 4
      %v513 = vrot.slane %v204, 5
      %v514 = vsel %vm500, %v512, %v513
      %v515 = vrot.slane %v205, 5
      %v516 = vrot.slane %v515, 4
      %v517 = vrot.slane %v206, 5
      %v518 = vsel %vm500, %v516, %v517
      %v519 = vrot.slane %v517, 4
      %v520 = vrot.slane %v207, 5
      %v521 = vsel %vm500, %v519, %v520
      %v522 = vrot.slane %v208, 5
      %v523 = vrot.slane %v522, 4
      %v524 = vrot.slane %v209, 5
      %v525 = vsel %vm500, %v523, %v524
      %v526 = vrot.slane %v524, 4
      %v527 = vrot.slane %v210, 5
      %v528 = vsel %vm500, %v526, %v527
      %v529 = vrot.slane %v211, 5
      %v530 = vrot.slane %v529, 4
      %v531 = vrot.slane %v212, 5
      %v532 = vsel %vm500, %v530, %v531
      %v533 = vrot.slane %v531, 4
      %v534 = vrot.slane %v213, 5
      %v535 = vsel %vm500, %v533, %v534
      %v536 = vrot.slane %v214, 5
      %v537 = vrot.slane %v536, 4
      %v538 = vrot.slane %v215, 5
      %v539 = vsel %vm500, %v537, %v538
      %v540 = vrot.slane %v538, 4
      %v541 = vrot.slane %v216, 5
      %v542 = vsel %vm500, %v540, %v541
      %v543 = vrot.slane %v217, 5
      %v544 = vrot.slane %v543, 4
      %v545 = vrot.slane %v218, 5
      %v546 = vsel %vm500, %v544, %v545
      %v547 = vrot.slane %v545, 4
      %v548 = vrot.slane %v219, 5
      %v549 = vsel %vm500, %v547, %v548
      %v550 = vrot.slane %v220, 5
      %v551 = vrot.slane %v550, 4
      %v552 = vrot.slane %v221, 5
      %v553 = vsel %vm500, %v551, %v552
      %v554 = vrot.slane %v552, 4
      %v555 = vrot.slane %v222, 5
      %v556 = vsel %vm500, %v554, %v555
      %v558 = vshrl.u32 %v227, 16
      %v560 = vrot.slane %v558, 4
      %v561 = vshll.u32 %v227, 16
      %v563 = vrot.slane %v561, 5
      %v564 = vor.u32 %v560, %v563
      %v565 = vrot.slane %v564, 4
      %v567 = vshll.u32 %v228, 16
      %v569 = vrot.slane %v567, 5
      %v570 = vsel %vm281, %v565, %v569
      %v571 = vshrl.u32 %v228, 16
      %v573 = vrot.slane %v571, 4
      %v574 = vor.u32 %v573, %v569
      %v575 = vrot.slane %v574, 4
      %v577 = vshll.u32 %v229, 16
      %v579 = vrot.slane %v577, 5
      %v580 = vsel %vm281, %v575, %v579
      %v582 = vshrl.u32 %v230, 16
      %v584 = vrot.slane %v582, 4
      %v585 = vshll.u32 %v230, 16
      %v587 = vrot.slane %v585, 5
      %v588 = vor.u32 %v584, %v587
      %v589 = vrot.slane %v588, 4
      %v591 = vshll.u32 %v231, 16
      %v593 = vrot.slane %v591, 5
      %v594 = vsel %vm281, %v589, %v593
      %v595 = vshrl.u32 %v231, 16
      %v597 = vrot.slane %v595, 4
      %v598 = vor.u32 %v597, %v593
      %v599 = vrot.slane %v598, 4
      %v601 = vshll.u32 %v232, 16
      %v603 = vrot.slane %v601, 5
      %v604 = vsel %vm281, %v599, %v603
      %v606 = vshrl.u32 %v233, 16
      %v608 = vrot.slane %v606, 4
      %v609 = vshll.u32 %v233, 16
      %v611 = vrot.slane %v609, 5
      %v612 = vor.u32 %v608, %v611
      %v613 = vrot.slane %v612, 4
      %v615 = vshll.u32 %v234, 16
      %v617 = vrot.slane %v615, 5
      %v618 = vsel %vm281, %v613, %v617
      %v619 = vshrl.u32 %v234, 16
      %v621 = vrot.slane %v619, 4
      %v622 = vor.u32 %v621, %v617
      %v623 = vrot.slane %v622, 4
      %v625 = vshll.u32 %v235, 16
      %v627 = vrot.slane %v625, 5
      %v628 = vsel %vm281, %v623, %v627
      %v630 = vshrl.u32 %v236, 16
      %v632 = vrot.slane %v630, 4
      %v633 = vshll.u32 %v236, 16
      %v635 = vrot.slane %v633, 5
      %v636 = vor.u32 %v632, %v635
      %v637 = vrot.slane %v636, 4
      %v639 = vshll.u32 %v237, 16
      %v641 = vrot.slane %v639, 5
      %v642 = vsel %vm281, %v637, %v641
      %v643 = vshrl.u32 %v237, 16
      %v645 = vrot.slane %v643, 4
      %v646 = vor.u32 %v645, %v641
      %v647 = vrot.slane %v646, 4
      %v649 = vshll.u32 %v238, 16
      %v651 = vrot.slane %v649, 5
      %v652 = vsel %vm281, %v647, %v651
      %v654 = vshrl.u32 %v239, 16
      %v656 = vrot.slane %v654, 4
      %v657 = vshll.u32 %v239, 16
      %v659 = vrot.slane %v657, 5
      %v660 = vor.u32 %v656, %v659
      %v661 = vrot.slane %v660, 4
      %v663 = vshll.u32 %v240, 16
      %v665 = vrot.slane %v663, 5
      %v666 = vsel %vm281, %v661, %v665
      %v667 = vshrl.u32 %v240, 16
      %v669 = vrot.slane %v667, 4
      %v670 = vor.u32 %v669, %v665
      %v671 = vrot.slane %v670, 4
      %v673 = vshll.u32 %v241, 16
      %v675 = vrot.slane %v673, 5
      %v676 = vsel %vm281, %v671, %v675
      %v678 = vshrl.u32 %v242, 16
      %v680 = vrot.slane %v678, 4
      %v681 = vshll.u32 %v242, 16
      %v683 = vrot.slane %v681, 5
      %v684 = vor.u32 %v680, %v683
      %v685 = vrot.slane %v684, 4
      %v687 = vshll.u32 %v243, 16
      %v689 = vrot.slane %v687, 5
      %v690 = vsel %vm281, %v685, %v689
      %v691 = vshrl.u32 %v243, 16
      %v693 = vrot.slane %v691, 4
      %v694 = vor.u32 %v693, %v689
      %v695 = vrot.slane %v694, 4
      %v697 = vshll.u32 %v244, 16
      %v699 = vrot.slane %v697, 5
      %v700 = vsel %vm281, %v695, %v699
      %v702 = vshrl.u32 %v245, 16
      %v704 = vrot.slane %v702, 4
      %v705 = vshll.u32 %v245, 16
      %v707 = vrot.slane %v705, 5
      %v708 = vor.u32 %v704, %v707
      %v709 = vrot.slane %v708, 4
      %v711 = vshll.u32 %v246, 16
      %v713 = vrot.slane %v711, 5
      %v714 = vsel %vm281, %v709, %v713
      %v715 = vshrl.u32 %v246, 16
      %v717 = vrot.slane %v715, 4
      %v718 = vor.u32 %v717, %v713
      %v719 = vrot.slane %v718, 4
      %v721 = vshll.u32 %v247, 16
      %v723 = vrot.slane %v721, 5
      %v724 = vsel %vm281, %v719, %v723
      %v726 = vshrl.u32 %v248, 16
      %v728 = vrot.slane %v726, 4
      %v729 = vshll.u32 %v248, 16
      %v731 = vrot.slane %v729, 5
      %v732 = vor.u32 %v728, %v731
      %v733 = vrot.slane %v732, 4
      %v735 = vshll.u32 %v249, 16
      %v737 = vrot.slane %v735, 5
      %v738 = vsel %vm281, %v733, %v737
      %v739 = vshrl.u32 %v249, 16
      %v741 = vrot.slane %v739, 4
      %v742 = vor.u32 %v741, %v737
      %v743 = vrot.slane %v742, 4
      %v745 = vshll.u32 %v250, 16
      %v747 = vrot.slane %v745, 5
      %v748 = vsel %vm281, %v743, %v747
      %v773 = vrot.slane %v227, 5
      %v774 = vrot.slane %v773, 4
      %v775 = vrot.slane %v228, 5
      %v776 = vsel %vm500, %v774, %v775
      %v777 = vrot.slane %v775, 4
      %v778 = vrot.slane %v229, 5
      %v779 = vsel %vm500, %v777, %v778
      %v780 = vrot.slane %v230, 5
      %v781 = vrot.slane %v780, 4
      %v782 = vrot.slane %v231, 5
      %v783 = vsel %vm500, %v781, %v782
      %v784 = vrot.slane %v782, 4
      %v785 = vrot.slane %v232, 5
      %v786 = vsel %vm500, %v784, %v785
      %v787 = vrot.slane %v233, 5
      %v788 = vrot.slane %v787, 4
      %v789 = vrot.slane %v234, 5
      %v790 = vsel %vm500, %v788, %v789
      %v791 = vrot.slane %v789, 4
      %v792 = vrot.slane %v235, 5
      %v793 = vsel %vm500, %v791, %v792
      %v794 = vrot.slane %v236, 5
      %v795 = vrot.slane %v794, 4
      %v796 = vrot.slane %v237, 5
      %v797 = vsel %vm500, %v795, %v796
      %v798 = vrot.slane %v796, 4
      %v799 = vrot.slane %v238, 5
      %v800 = vsel %vm500, %v798, %v799
      %v801 = vrot.slane %v239, 5
      %v802 = vrot.slane %v801, 4
      %v803 = vrot.slane %v240, 5
      %v804 = vsel %vm500, %v802, %v803
      %v805 = vrot.slane %v803, 4
      %v806 = vrot.slane %v241, 5
      %v807 = vsel %vm500, %v805, %v806
      %v808 = vrot.slane %v242, 5
      %v809 = vrot.slane %v808, 4
      %v810 = vrot.slane %v243, 5
      %v811 = vsel %vm500, %v809, %v810
      %v812 = vrot.slane %v810, 4
      %v813 = vrot.slane %v244, 5
      %v814 = vsel %vm500, %v812, %v813
      %v815 = vrot.slane %v245, 5
      %v816 = vrot.slane %v815, 4
      %v817 = vrot.slane %v246, 5
      %v818 = vsel %vm500, %v816, %v817
      %v819 = vrot.slane %v817, 4
      %v820 = vrot.slane %v247, 5
      %v821 = vsel %vm500, %v819, %v820
      %v822 = vrot.slane %v248, 5
      %v823 = vrot.slane %v822, 4
      %v824 = vrot.slane %v249, 5
      %v825 = vsel %vm500, %v823, %v824
      %v826 = vrot.slane %v824, 4
      %v827 = vrot.slane %v250, 5
      %v828 = vsel %vm500, %v826, %v827
      %v830 = vshrl.u32 %v255, 16
      %v832 = vrot.slane %v830, 4
      %v833 = vshll.u32 %v255, 16
      %v835 = vrot.slane %v833, 5
      %v836 = vor.u32 %v832, %v835
      %v837 = vrot.slane %v836, 4
      %v839 = vshll.u32 %v256, 16
      %v841 = vrot.slane %v839, 5
      %v842 = vsel %vm281, %v837, %v841
      %v843 = vshrl.u32 %v256, 16
      %v845 = vrot.slane %v843, 4
      %v846 = vor.u32 %v845, %v841
      %v847 = vrot.slane %v846, 4
      %v849 = vshll.u32 %v257, 16
      %v851 = vrot.slane %v849, 5
      %v852 = vsel %vm281, %v847, %v851
      %v854 = vshrl.u32 %v258, 16
      %v856 = vrot.slane %v854, 4
      %v857 = vshll.u32 %v258, 16
      %v859 = vrot.slane %v857, 5
      %v860 = vor.u32 %v856, %v859
      %v861 = vrot.slane %v860, 4
      %v863 = vshll.u32 %v259, 16
      %v865 = vrot.slane %v863, 5
      %v866 = vsel %vm281, %v861, %v865
      %v867 = vshrl.u32 %v259, 16
      %v869 = vrot.slane %v867, 4
      %v870 = vor.u32 %v869, %v865
      %v871 = vrot.slane %v870, 4
      %v873 = vshll.u32 %v260, 16
      %v875 = vrot.slane %v873, 5
      %v876 = vsel %vm281, %v871, %v875
      %v878 = vshrl.u32 %v261, 16
      %v880 = vrot.slane %v878, 4
      %v881 = vshll.u32 %v261, 16
      %v883 = vrot.slane %v881, 5
      %v884 = vor.u32 %v880, %v883
      %v885 = vrot.slane %v884, 4
      %v887 = vshll.u32 %v262, 16
      %v889 = vrot.slane %v887, 5
      %v890 = vsel %vm281, %v885, %v889
      %v891 = vshrl.u32 %v262, 16
      %v893 = vrot.slane %v891, 4
      %v894 = vor.u32 %v893, %v889
      %v895 = vrot.slane %v894, 4
      %v897 = vshll.u32 %v263, 16
      %v899 = vrot.slane %v897, 5
      %v900 = vsel %vm281, %v895, %v899
      %v902 = vshrl.u32 %v264, 16
      %v904 = vrot.slane %v902, 4
      %v905 = vshll.u32 %v264, 16
      %v907 = vrot.slane %v905, 5
      %v908 = vor.u32 %v904, %v907
      %v909 = vrot.slane %v908, 4
      %v911 = vshll.u32 %v265, 16
      %v913 = vrot.slane %v911, 5
      %v914 = vsel %vm281, %v909, %v913
      %v915 = vshrl.u32 %v265, 16
      %v917 = vrot.slane %v915, 4
      %v918 = vor.u32 %v917, %v913
      %v919 = vrot.slane %v918, 4
      %v921 = vshll.u32 %v266, 16
      %v923 = vrot.slane %v921, 5
      %v924 = vsel %vm281, %v919, %v923
      %v926 = vshrl.u32 %v267, 16
      %v928 = vrot.slane %v926, 4
      %v929 = vshll.u32 %v267, 16
      %v931 = vrot.slane %v929, 5
      %v932 = vor.u32 %v928, %v931
      %v933 = vrot.slane %v932, 4
      %v935 = vshll.u32 %v268, 16
      %v937 = vrot.slane %v935, 5
      %v938 = vsel %vm281, %v933, %v937
      %v939 = vshrl.u32 %v268, 16
      %v941 = vrot.slane %v939, 4
      %v942 = vor.u32 %v941, %v937
      %v943 = vrot.slane %v942, 4
      %v945 = vshll.u32 %v269, 16
      %v947 = vrot.slane %v945, 5
      %v948 = vsel %vm281, %v943, %v947
      %v950 = vshrl.u32 %v270, 16
      %v952 = vrot.slane %v950, 4
      %v953 = vshll.u32 %v270, 16
      %v955 = vrot.slane %v953, 5
      %v956 = vor.u32 %v952, %v955
      %v957 = vrot.slane %v956, 4
      %v959 = vshll.u32 %v271, 16
      %v961 = vrot.slane %v959, 5
      %v962 = vsel %vm281, %v957, %v961
      %v963 = vshrl.u32 %v271, 16
      %v965 = vrot.slane %v963, 4
      %v966 = vor.u32 %v965, %v961
      %v967 = vrot.slane %v966, 4
      %v969 = vshll.u32 %v272, 16
      %v971 = vrot.slane %v969, 5
      %v972 = vsel %vm281, %v967, %v971
      %v974 = vshrl.u32 %v273, 16
      %v976 = vrot.slane %v974, 4
      %v977 = vshll.u32 %v273, 16
      %v979 = vrot.slane %v977, 5
      %v980 = vor.u32 %v976, %v979
      %v981 = vrot.slane %v980, 4
      %v983 = vshll.u32 %v274, 16
      %v985 = vrot.slane %v983, 5
      %v986 = vsel %vm281, %v981, %v985
      %v987 = vshrl.u32 %v274, 16
      %v989 = vrot.slane %v987, 4
      %v990 = vor.u32 %v989, %v985
      %v991 = vrot.slane %v990, 4
      %v993 = vshll.u32 %v275, 16
      %v995 = vrot.slane %v993, 5
      %v996 = vsel %vm281, %v991, %v995
      %v998 = vshrl.u32 %v276, 16
      %v1000 = vrot.slane %v998, 4
      %v1001 = vshll.u32 %v276, 16
      %v1003 = vrot.slane %v1001, 5
      %v1004 = vor.u32 %v1000, %v1003
      %v1005 = vrot.slane %v1004, 4
      %v1007 = vshll.u32 %v277, 16
      %v1009 = vrot.slane %v1007, 5
      %v1010 = vsel %vm281, %v1005, %v1009
      %v1011 = vshrl.u32 %v277, 16
      %v1013 = vrot.slane %v1011, 4
      %v1014 = vor.u32 %v1013, %v1009
      %v1015 = vrot.slane %v1014, 4
      %v1017 = vshll.u32 %v278, 16
      %v1019 = vrot.slane %v1017, 5
      %v1020 = vsel %vm281, %v1015, %v1019
      %v1045 = vrot.slane %v255, 5
      %v1046 = vrot.slane %v1045, 4
      %v1047 = vrot.slane %v256, 5
      %v1048 = vsel %vm500, %v1046, %v1047
      %v1049 = vrot.slane %v1047, 4
      %v1050 = vrot.slane %v257, 5
      %v1051 = vsel %vm500, %v1049, %v1050
      %v1052 = vrot.slane %v258, 5
      %v1053 = vrot.slane %v1052, 4
      %v1054 = vrot.slane %v259, 5
      %v1055 = vsel %vm500, %v1053, %v1054
      %v1056 = vrot.slane %v1054, 4
      %v1057 = vrot.slane %v260, 5
      %v1058 = vsel %vm500, %v1056, %v1057
      %v1059 = vrot.slane %v261, 5
      %v1060 = vrot.slane %v1059, 4
      %v1061 = vrot.slane %v262, 5
      %v1062 = vsel %vm500, %v1060, %v1061
      %v1063 = vrot.slane %v1061, 4
      %v1064 = vrot.slane %v263, 5
      %v1065 = vsel %vm500, %v1063, %v1064
      %v1066 = vrot.slane %v264, 5
      %v1067 = vrot.slane %v1066, 4
      %v1068 = vrot.slane %v265, 5
      %v1069 = vsel %vm500, %v1067, %v1068
      %v1070 = vrot.slane %v1068, 4
      %v1071 = vrot.slane %v266, 5
      %v1072 = vsel %vm500, %v1070, %v1071
      %v1073 = vrot.slane %v267, 5
      %v1074 = vrot.slane %v1073, 4
      %v1075 = vrot.slane %v268, 5
      %v1076 = vsel %vm500, %v1074, %v1075
      %v1077 = vrot.slane %v1075, 4
      %v1078 = vrot.slane %v269, 5
      %v1079 = vsel %vm500, %v1077, %v1078
      %v1080 = vrot.slane %v270, 5
      %v1081 = vrot.slane %v1080, 4
      %v1082 = vrot.slane %v271, 5
      %v1083 = vsel %vm500, %v1081, %v1082
      %v1084 = vrot.slane %v1082, 4
      %v1085 = vrot.slane %v272, 5
      %v1086 = vsel %vm500, %v1084, %v1085
      %v1087 = vrot.slane %v273, 5
      %v1088 = vrot.slane %v1087, 4
      %v1089 = vrot.slane %v274, 5
      %v1090 = vsel %vm500, %v1088, %v1089
      %v1091 = vrot.slane %v1089, 4
      %v1092 = vrot.slane %v275, 5
      %v1093 = vsel %vm500, %v1091, %v1092
      %v1094 = vrot.slane %v276, 5
      %v1095 = vrot.slane %v1094, 4
      %v1096 = vrot.slane %v277, 5
      %v1097 = vsel %vm500, %v1095, %v1096
      %v1098 = vrot.slane %v1096, 4
      %v1099 = vrot.slane %v278, 5
      %v1100 = vsel %vm500, %v1098, %v1099
      %v1101 = vunpack.c.l.b16 %v199
      %v1102 = vunpack.c.l.b16 %v200
      %v1103 = vunpack.c.l.b16 %v202
      %v1104 = vunpack.c.l.b16 %v203
      %v1105 = vunpack.c.l.b16 %v205
      %v1106 = vunpack.c.l.b16 %v206
      %v1107 = vunpack.c.l.b16 %v208
      %v1108 = vunpack.c.l.b16 %v209
      %v1109 = vunpack.c.l.b16 %v211
      %v1110 = vunpack.c.l.b16 %v212
      %v1111 = vunpack.c.l.b16 %v214
      %v1112 = vunpack.c.l.b16 %v215
      %v1113 = vunpack.c.l.b16 %v217
      %v1114 = vunpack.c.l.b16 %v218
      %v1115 = vunpack.c.l.b16 %v220
      %v1116 = vunpack.c.l.b16 %v221
      %v1117 = vpack.c.b16 %v1102, %v1101
      %v1118 = vpack.c.b16 %v1104, %v1103
      %v1119 = vpack.c.b16 %v1106, %v1105
      %v1120 = vpack.c.b16 %v1108, %v1107
      %v1121 = vpack.c.b16 %v1110, %v1109
      %v1122 = vpack.c.b16 %v1112, %v1111
      %v1123 = vpack.c.b16 %v1114, %v1113
      %v1124 = vpack.c.b16 %v1116, %v1115
      %v1125 = vunpack.c.l.b16 %v295
      %v1126 = vunpack.c.l.b16 %v305
      %v1127 = vunpack.c.l.b16 %v319
      %v1128 = vunpack.c.l.b16 %v329
      %v1129 = vunpack.c.l.b16 %v343
      %v1130 = vunpack.c.l.b16 %v353
      %v1131 = vunpack.c.l.b16 %v367
      %v1132 = vunpack.c.l.b16 %v377
      %v1133 = vunpack.c.l.b16 %v391
      %v1134 = vunpack.c.l.b16 %v401
      %v1135 = vunpack.c.l.b16 %v415
      %v1136 = vunpack.c.l.b16 %v425
      %v1137 = vunpack.c.l.b16 %v439
      %v1138 = vunpack.c.l.b16 %v449
      %v1139 = vunpack.c.l.b16 %v463
      %v1140 = vunpack.c.l.b16 %v473
      %v1141 = vpack.c.b16 %v1126, %v1125
      %v1142 = vpack.c.b16 %v1128, %v1127
      %v1143 = vpack.c.b16 %v1130, %v1129
      %v1144 = vpack.c.b16 %v1132, %v1131
      %v1145 = vpack.c.b16 %v1134, %v1133
      %v1146 = vpack.c.b16 %v1136, %v1135
      %v1147 = vpack.c.b16 %v1138, %v1137
      %v1148 = vpack.c.b16 %v1140, %v1139
      %1149 = vrot.lane.b32.xlu0 %v1141, 4
      %v1150 = vpop.permute.xlu0 %1149
      %1151 = vrot.lane.b32.xlu0 %v1142, 4
      %v1152 = vpop.permute.xlu0 %1151
      %1153 = vrot.lane.b32.xlu0 %v1143, 4
      %v1154 = vpop.permute.xlu0 %1153
      %1155 = vrot.lane.b32.xlu0 %v1144, 4
      %v1156 = vpop.permute.xlu0 %1155
      %1157 = vrot.lane.b32.xlu0 %v1145, 4
      %v1158 = vpop.permute.xlu0 %1157
      %1159 = vrot.lane.b32.xlu0 %v1146, 4
      %v1160 = vpop.permute.xlu0 %1159
      %1161 = vrot.lane.b32.xlu0 %v1147, 4
      %v1162 = vpop.permute.xlu0 %1161
      %1163 = vrot.lane.b32.xlu0 %v1148, 4
      %v1164 = vpop.permute.xlu0 %1163
      %v1165 = vunpack.c.l.b16 %v227
      %v1166 = vunpack.c.l.b16 %v228
      %v1167 = vunpack.c.l.b16 %v230
      %v1168 = vunpack.c.l.b16 %v231
      %v1169 = vunpack.c.l.b16 %v233
      %v1170 = vunpack.c.l.b16 %v234
      %v1171 = vunpack.c.l.b16 %v236
      %v1172 = vunpack.c.l.b16 %v237
      %v1173 = vunpack.c.l.b16 %v239
      %v1174 = vunpack.c.l.b16 %v240
      %v1175 = vunpack.c.l.b16 %v242
      %v1176 = vunpack.c.l.b16 %v243
      %v1177 = vunpack.c.l.b16 %v245
      %v1178 = vunpack.c.l.b16 %v246
      %v1179 = vunpack.c.l.b16 %v248
      %v1180 = vunpack.c.l.b16 %v249
      %v1181 = vpack.c.b16 %v1166, %v1165
      %v1182 = vpack.c.b16 %v1168, %v1167
      %v1183 = vpack.c.b16 %v1170, %v1169
      %v1184 = vpack.c.b16 %v1172, %v1171
      %v1185 = vpack.c.b16 %v1174, %v1173
      %v1186 = vpack.c.b16 %v1176, %v1175
      %v1187 = vpack.c.b16 %v1178, %v1177
      %v1188 = vpack.c.b16 %v1180, %v1179
      %1189 = vrot.lane.b32.xlu0 %v1181, 8
      %v1190 = vpop.permute.xlu0 %1189
      %1191 = vrot.lane.b32.xlu0 %v1182, 8
      %v1192 = vpop.permute.xlu0 %1191
      %1193 = vrot.lane.b32.xlu0 %v1183, 8
      %v1194 = vpop.permute.xlu0 %1193
      %1195 = vrot.lane.b32.xlu0 %v1184, 8
      %v1196 = vpop.permute.xlu0 %1195
      %1197 = vrot.lane.b32.xlu0 %v1185, 8
      %v1198 = vpop.permute.xlu0 %1197
      %1199 = vrot.lane.b32.xlu0 %v1186, 8
      %v1200 = vpop.permute.xlu0 %1199
      %1201 = vrot.lane.b32.xlu0 %v1187, 8
      %v1202 = vpop.permute.xlu0 %1201
      %1203 = vrot.lane.b32.xlu0 %v1188, 8
      %v1204 = vpop.permute.xlu0 %1203
      %v1205 = vunpack.c.l.b16 %v570
      %v1206 = vunpack.c.l.b16 %v580
      %v1207 = vunpack.c.l.b16 %v594
      %v1208 = vunpack.c.l.b16 %v604
      %v1209 = vunpack.c.l.b16 %v618
      %v1210 = vunpack.c.l.b16 %v628
      %v1211 = vunpack.c.l.b16 %v642
      %v1212 = vunpack.c.l.b16 %v652
      %v1213 = vunpack.c.l.b16 %v666
      %v1214 = vunpack.c.l.b16 %v676
      %v1215 = vunpack.c.l.b16 %v690
      %v1216 = vunpack.c.l.b16 %v700
      %v1217 = vunpack.c.l.b16 %v714
      %v1218 = vunpack.c.l.b16 %v724
      %v1219 = vunpack.c.l.b16 %v738
      %v1220 = vunpack.c.l.b16 %v748
      %v1221 = vpack.c.b16 %v1206, %v1205
      %v1222 = vpack.c.b16 %v1208, %v1207
      %v1223 = vpack.c.b16 %v1210, %v1209
      %v1224 = vpack.c.b16 %v1212, %v1211
      %v1225 = vpack.c.b16 %v1214, %v1213
      %v1226 = vpack.c.b16 %v1216, %v1215
      %v1227 = vpack.c.b16 %v1218, %v1217
      %v1228 = vpack.c.b16 %v1220, %v1219
      %1229 = vrot.lane.b32.xlu0 %v1221, 12
      %v1230 = vpop.permute.xlu0 %1229
      %1231 = vrot.lane.b32.xlu0 %v1222, 12
      %v1232 = vpop.permute.xlu0 %1231
      %1233 = vrot.lane.b32.xlu0 %v1223, 12
      %v1234 = vpop.permute.xlu0 %1233
      %1235 = vrot.lane.b32.xlu0 %v1224, 12
      %v1236 = vpop.permute.xlu0 %1235
      %1237 = vrot.lane.b32.xlu0 %v1225, 12
      %v1238 = vpop.permute.xlu0 %1237
      %1239 = vrot.lane.b32.xlu0 %v1226, 12
      %v1240 = vpop.permute.xlu0 %1239
      %1241 = vrot.lane.b32.xlu0 %v1227, 12
      %v1242 = vpop.permute.xlu0 %1241
      %1243 = vrot.lane.b32.xlu0 %v1228, 12
      %v1244 = vpop.permute.xlu0 %1243
      %vm1245 = vcmask 31744
      %v1248 = vsel %vm1245, %v1117, %v1150
      %v1251 = vsel %vm1245, %v1118, %v1152
      %v1254 = vsel %vm1245, %v1119, %v1154
      %v1257 = vsel %vm1245, %v1120, %v1156
      %v1260 = vsel %vm1245, %v1121, %v1158
      %v1263 = vsel %vm1245, %v1122, %v1160
      %v1266 = vsel %vm1245, %v1123, %v1162
      %v1269 = vsel %vm1245, %v1124, %v1164
      %vm1270 = vcmask 64512
      %v1272 = vsel %vm1270, %v1248, %v1190
      %v1274 = vsel %vm1270, %v1251, %v1192
      %v1276 = vsel %vm1270, %v1254, %v1194
      %v1278 = vsel %vm1270, %v1257, %v1196
      %v1280 = vsel %vm1270, %v1260, %v1198
      %v1282 = vsel %vm1270, %v1263, %v1200
      %v1284 = vsel %vm1270, %v1266, %v1202
      %v1286 = vsel %vm1270, %v1269, %v1204
      %vm1287 = vcmask 97280
      %v1289 = vsel %vm1287, %v1272, %v1230
      %v1291 = vsel %vm1287, %v1274, %v1232
      %v1293 = vsel %vm1287, %v1276, %v1234
      %v1295 = vsel %vm1287, %v1278, %v1236
      %v1297 = vsel %vm1287, %v1280, %v1238
      %v1299 = vsel %vm1287, %v1282, %v1240
      %v1301 = vsel %vm1287, %v1284, %v1242
      %v1303 = vsel %vm1287, %v1286, %v1244
      %v1304 = vld [vmem:[%s1] sm:$0xf]
      %v1305 = vld [vmem:[%s1 + $0x4] sm:$0xf]
      %v1308 = vunpack.c.l.b16 %v1304
      %v1309 = vunpack.c.l.b16 %v1305
      %v1310 = vpack.c.b16 %v1309, %v1308
      %vm1312 = vcmask 130048
      %v1313 = vsel %vm1312, %v1289, 0
      %v1315 = vsel %vm1312, %v1291, 0
      %v1317 = vsel %vm1312, %v1293, 0
      %v1319 = vsel %vm1312, %v1295, 0
      %v1321 = vsel %vm1312, %v1297, 0
      %v1323 = vsel %vm1312, %v1299, 0
      %v1325 = vsel %vm1312, %v1301, 0
      %v1327 = vsel %vm1312, %v1303, 0
      %1329 = vmatprep.subr.bf16.mxu0 0
      %1330 = vmatpush1.bf16.msra.mxu0 %v1310
      %1331 = vmatprep.subr.bf16.mxu0 0
      %1332 = vmatpush1.bf16.msra.mxu0 0
      %1333 = vmatprep.subr.bf16.mxu0 0
      %1334 = vmatpush1.bf16.msra.mxu0 0
      %1335 = vmatprep.subr.bf16.mxu0 0
      %1336 = vmatpush1.bf16.msra.mxu0 0
      %1337 = vmatprep.subr.bf16.mxu0 0
      %1338 = vmatpush1.bf16.msra.mxu0 0
      %1339 = vmatprep.subr.bf16.mxu0 0
      %1340 = vmatpush1.bf16.msra.mxu0 0
      %1341 = vmatprep.subr.bf16.mxu0 0
      %1342 = vmatpush1.bf16.msra.mxu0 0
      %1343 = vmatprep.subr.bf16.mxu0 0
      %1344 = vmatpush1.bf16.msra.mxu0 0
      %1345 = vmatprep.subr.bf16.mxu0 0
      %1346 = vmatpush1.bf16.msra.mxu0 0
      %1347 = vmatprep.subr.bf16.mxu0 0
      %1348 = vmatpush1.bf16.msra.mxu0 0
      %1349 = vmatprep.subr.bf16.mxu0 0
      %1350 = vmatpush1.bf16.msra.mxu0 0
      %1351 = vmatprep.subr.bf16.mxu0 0
      %1352 = vmatpush1.bf16.msra.mxu0 0
      %1353 = vmatprep.subr.bf16.mxu0 0
      %1354 = vmatpush1.bf16.msra.mxu0 0
      %1355 = vmatprep.subr.bf16.mxu0 0
      %1356 = vmatpush1.bf16.msra.mxu0 0
      %1357 = vmatprep.subr.bf16.mxu0 0
      %1358 = vmatpush1.bf16.msra.mxu0 0
      %1359 = vmatprep.subr.bf16.mxu0 0
      %1360 = vmatpush1.bf16.msra.mxu0 0
      %1361 = vmatprep.mubr.bf16.mxu0 0
      %1362 = vmatmul.mubr.bf16.gmra.mrb[0].mxu0 %v1313
      %v1363 = vpop.f32.mrb[0].mxu0
      %v1364 = vadd.f32 0.0, %v1363
      %v1365 = vpop.f32.mrb[0].mxu0
      %v1366 = vpop.f32.mrb[0].mxu0
      %v1367 = vadd.f32 0.0, %v1366
      %v1368 = vpop.f32.mrb[0].mxu0
      %1369 = vmatprep.mubr.bf16.mxu0 0
      %1370 = vmatmul.mubr.bf16.gmra.mrb[0].mxu0 %v1315
      %v1371 = vpop.f32.mrb[0].mxu0
      %v1372 = vadd.f32 0.0, %v1371
      %v1373 = vpop.f32.mrb[0].mxu0
      %v1374 = vpop.f32.mrb[0].mxu0
      %v1375 = vadd.f32 0.0, %v1374
      %v1376 = vpop.f32.mrb[0].mxu0
      %1377 = vmatprep.mubr.bf16.mxu0 0
      %1378 = vmatmul.mubr.bf16.gmra.mrb[0].mxu0 %v1317
      %v1379 = vpop.f32.mrb[0].mxu0
      %v1380 = vadd.f32 0.0, %v1379
      %v1381 = vpop.f32.mrb[0].mxu0
      %v1382 = vpop.f32.mrb[0].mxu0
      %v1383 = vadd.f32 0.0, %v1382
      %v1384 = vpop.f32.mrb[0].mxu0
      %1385 = vmatprep.mubr.bf16.mxu0 0
      %1386 = vmatmul.mubr.bf16.gmra.mrb[0].mxu0 %v1319
      %v1387 = vpop.f32.mrb[0].mxu0
      %v1388 = vadd.f32 0.0, %v1387
      %v1389 = vpop.f32.mrb[0].mxu0
      %v1390 = vpop.f32.mrb[0].mxu0
      %v1391 = vadd.f32 0.0, %v1390
      %v1392 = vpop.f32.mrb[0].mxu0
      %1393 = vmatprep.mubr.bf16.mxu0 0
      %1394 = vmatmul.mubr.bf16.gmra.mrb[0].mxu0 %v1321
      %v1395 = vpop.f32.mrb[0].mxu0
      %v1396 = vadd.f32 0.0, %v1395
      %v1397 = vpop.f32.mrb[0].mxu0
      %v1398 = vpop.f32.mrb[0].mxu0
      %v1399 = vadd.f32 0.0, %v1398
      %v1400 = vpop.f32.mrb[0].mxu0
      %1401 = vmatprep.mubr.bf16.mxu0 0
      %1402 = vmatmul.mubr.bf16.gmra.mrb[0].mxu0 %v1323
      %v1403 = vpop.f32.mrb[0].mxu0
      %v1404 = vadd.f32 0.0, %v1403
      %v1405 = vpop.f32.mrb[0].mxu0
      %v1406 = vpop.f32.mrb[0].mxu0
      %v1407 = vadd.f32 0.0, %v1406
      %v1408 = vpop.f32.mrb[0].mxu0
      %1409 = vmatprep.mubr.bf16.mxu0 0
      %1410 = vmatmul.mubr.bf16.gmra.mrb[0].mxu0 %v1325
      %v1411 = vpop.f32.mrb[0].mxu0
      %v1412 = vadd.f32 0.0, %v1411
      %v1413 = vpop.f32.mrb[0].mxu0
      %v1414 = vpop.f32.mrb[0].mxu0
      %v1415 = vadd.f32 0.0, %v1414
      %v1416 = vpop.f32.mrb[0].mxu0
      %1417 = vmatprep.mubr.bf16.mxu0 0
      %1418 = vmatmul.mubr.bf16.gmra.mrb[0].mxu0 %v1327
      %v1419 = vpop.f32.mrb[0].mxu0
      %v1420 = vadd.f32 0.0, %v1419
      %v1421 = vpop.f32.mrb[0].mxu0
      %v1422 = vpop.f32.mrb[0].mxu0
      %v1423 = vadd.f32 0.0, %v1422
      %v1424 = vpop.f32.mrb[0].mxu0
      %1425 = vdwg.mxu0
      %v1426 = vunpack.c.l.b16 %v504
      %v1427 = vunpack.c.l.b16 %v507
      %v1428 = vunpack.c.l.b16 %v511
      %v1429 = vunpack.c.l.b16 %v514
      %v1430 = vunpack.c.l.b16 %v518
      %v1431 = vunpack.c.l.b16 %v521
      %v1432 = vunpack.c.l.b16 %v525
      %v1433 = vunpack.c.l.b16 %v528
      %v1434 = vunpack.c.l.b16 %v532
      %v1435 = vunpack.c.l.b16 %v535
      %v1436 = vunpack.c.l.b16 %v539
      %v1437 = vunpack.c.l.b16 %v542
      %v1438 = vunpack.c.l.b16 %v546
      %v1439 = vunpack.c.l.b16 %v549
      %v1440 = vunpack.c.l.b16 %v553
      %v1441 = vunpack.c.l.b16 %v556
      %v1442 = vpack.c.b16 %v1427, %v1426
      %v1443 = vpack.c.b16 %v1429, %v1428
      %v1444 = vpack.c.b16 %v1431, %v1430
      %v1445 = vpack.c.b16 %v1433, %v1432
      %v1446 = vpack.c.b16 %v1435, %v1434
      %v1447 = vpack.c.b16 %v1437, %v1436
      %v1448 = vpack.c.b16 %v1439, %v1438
      %v1449 = vpack.c.b16 %v1441, %v1440
      %1450 = vrot.lane.b32.xlu0 %v1442, 4
      %v1451 = vpop.permute.xlu0 %1450
      %1452 = vrot.lane.b32.xlu0 %v1443, 4
      %v1453 = vpop.permute.xlu0 %1452
      %1454 = vrot.lane.b32.xlu0 %v1444, 4
      %v1455 = vpop.permute.xlu0 %1454
      %1456 = vrot.lane.b32.xlu0 %v1445, 4
      %v1457 = vpop.permute.xlu0 %1456
      %1458 = vrot.lane.b32.xlu0 %v1446, 4
      %v1459 = vpop.permute.xlu0 %1458
      %1460 = vrot.lane.b32.xlu0 %v1447, 4
      %v1461 = vpop.permute.xlu0 %1460
      %1462 = vrot.lane.b32.xlu0 %v1448, 4
      %v1463 = vpop.permute.xlu0 %1462
      %1464 = vrot.lane.b32.xlu0 %v1449, 4
      %v1465 = vpop.permute.xlu0 %1464
      %1466 = vrot.lane.b32.xlu0 %v1221, 8
      %v1467 = vpop.permute.xlu0 %1466
      %1468 = vrot.lane.b32.xlu0 %v1222, 8
      %v1469 = vpop.permute.xlu0 %1468
      %1470 = vrot.lane.b32.xlu0 %v1223, 8
      %v1471 = vpop.permute.xlu0 %1470
      %1472 = vrot.lane.b32.xlu0 %v1224, 8
      %v1473 = vpop.permute.xlu0 %1472
      %1474 = vrot.lane.b32.xlu0 %v1225, 8
      %v1475 = vpop.permute.xlu0 %1474
      %1476 = vrot.lane.b32.xlu0 %v1226, 8
      %v1477 = vpop.permute.xlu0 %1476
      %1478 = vrot.lane.b32.xlu0 %v1227, 8
      %v1479 = vpop.permute.xlu0 %1478
      %1480 = vrot.lane.b32.xlu0 %v1228, 8
      %v1481 = vpop.permute.xlu0 %1480
      %v1482 = vunpack.c.l.b16 %v776
      %v1483 = vunpack.c.l.b16 %v779
      %v1484 = vunpack.c.l.b16 %v783
      %v1485 = vunpack.c.l.b16 %v786
      %v1486 = vunpack.c.l.b16 %v790
      %v1487 = vunpack.c.l.b16 %v793
      %v1488 = vunpack.c.l.b16 %v797
      %v1489 = vunpack.c.l.b16 %v800
      %v1490 = vunpack.c.l.b16 %v804
      %v1491 = vunpack.c.l.b16 %v807
      %v1492 = vunpack.c.l.b16 %v811
      %v1493 = vunpack.c.l.b16 %v814
      %v1494 = vunpack.c.l.b16 %v818
      %v1495 = vunpack.c.l.b16 %v821
      %v1496 = vunpack.c.l.b16 %v825
      %v1497 = vunpack.c.l.b16 %v828
      %v1498 = vpack.c.b16 %v1483, %v1482
      %v1499 = vpack.c.b16 %v1485, %v1484
      %v1500 = vpack.c.b16 %v1487, %v1486
      %v1501 = vpack.c.b16 %v1489, %v1488
      %v1502 = vpack.c.b16 %v1491, %v1490
      %v1503 = vpack.c.b16 %v1493, %v1492
      %v1504 = vpack.c.b16 %v1495, %v1494
      %v1505 = vpack.c.b16 %v1497, %v1496
      %1506 = vrot.lane.b32.xlu0 %v1498, 12
      %v1507 = vpop.permute.xlu0 %1506
      %1508 = vrot.lane.b32.xlu0 %v1499, 12
      %v1509 = vpop.permute.xlu0 %1508
      %1510 = vrot.lane.b32.xlu0 %v1500, 12
      %v1511 = vpop.permute.xlu0 %1510
      %1512 = vrot.lane.b32.xlu0 %v1501, 12
      %v1513 = vpop.permute.xlu0 %1512
      %1514 = vrot.lane.b32.xlu0 %v1502, 12
      %v1515 = vpop.permute.xlu0 %1514
      %1516 = vrot.lane.b32.xlu0 %v1503, 12
      %v1517 = vpop.permute.xlu0 %1516
      %1518 = vrot.lane.b32.xlu0 %v1504, 12
      %v1519 = vpop.permute.xlu0 %1518
      %1520 = vrot.lane.b32.xlu0 %v1505, 12
      %v1521 = vpop.permute.xlu0 %1520
      %v1524 = vsel %vm1245, %v1141, %v1451
      %v1527 = vsel %vm1245, %v1142, %v1453
      %v1530 = vsel %vm1245, %v1143, %v1455
      %v1533 = vsel %vm1245, %v1144, %v1457
      %v1536 = vsel %vm1245, %v1145, %v1459
      %v1539 = vsel %vm1245, %v1146, %v1461
      %v1542 = vsel %vm1245, %v1147, %v1463
      %v1545 = vsel %vm1245, %v1148, %v1465
      %v1547 = vsel %vm1270, %v1524, %v1467
      %v1549 = vsel %vm1270, %v1527, %v1469
      %v1551 = vsel %vm1270, %v1530, %v1471
      %v1553 = vsel %vm1270, %v1533, %v1473
      %v1555 = vsel %vm1270, %v1536, %v1475
      %v1557 = vsel %vm1270, %v1539, %v1477
      %v1559 = vsel %vm1270, %v1542, %v1479
      %v1561 = vsel %vm1270, %v1545, %v1481
      %v1563 = vsel %vm1287, %v1547, %v1507
      %v1565 = vsel %vm1287, %v1549, %v1509
      %v1567 = vsel %vm1287, %v1551, %v1511
      %v1569 = vsel %vm1287, %v1553, %v1513
      %v1571 = vsel %vm1287, %v1555, %v1515
      %v1573 = vsel %vm1287, %v1557, %v1517
      %v1575 = vsel %vm1287, %v1559, %v1519
      %v1577 = vsel %vm1287, %v1561, %v1521
      %s1578 = scalar_lea.vmem %s1, 8
      %v1579 = vld [vmem:[%s1578] sm:$0xf]
      %v1580 = vld [vmem:[%s1578 + $0x4] sm:$0xf]
      %v1583 = vunpack.c.l.b16 %v1579
      %v1584 = vunpack.c.l.b16 %v1580
      %v1585 = vpack.c.b16 %v1584, %v1583
      %v1587 = vsel %vm1312, %v1563, 0
      %v1589 = vsel %vm1312, %v1565, 0
      %v1591 = vsel %vm1312, %v1567, 0
      %v1593 = vsel %vm1312, %v1569, 0
      %v1595 = vsel %vm1312, %v1571, 0
      %v1597 = vsel %vm1312, %v1573, 0
      %v1599 = vsel %vm1312, %v1575, 0
      %v1601 = vsel %vm1312, %v1577, 0
      %1603 = vmatprep.subr.bf16.mxu0 0
      %1604 = vmatpush1.bf16.msra.mxu0 %v1585
      %1605 = vmatprep.subr.bf16.mxu0 0
      %1606 = vmatpush1.bf16.msra.mxu0 0
      %1607 = vmatprep.subr.bf16.mxu0 0
      %1608 = vmatpush1.bf16.msra.mxu0 0
      %1609 = vmatprep.subr.bf16.mxu0 0
      %1610 = vmatpush1.bf16.msra.mxu0 0
      %1611 = vmatprep.subr.bf16.mxu0 0
      %1612 = vmatpush1.bf16.msra.mxu0 0
      %1613 = vmatprep.subr.bf16.mxu0 0
      %1614 = vmatpush1.bf16.msra.mxu0 0
      %1615 = vmatprep.subr.bf16.mxu0 0
      %1616 = vmatpush1.bf16.msra.mxu0 0
      %1617 = vmatprep.subr.bf16.mxu0 0
      %1618 = vmatpush1.bf16.msra.mxu0 0
      %1619 = vmatprep.subr.bf16.mxu0 0
      %1620 = vmatpush1.bf16.msra.mxu0 0
      %1621 = vmatprep.subr.bf16.mxu0 0
      %1622 = vmatpush1.bf16.msra.mxu0 0
      %1623 = vmatprep.subr.bf16.mxu0 0
      %1624 = vmatpush1.bf16.msra.mxu0 0
      %1625 = vmatprep.subr.bf16.mxu0 0
      %1626 = vmatpush1.bf16.msra.mxu0 0
      %1627 = vmatprep.subr.bf16.mxu0 0
      %1628 = vmatpush1.bf16.msra.mxu0 0
      %1629 = vmatprep.subr.bf16.mxu0 0
      %1630 = vmatpush1.bf16.msra.mxu0 0
      %1631 = vmatprep.subr.bf16.mxu0 0
      %1632 = vmatpush1.bf16.msra.mxu0 0
      %1633 = vmatprep.subr.bf16.mxu0 0
      %1634 = vmatpush1.bf16.msra.mxu0 0
      %1635 = vmatprep.mubr.bf16.mxu0 0
      %1636 = vmatmul.mubr.bf16.gmra.mrb[0].mxu0 %v1587
      %v1637 = vpop.f32.mrb[0].mxu0
      %v1638 = vadd.f32 0.0, %v1637
      %v1639 = vpop.f32.mrb[0].mxu0
      %v1640 = vpop.f32.mrb[0].mxu0
      %v1641 = vadd.f32 0.0, %v1640
      %v1642 = vpop.f32.mrb[0].mxu0
      %1643 = vmatprep.mubr.bf16.mxu0 0
      %1644 = vmatmul.mubr.bf16.gmra.mrb[0].mxu0 %v1589
      %v1645 = vpop.f32.mrb[0].mxu0
      %v1646 = vadd.f32 0.0, %v1645
      %v1647 = vpop.f32.mrb[0].mxu0
      %v1648 = vpop.f32.mrb[0].mxu0
      %v1649 = vadd.f32 0.0, %v1648
      %v1650 = vpop.f32.mrb[0].mxu0
      %1651 = vmatprep.mubr.bf16.mxu0 0
      %1652 = vmatmul.mubr.bf16.gmra.mrb[0].mxu0 %v1591
      %v1653 = vpop.f32.mrb[0].mxu0
      %v1654 = vadd.f32 0.0, %v1653
      %v1655 = vpop.f32.mrb[0].mxu0
      %v1656 = vpop.f32.mrb[0].mxu0
      %v1657 = vadd.f32 0.0, %v1656
      %v1658 = vpop.f32.mrb[0].mxu0
      %1659 = vmatprep.mubr.bf16.mxu0 0
      %1660 = vmatmul.mubr.bf16.gmra.mrb[0].mxu0 %v1593
      %v1661 = vpop.f32.mrb[0].mxu0
      %v1662 = vadd.f32 0.0, %v1661
      %v1663 = vpop.f32.mrb[0].mxu0
      %v1664 = vpop.f32.mrb[0].mxu0
      %v1665 = vadd.f32 0.0, %v1664
      %v1666 = vpop.f32.mrb[0].mxu0
      %1667 = vmatprep.mubr.bf16.mxu0 0
      %1668 = vmatmul.mubr.bf16.gmra.mrb[0].mxu0 %v1595
      %v1669 = vpop.f32.mrb[0].mxu0
      %v1670 = vadd.f32 0.0, %v1669
      %v1671 = vpop.f32.mrb[0].mxu0
      %v1672 = vpop.f32.mrb[0].mxu0
      %v1673 = vadd.f32 0.0, %v1672
      %v1674 = vpop.f32.mrb[0].mxu0
      %1675 = vmatprep.mubr.bf16.mxu0 0
      %1676 = vmatmul.mubr.bf16.gmra.mrb[0].mxu0 %v1597
      %v1677 = vpop.f32.mrb[0].mxu0
      %v1678 = vadd.f32 0.0, %v1677
      %v1679 = vpop.f32.mrb[0].mxu0
      %v1680 = vpop.f32.mrb[0].mxu0
      %v1681 = vadd.f32 0.0, %v1680
      %v1682 = vpop.f32.mrb[0].mxu0
      %1683 = vmatprep.mubr.bf16.mxu0 0
      %1684 = vmatmul.mubr.bf16.gmra.mrb[0].mxu0 %v1599
      %v1685 = vpop.f32.mrb[0].mxu0
      %v1686 = vadd.f32 0.0, %v1685
      %v1687 = vpop.f32.mrb[0].mxu0
      %v1688 = vpop.f32.mrb[0].mxu0
      %v1689 = vadd.f32 0.0, %v1688
      %v1690 = vpop.f32.mrb[0].mxu0
      %1691 = vmatprep.mubr.bf16.mxu0 0
      %1692 = vmatmul.mubr.bf16.gmra.mrb[0].mxu0 %v1601
      %v1693 = vpop.f32.mrb[0].mxu0
      %v1694 = vadd.f32 0.0, %v1693
      %v1695 = vpop.f32.mrb[0].mxu0
      %v1696 = vpop.f32.mrb[0].mxu0
      %v1697 = vadd.f32 0.0, %v1696
      %v1698 = vpop.f32.mrb[0].mxu0
      %1699 = vdwg.mxu0
      %1700 = vrot.lane.b32.xlu0 %v1221, 4
      %v1701 = vpop.permute.xlu0 %1700
      %1702 = vrot.lane.b32.xlu0 %v1222, 4
      %v1703 = vpop.permute.xlu0 %1702
      %1704 = vrot.lane.b32.xlu0 %v1223, 4
      %v1705 = vpop.permute.xlu0 %1704
      %1706 = vrot.lane.b32.xlu0 %v1224, 4
      %v1707 = vpop.permute.xlu0 %1706
      %1708 = vrot.lane.b32.xlu0 %v1225, 4
      %v1709 = vpop.permute.xlu0 %1708
      %1710 = vrot.lane.b32.xlu0 %v1226, 4
      %v1711 = vpop.permute.xlu0 %1710
      %1712 = vrot.lane.b32.xlu0 %v1227, 4
      %v1713 = vpop.permute.xlu0 %1712
      %1714 = vrot.lane.b32.xlu0 %v1228, 4
      %v1715 = vpop.permute.xlu0 %1714
      %v1716 = vunpack.c.l.b16 %v255
      %v1717 = vunpack.c.l.b16 %v256
      %v1718 = vunpack.c.l.b16 %v258
      %v1719 = vunpack.c.l.b16 %v259
      %v1720 = vunpack.c.l.b16 %v261
      %v1721 = vunpack.c.l.b16 %v262
      %v1722 = vunpack.c.l.b16 %v264
      %v1723 = vunpack.c.l.b16 %v265
      %v1724 = vunpack.c.l.b16 %v267
      %v1725 = vunpack.c.l.b16 %v268
      %v1726 = vunpack.c.l.b16 %v270
      %v1727 = vunpack.c.l.b16 %v271
      %v1728 = vunpack.c.l.b16 %v273
      %v1729 = vunpack.c.l.b16 %v274
      %v1730 = vunpack.c.l.b16 %v276
      %v1731 = vunpack.c.l.b16 %v277
      %v1732 = vpack.c.b16 %v1717, %v1716
      %v1733 = vpack.c.b16 %v1719, %v1718
      %v1734 = vpack.c.b16 %v1721, %v1720
      %v1735 = vpack.c.b16 %v1723, %v1722
      %v1736 = vpack.c.b16 %v1725, %v1724
      %v1737 = vpack.c.b16 %v1727, %v1726
      %v1738 = vpack.c.b16 %v1729, %v1728
      %v1739 = vpack.c.b16 %v1731, %v1730
      %1740 = vrot.lane.b32.xlu0 %v1732, 8
      %v1741 = vpop.permute.xlu0 %1740
      %1742 = vrot.lane.b32.xlu0 %v1733, 8
      %v1743 = vpop.permute.xlu0 %1742
      %1744 = vrot.lane.b32.xlu0 %v1734, 8
      %v1745 = vpop.permute.xlu0 %1744
      %1746 = vrot.lane.b32.xlu0 %v1735, 8
      %v1747 = vpop.permute.xlu0 %1746
      %1748 = vrot.lane.b32.xlu0 %v1736, 8
      %v1749 = vpop.permute.xlu0 %1748
      %1750 = vrot.lane.b32.xlu0 %v1737, 8
      %v1751 = vpop.permute.xlu0 %1750
      %1752 = vrot.lane.b32.xlu0 %v1738, 8
      %v1753 = vpop.permute.xlu0 %1752
      %1754 = vrot.lane.b32.xlu0 %v1739, 8
      %v1755 = vpop.permute.xlu0 %1754
      %v1756 = vunpack.c.l.b16 %v842
      %v1757 = vunpack.c.l.b16 %v852
      %v1758 = vunpack.c.l.b16 %v866
      %v1759 = vunpack.c.l.b16 %v876
      %v1760 = vunpack.c.l.b16 %v890
      %v1761 = vunpack.c.l.b16 %v900
      %v1762 = vunpack.c.l.b16 %v914
      %v1763 = vunpack.c.l.b16 %v924
      %v1764 = vunpack.c.l.b16 %v938
      %v1765 = vunpack.c.l.b16 %v948
      %v1766 = vunpack.c.l.b16 %v962
      %v1767 = vunpack.c.l.b16 %v972
      %v1768 = vunpack.c.l.b16 %v986
      %v1769 = vunpack.c.l.b16 %v996
      %v1770 = vunpack.c.l.b16 %v1010
      %v1771 = vunpack.c.l.b16 %v1020
      %v1772 = vpack.c.b16 %v1757, %v1756
      %v1773 = vpack.c.b16 %v1759, %v1758
      %v1774 = vpack.c.b16 %v1761, %v1760
      %v1775 = vpack.c.b16 %v1763, %v1762
      %v1776 = vpack.c.b16 %v1765, %v1764
      %v1777 = vpack.c.b16 %v1767, %v1766
      %v1778 = vpack.c.b16 %v1769, %v1768
      %v1779 = vpack.c.b16 %v1771, %v1770
      %1780 = vrot.lane.b32.xlu0 %v1772, 12
      %v1781 = vpop.permute.xlu0 %1780
      %1782 = vrot.lane.b32.xlu0 %v1773, 12
      %v1783 = vpop.permute.xlu0 %1782
      %1784 = vrot.lane.b32.xlu0 %v1774, 12
      %v1785 = vpop.permute.xlu0 %1784
      %1786 = vrot.lane.b32.xlu0 %v1775, 12
      %v1787 = vpop.permute.xlu0 %1786
      %1788 = vrot.lane.b32.xlu0 %v1776, 12
      %v1789 = vpop.permute.xlu0 %1788
      %1790 = vrot.lane.b32.xlu0 %v1777, 12
      %v1791 = vpop.permute.xlu0 %1790
      %1792 = vrot.lane.b32.xlu0 %v1778, 12
      %v1793 = vpop.permute.xlu0 %1792
      %1794 = vrot.lane.b32.xlu0 %v1779, 12
      %v1795 = vpop.permute.xlu0 %1794
      %v1798 = vsel %vm1245, %v1181, %v1701
      %v1801 = vsel %vm1245, %v1182, %v1703
      %v1804 = vsel %vm1245, %v1183, %v1705
      %v1807 = vsel %vm1245, %v1184, %v1707
      %v1810 = vsel %vm1245, %v1185, %v1709
      %v1813 = vsel %vm1245, %v1186, %v1711
      %v1816 = vsel %vm1245, %v1187, %v1713
      %v1819 = vsel %vm1245, %v1188, %v1715
      %v1821 = vsel %vm1270, %v1798, %v1741
      %v1823 = vsel %vm1270, %v1801, %v1743
      %v1825 = vsel %vm1270, %v1804, %v1745
      %v1827 = vsel %vm1270, %v1807, %v1747
      %v1829 = vsel %vm1270, %v1810, %v1749
      %v1831 = vsel %vm1270, %v1813, %v1751
      %v1833 = vsel %vm1270, %v1816, %v1753
      %v1835 = vsel %vm1270, %v1819, %v1755
      %v1837 = vsel %vm1287, %v1821, %v1781
      %v1839 = vsel %vm1287, %v1823, %v1783
      %v1841 = vsel %vm1287, %v1825, %v1785
      %v1843 = vsel %vm1287, %v1827, %v1787
      %v1845 = vsel %vm1287, %v1829, %v1789
      %v1847 = vsel %vm1287, %v1831, %v1791
      %v1849 = vsel %vm1287, %v1833, %v1793
      %v1851 = vsel %vm1287, %v1835, %v1795
      %s1852 = scalar_lea.vmem %s1, 16
      %v1853 = vld [vmem:[%s1852] sm:$0xf]
      %v1854 = vld [vmem:[%s1852 + $0x4] sm:$0xf]
      %v1857 = vunpack.c.l.b16 %v1853
      %v1858 = vunpack.c.l.b16 %v1854
      %v1859 = vpack.c.b16 %v1858, %v1857
      %v1861 = vsel %vm1312, %v1837, 0
      %v1863 = vsel %vm1312, %v1839, 0
      %v1865 = vsel %vm1312, %v1841, 0
      %v1867 = vsel %vm1312, %v1843, 0
      %v1869 = vsel %vm1312, %v1845, 0
      %v1871 = vsel %vm1312, %v1847, 0
      %v1873 = vsel %vm1312, %v1849, 0
      %v1875 = vsel %vm1312, %v1851, 0
      %1877 = vmatprep.subr.bf16.mxu0 0
      %1878 = vmatpush1.bf16.msra.mxu0 %v1859
      %1879 = vmatprep.subr.bf16.mxu0 0
      %1880 = vmatpush1.bf16.msra.mxu0 0
      %1881 = vmatprep.subr.bf16.mxu0 0
      %1882 = vmatpush1.bf16.msra.mxu0 0
      %1883 = vmatprep.subr.bf16.mxu0 0
      %1884 = vmatpush1.bf16.msra.mxu0 0
      %1885 = vmatprep.subr.bf16.mxu0 0
      %1886 = vmatpush1.bf16.msra.mxu0 0
      %1887 = vmatprep.subr.bf16.mxu0 0
      %1888 = vmatpush1.bf16.msra.mxu0 0
      %1889 = vmatprep.subr.bf16.mxu0 0
      %1890 = vmatpush1.bf16.msra.mxu0 0
      %1891 = vmatprep.subr.bf16.mxu0 0
      %1892 = vmatpush1.bf16.msra.mxu0 0
      %1893 = vmatprep.subr.bf16.mxu0 0
      %1894 = vmatpush1.bf16.msra.mxu0 0
      %1895 = vmatprep.subr.bf16.mxu0 0
      %1896 = vmatpush1.bf16.msra.mxu0 0
      %1897 = vmatprep.subr.bf16.mxu0 0
      %1898 = vmatpush1.bf16.msra.mxu0 0
      %1899 = vmatprep.subr.bf16.mxu0 0
      %1900 = vmatpush1.bf16.msra.mxu0 0
      %1901 = vmatprep.subr.bf16.mxu0 0
      %1902 = vmatpush1.bf16.msra.mxu0 0
      %1903 = vmatprep.subr.bf16.mxu0 0
      %1904 = vmatpush1.bf16.msra.mxu0 0
      %1905 = vmatprep.subr.bf16.mxu0 0
      %1906 = vmatpush1.bf16.msra.mxu0 0
      %1907 = vmatprep.subr.bf16.mxu0 0
      %1908 = vmatpush1.bf16.msra.mxu0 0
      %1909 = vmatprep.mubr.bf16.mxu0 0
      %1910 = vmatmul.mubr.bf16.gmra.mrb[0].mxu0 %v1861
      %v1911 = vpop.f32.mrb[0].mxu0
      %v1912 = vadd.f32 0.0, %v1911
      %v1913 = vpop.f32.mrb[0].mxu0
      %v1914 = vpop.f32.mrb[0].mxu0
      %v1915 = vadd.f32 0.0, %v1914
      %v1916 = vpop.f32.mrb[0].mxu0
      %1917 = vmatprep.mubr.bf16.mxu0 0
      %1918 = vmatmul.mubr.bf16.gmra.mrb[0].mxu0 %v1863
      %v1919 = vpop.f32.mrb[0].mxu0
      %v1920 = vadd.f32 0.0, %v1919
      %v1921 = vpop.f32.mrb[0].mxu0
      %v1922 = vpop.f32.mrb[0].mxu0
      %v1923 = vadd.f32 0.0, %v1922
      %v1924 = vpop.f32.mrb[0].mxu0
      %1925 = vmatprep.mubr.bf16.mxu0 0
      %1926 = vmatmul.mubr.bf16.gmra.mrb[0].mxu0 %v1865
      %v1927 = vpop.f32.mrb[0].mxu0
      %v1928 = vadd.f32 0.0, %v1927
      %v1929 = vpop.f32.mrb[0].mxu0
      %v1930 = vpop.f32.mrb[0].mxu0
      %v1931 = vadd.f32 0.0, %v1930
      %v1932 = vpop.f32.mrb[0].mxu0
      %1933 = vmatprep.mubr.bf16.mxu0 0
      %1934 = vmatmul.mubr.bf16.gmra.mrb[0].mxu0 %v1867
      %v1935 = vpop.f32.mrb[0].mxu0
      %v1936 = vadd.f32 0.0, %v1935
      %v1937 = vpop.f32.mrb[0].mxu0
      %v1938 = vpop.f32.mrb[0].mxu0
      %v1939 = vadd.f32 0.0, %v1938
      %v1940 = vpop.f32.mrb[0].mxu0
      %1941 = vmatprep.mubr.bf16.mxu0 0
      %1942 = vmatmul.mubr.bf16.gmra.mrb[0].mxu0 %v1869
      %v1943 = vpop.f32.mrb[0].mxu0
      %v1944 = vadd.f32 0.0, %v1943
      %v1945 = vpop.f32.mrb[0].mxu0
      %v1946 = vpop.f32.mrb[0].mxu0
      %v1947 = vadd.f32 0.0, %v1946
      %v1948 = vpop.f32.mrb[0].mxu0
      %1949 = vmatprep.mubr.bf16.mxu0 0
      %1950 = vmatmul.mubr.bf16.gmra.mrb[0].mxu0 %v1871
      %v1951 = vpop.f32.mrb[0].mxu0
      %v1952 = vadd.f32 0.0, %v1951
      %v1953 = vpop.f32.mrb[0].mxu0
      %v1954 = vpop.f32.mrb[0].mxu0
      %v1955 = vadd.f32 0.0, %v1954
      %v1956 = vpop.f32.mrb[0].mxu0
      %1957 = vmatprep.mubr.bf16.mxu0 0
      %1958 = vmatmul.mubr.bf16.gmra.mrb[0].mxu0 %v1873
      %v1959 = vpop.f32.mrb[0].mxu0
      %v1960 = vadd.f32 0.0, %v1959
      %v1961 = vpop.f32.mrb[0].mxu0
      %v1962 = vpop.f32.mrb[0].mxu0
      %v1963 = vadd.f32 0.0, %v1962
      %v1964 = vpop.f32.mrb[0].mxu0
      %1965 = vmatprep.mubr.bf16.mxu0 0
      %1966 = vmatmul.mubr.bf16.gmra.mrb[0].mxu0 %v1875
      %v1967 = vpop.f32.mrb[0].mxu0
      %v1968 = vadd.f32 0.0, %v1967
      %v1969 = vpop.f32.mrb[0].mxu0
      %v1970 = vpop.f32.mrb[0].mxu0
      %v1971 = vadd.f32 0.0, %v1970
      %v1972 = vpop.f32.mrb[0].mxu0
      %1973 = vdwg.mxu0
      %1974 = vrot.lane.b32.xlu0 %v1498, 4
      %v1975 = vpop.permute.xlu0 %1974
      %1976 = vrot.lane.b32.xlu0 %v1499, 4
      %v1977 = vpop.permute.xlu0 %1976
      %1978 = vrot.lane.b32.xlu0 %v1500, 4
      %v1979 = vpop.permute.xlu0 %1978
      %1980 = vrot.lane.b32.xlu0 %v1501, 4
      %v1981 = vpop.permute.xlu0 %1980
      %1982 = vrot.lane.b32.xlu0 %v1502, 4
      %v1983 = vpop.permute.xlu0 %1982
      %1984 = vrot.lane.b32.xlu0 %v1503, 4
      %v1985 = vpop.permute.xlu0 %1984
      %1986 = vrot.lane.b32.xlu0 %v1504, 4
      %v1987 = vpop.permute.xlu0 %1986
      %1988 = vrot.lane.b32.xlu0 %v1505, 4
      %v1989 = vpop.permute.xlu0 %1988
      %1990 = vrot.lane.b32.xlu0 %v1772, 8
      %v1991 = vpop.permute.xlu0 %1990
      %1992 = vrot.lane.b32.xlu0 %v1773, 8
      %v1993 = vpop.permute.xlu0 %1992
      %1994 = vrot.lane.b32.xlu0 %v1774, 8
      %v1995 = vpop.permute.xlu0 %1994
      %1996 = vrot.lane.b32.xlu0 %v1775, 8
      %v1997 = vpop.permute.xlu0 %1996
      %1998 = vrot.lane.b32.xlu0 %v1776, 8
      %v1999 = vpop.permute.xlu0 %1998
      %2000 = vrot.lane.b32.xlu0 %v1777, 8
      %v2001 = vpop.permute.xlu0 %2000
      %2002 = vrot.lane.b32.xlu0 %v1778, 8
      %v2003 = vpop.permute.xlu0 %2002
      %2004 = vrot.lane.b32.xlu0 %v1779, 8
      %v2005 = vpop.permute.xlu0 %2004
      %v2006 = vunpack.c.l.b16 %v1048
      %v2007 = vunpack.c.l.b16 %v1051
      %v2008 = vunpack.c.l.b16 %v1055
      %v2009 = vunpack.c.l.b16 %v1058
      %v2010 = vunpack.c.l.b16 %v1062
      %v2011 = vunpack.c.l.b16 %v1065
      %v2012 = vunpack.c.l.b16 %v1069
      %v2013 = vunpack.c.l.b16 %v1072
      %v2014 = vunpack.c.l.b16 %v1076
      %v2015 = vunpack.c.l.b16 %v1079
      %v2016 = vunpack.c.l.b16 %v1083
      %v2017 = vunpack.c.l.b16 %v1086
      %v2018 = vunpack.c.l.b16 %v1090
      %v2019 = vunpack.c.l.b16 %v1093
      %v2020 = vunpack.c.l.b16 %v1097
      %v2021 = vunpack.c.l.b16 %v1100
      %v2022 = vpack.c.b16 %v2007, %v2006
      %v2023 = vpack.c.b16 %v2009, %v2008
      %v2024 = vpack.c.b16 %v2011, %v2010
      %v2025 = vpack.c.b16 %v2013, %v2012
      %v2026 = vpack.c.b16 %v2015, %v2014
      %v2027 = vpack.c.b16 %v2017, %v2016
      %v2028 = vpack.c.b16 %v2019, %v2018
      %v2029 = vpack.c.b16 %v2021, %v2020
      %2030 = vrot.lane.b32.xlu0 %v2022, 12
      %v2031 = vpop.permute.xlu0 %2030
      %2032 = vrot.lane.b32.xlu0 %v2023, 12
      %v2033 = vpop.permute.xlu0 %2032
      %2034 = vrot.lane.b32.xlu0 %v2024, 12
      %v2035 = vpop.permute.xlu0 %2034
      %2036 = vrot.lane.b32.xlu0 %v2025, 12
      %v2037 = vpop.permute.xlu0 %2036
      %2038 = vrot.lane.b32.xlu0 %v2026, 12
      %v2039 = vpop.permute.xlu0 %2038
      %2040 = vrot.lane.b32.xlu0 %v2027, 12
      %v2041 = vpop.permute.xlu0 %2040
      %2042 = vrot.lane.b32.xlu0 %v2028, 12
      %v2043 = vpop.permute.xlu0 %2042
      %2044 = vrot.lane.b32.xlu0 %v2029, 12
      %v2045 = vpop.permute.xlu0 %2044
      %v2048 = vsel %vm1245, %v1221, %v1975
      %v2051 = vsel %vm1245, %v1222, %v1977
      %v2054 = vsel %vm1245, %v1223, %v1979
      %v2057 = vsel %vm1245, %v1224, %v1981
      %v2060 = vsel %vm1245, %v1225, %v1983
      %v2063 = vsel %vm1245, %v1226, %v1985
      %v2066 = vsel %vm1245, %v1227, %v1987
      %v2069 = vsel %vm1245, %v1228, %v1989
      %v2071 = vsel %vm1270, %v2048, %v1991
      %v2073 = vsel %vm1270, %v2051, %v1993
      %v2075 = vsel %vm1270, %v2054, %v1995
      %v2077 = vsel %vm1270, %v2057, %v1997
      %v2079 = vsel %vm1270, %v2060, %v1999
      %v2081 = vsel %vm1270, %v2063, %v2001
      %v2083 = vsel %vm1270, %v2066, %v2003
      %v2085 = vsel %vm1270, %v2069, %v2005
      %v2087 = vsel %vm1287, %v2071, %v2031
      %v2089 = vsel %vm1287, %v2073, %v2033
      %v2091 = vsel %vm1287, %v2075, %v2035
      %v2093 = vsel %vm1287, %v2077, %v2037
      %v2095 = vsel %vm1287, %v2079, %v2039
      %v2097 = vsel %vm1287, %v2081, %v2041
      %v2099 = vsel %vm1287, %v2083, %v2043
      %v2101 = vsel %vm1287, %v2085, %v2045
      %s2102 = scalar_lea.vmem %s1, 24
      %v2103 = vld [vmem:[%s2102] sm:$0xf]
      %v2104 = vld [vmem:[%s2102 + $0x4] sm:$0xf]
      %v2107 = vunpack.c.l.b16 %v2103
      %v2108 = vunpack.c.l.b16 %v2104
      %v2109 = vpack.c.b16 %v2108, %v2107
      %v2111 = vsel %vm1312, %v2087, 0
      %v2113 = vsel %vm1312, %v2089, 0
      %v2115 = vsel %vm1312, %v2091, 0
      %v2117 = vsel %vm1312, %v2093, 0
      %v2119 = vsel %vm1312, %v2095, 0
      %v2121 = vsel %vm1312, %v2097, 0
      %v2123 = vsel %vm1312, %v2099, 0
      %v2125 = vsel %vm1312, %v2101, 0
      %2127 = vmatprep.subr.bf16.mxu0 0
      %2128 = vmatpush1.bf16.msra.mxu0 %v2109
      %2129 = vmatprep.subr.bf16.mxu0 0
      %2130 = vmatpush1.bf16.msra.mxu0 0
      %2131 = vmatprep.subr.bf16.mxu0 0
      %2132 = vmatpush1.bf16.msra.mxu0 0
      %2133 = vmatprep.subr.bf16.mxu0 0
      %2134 = vmatpush1.bf16.msra.mxu0 0
      %2135 = vmatprep.subr.bf16.mxu0 0
      %2136 = vmatpush1.bf16.msra.mxu0 0
      %2137 = vmatprep.subr.bf16.mxu0 0
      %2138 = vmatpush1.bf16.msra.mxu0 0
      %2139 = vmatprep.subr.bf16.mxu0 0
      %2140 = vmatpush1.bf16.msra.mxu0 0
      %2141 = vmatprep.subr.bf16.mxu0 0
      %2142 = vmatpush1.bf16.msra.mxu0 0
      %2143 = vmatprep.subr.bf16.mxu0 0
      %2144 = vmatpush1.bf16.msra.mxu0 0
      %2145 = vmatprep.subr.bf16.mxu0 0
      %2146 = vmatpush1.bf16.msra.mxu0 0
      %2147 = vmatprep.subr.bf16.mxu0 0
      %2148 = vmatpush1.bf16.msra.mxu0 0
      %2149 = vmatprep.subr.bf16.mxu0 0
      %2150 = vmatpush1.bf16.msra.mxu0 0
      %2151 = vmatprep.subr.bf16.mxu0 0
      %2152 = vmatpush1.bf16.msra.mxu0 0
      %2153 = vmatprep.subr.bf16.mxu0 0
      %2154 = vmatpush1.bf16.msra.mxu0 0
      %2155 = vmatprep.subr.bf16.mxu0 0
      %2156 = vmatpush1.bf16.msra.mxu0 0
      %2157 = vmatprep.subr.bf16.mxu0 0
      %2158 = vmatpush1.bf16.msra.mxu0 0
      %2159 = vmatprep.mubr.bf16.mxu0 0
      %2160 = vmatmul.mubr.bf16.gmra.mrb[0].mxu0 %v2111
      %v2161 = vpop.f32.mrb[0].mxu0
      %v2162 = vadd.f32 0.0, %v2161
      %v2163 = vpop.f32.mrb[0].mxu0
      %v2164 = vpop.f32.mrb[0].mxu0
      %v2165 = vadd.f32 0.0, %v2164
      %v2166 = vpop.f32.mrb[0].mxu0
      %2167 = vmatprep.mubr.bf16.mxu0 0
      %2168 = vmatmul.mubr.bf16.gmra.mrb[0].mxu0 %v2113
      %v2169 = vpop.f32.mrb[0].mxu0
      %v2170 = vadd.f32 0.0, %v2169
      %v2171 = vpop.f32.mrb[0].mxu0
      %v2172 = vpop.f32.mrb[0].mxu0
      %v2173 = vadd.f32 0.0, %v2172
      %v2174 = vpop.f32.mrb[0].mxu0
      %2175 = vmatprep.mubr.bf16.mxu0 0
      %2176 = vmatmul.mubr.bf16.gmra.mrb[0].mxu0 %v2115
      %v2177 = vpop.f32.mrb[0].mxu0
      %v2178 = vadd.f32 0.0, %v2177
      %v2179 = vpop.f32.mrb[0].mxu0
      %v2180 = vpop.f32.mrb[0].mxu0
      %v2181 = vadd.f32 0.0, %v2180
      %v2182 = vpop.f32.mrb[0].mxu0
      %2183 = vmatprep.mubr.bf16.mxu0 0
      %2184 = vmatmul.mubr.bf16.gmra.mrb[0].mxu0 %v2117
      %v2185 = vpop.f32.mrb[0].mxu0
      %v2186 = vadd.f32 0.0, %v2185
      %v2187 = vpop.f32.mrb[0].mxu0
      %v2188 = vpop.f32.mrb[0].mxu0
      %v2189 = vadd.f32 0.0, %v2188
      %v2190 = vpop.f32.mrb[0].mxu0
      %2191 = vmatprep.mubr.bf16.mxu0 0
      %2192 = vmatmul.mubr.bf16.gmra.mrb[0].mxu0 %v2119
      %v2193 = vpop.f32.mrb[0].mxu0
      %v2194 = vadd.f32 0.0, %v2193
      %v2195 = vpop.f32.mrb[0].mxu0
      %v2196 = vpop.f32.mrb[0].mxu0
      %v2197 = vadd.f32 0.0, %v2196
      %v2198 = vpop.f32.mrb[0].mxu0
      %2199 = vmatprep.mubr.bf16.mxu0 0
      %2200 = vmatmul.mubr.bf16.gmra.mrb[0].mxu0 %v2121
      %v2201 = vpop.f32.mrb[0].mxu0
      %v2202 = vadd.f32 0.0, %v2201
      %v2203 = vpop.f32.mrb[0].mxu0
      %v2204 = vpop.f32.mrb[0].mxu0
      %v2205 = vadd.f32 0.0, %v2204
      %v2206 = vpop.f32.mrb[0].mxu0
      %2207 = vmatprep.mubr.bf16.mxu0 0
      %2208 = vmatmul.mubr.bf16.gmra.mrb[0].mxu0 %v2123
      %v2209 = vpop.f32.mrb[0].mxu0
      %v2210 = vadd.f32 0.0, %v2209
      %v2211 = vpop.f32.mrb[0].mxu0
      %v2212 = vpop.f32.mrb[0].mxu0
      %v2213 = vadd.f32 0.0, %v2212
      %v2214 = vpop.f32.mrb[0].mxu0
      %2215 = vmatprep.mubr.bf16.mxu0 0
      %2216 = vmatmul.mubr.bf16.gmra.mrb[0].mxu0 %v2125
      %v2217 = vpop.f32.mrb[0].mxu0
      %v2218 = vadd.f32 0.0, %v2217
      %v2219 = vpop.f32.mrb[0].mxu0
      %v2220 = vpop.f32.mrb[0].mxu0
      %v2221 = vadd.f32 0.0, %v2220
      %v2222 = vpop.f32.mrb[0].mxu0
      %2223 = vdwg.mxu0
      %2240 = vrot.lane.b32.xlu0 %v1638, 32
      %v2241 = vpop.permute.xlu0 %2240
      %2242 = vrot.lane.b32.xlu0 %v1641, 32
      %v2243 = vpop.permute.xlu0 %2242
      %2244 = vrot.lane.b32.xlu0 %v1646, 32
      %v2245 = vpop.permute.xlu0 %2244
      %2246 = vrot.lane.b32.xlu0 %v1649, 32
      %v2247 = vpop.permute.xlu0 %2246
      %2248 = vrot.lane.b32.xlu0 %v1654, 32
      %v2249 = vpop.permute.xlu0 %2248
      %2250 = vrot.lane.b32.xlu0 %v1657, 32
      %v2251 = vpop.permute.xlu0 %2250
      %2252 = vrot.lane.b32.xlu0 %v1662, 32
      %v2253 = vpop.permute.xlu0 %2252
      %2254 = vrot.lane.b32.xlu0 %v1665, 32
      %v2255 = vpop.permute.xlu0 %2254
      %2256 = vrot.lane.b32.xlu0 %v1670, 32
      %v2257 = vpop.permute.xlu0 %2256
      %2258 = vrot.lane.b32.xlu0 %v1673, 32
      %v2259 = vpop.permute.xlu0 %2258
      %2260 = vrot.lane.b32.xlu0 %v1678, 32
      %v2261 = vpop.permute.xlu0 %2260
      %2262 = vrot.lane.b32.xlu0 %v1681, 32
      %v2263 = vpop.permute.xlu0 %2262
      %2264 = vrot.lane.b32.xlu0 %v1686, 32
      %v2265 = vpop.permute.xlu0 %2264
      %2266 = vrot.lane.b32.xlu0 %v1689, 32
      %v2267 = vpop.permute.xlu0 %2266
      %2268 = vrot.lane.b32.xlu0 %v1694, 32
      %v2269 = vpop.permute.xlu0 %2268
      %2270 = vrot.lane.b32.xlu0 %v1697, 32
      %v2271 = vpop.permute.xlu0 %2270
      %2304 = vrot.lane.b32.xlu0 %v1912, 64
      %v2305 = vpop.permute.xlu0 %2304
      %2306 = vrot.lane.b32.xlu0 %v1915, 64
      %v2307 = vpop.permute.xlu0 %2306
      %2308 = vrot.lane.b32.xlu0 %v1920, 64
      %v2309 = vpop.permute.xlu0 %2308
      %2310 = vrot.lane.b32.xlu0 %v1923, 64
      %v2311 = vpop.permute.xlu0 %2310
      %2312 = vrot.lane.b32.xlu0 %v1928, 64
      %v2313 = vpop.permute.xlu0 %2312
      %2314 = vrot.lane.b32.xlu0 %v1931, 64
      %v2315 = vpop.permute.xlu0 %2314
      %2316 = vrot.lane.b32.xlu0 %v1936, 64
      %v2317 = vpop.permute.xlu0 %2316
      %2318 = vrot.lane.b32.xlu0 %v1939, 64
      %v2319 = vpop.permute.xlu0 %2318
      %2320 = vrot.lane.b32.xlu0 %v1944, 64
      %v2321 = vpop.permute.xlu0 %2320
      %2322 = vrot.lane.b32.xlu0 %v1947, 64
      %v2323 = vpop.permute.xlu0 %2322
      %2324 = vrot.lane.b32.xlu0 %v1952, 64
      %v2325 = vpop.permute.xlu0 %2324
      %2326 = vrot.lane.b32.xlu0 %v1955, 64
      %v2327 = vpop.permute.xlu0 %2326
      %2328 = vrot.lane.b32.xlu0 %v1960, 64
      %v2329 = vpop.permute.xlu0 %2328
      %2330 = vrot.lane.b32.xlu0 %v1963, 64
      %v2331 = vpop.permute.xlu0 %2330
      %2332 = vrot.lane.b32.xlu0 %v1968, 64
      %v2333 = vpop.permute.xlu0 %2332
      %2334 = vrot.lane.b32.xlu0 %v1971, 64
      %v2335 = vpop.permute.xlu0 %2334
      %2368 = vrot.lane.b32.xlu0 %v2162, 96
      %v2369 = vpop.permute.xlu0 %2368
      %2370 = vrot.lane.b32.xlu0 %v2165, 96
      %v2371 = vpop.permute.xlu0 %2370
      %2372 = vrot.lane.b32.xlu0 %v2170, 96
      %v2373 = vpop.permute.xlu0 %2372
      %2374 = vrot.lane.b32.xlu0 %v2173, 96
      %v2375 = vpop.permute.xlu0 %2374
      %2376 = vrot.lane.b32.xlu0 %v2178, 96
      %v2377 = vpop.permute.xlu0 %2376
      %2378 = vrot.lane.b32.xlu0 %v2181, 96
      %v2379 = vpop.permute.xlu0 %2378
      %2380 = vrot.lane.b32.xlu0 %v2186, 96
      %v2381 = vpop.permute.xlu0 %2380
      %2382 = vrot.lane.b32.xlu0 %v2189, 96
      %v2383 = vpop.permute.xlu0 %2382
      %2384 = vrot.lane.b32.xlu0 %v2194, 96
      %v2385 = vpop.permute.xlu0 %2384
      %2386 = vrot.lane.b32.xlu0 %v2197, 96
      %v2387 = vpop.permute.xlu0 %2386
      %2388 = vrot.lane.b32.xlu0 %v2202, 96
      %v2389 = vpop.permute.xlu0 %2388
      %2390 = vrot.lane.b32.xlu0 %v2205, 96
      %v2391 = vpop.permute.xlu0 %2390
      %2392 = vrot.lane.b32.xlu0 %v2210, 96
      %v2393 = vpop.permute.xlu0 %2392
      %2394 = vrot.lane.b32.xlu0 %v2213, 96
      %v2395 = vpop.permute.xlu0 %2394
      %2396 = vrot.lane.b32.xlu0 %v2218, 96
      %v2397 = vpop.permute.xlu0 %2396
      %2398 = vrot.lane.b32.xlu0 %v2221, 96
      %v2399 = vpop.permute.xlu0 %2398
      %vm2416 = vcmask 261120
      %v2417 = vsel %vm2416, %v1364, %v2241
      %v2418 = vsel %vm2416, %v1367, %v2243
      %v2419 = vsel %vm2416, %v1372, %v2245
      %v2420 = vsel %vm2416, %v1375, %v2247
      %v2421 = vsel %vm2416, %v1380, %v2249
      %v2422 = vsel %vm2416, %v1383, %v2251
      %v2423 = vsel %vm2416, %v1388, %v2253
      %v2424 = vsel %vm2416, %v1391, %v2255
      %v2425 = vsel %vm2416, %v1396, %v2257
      %v2426 = vsel %vm2416, %v1399, %v2259
      %v2427 = vsel %vm2416, %v1404, %v2261
      %v2428 = vsel %vm2416, %v1407, %v2263
      %v2429 = vsel %vm2416, %v1412, %v2265
      %v2430 = vsel %vm2416, %v1415, %v2267
      %v2431 = vsel %vm2416, %v1420, %v2269
      %v2432 = vsel %vm2416, %v1423, %v2271
      %vm2433 = vcmask 523264
      %v2434 = vsel %vm2433, %v2417, %v2305
      %v2435 = vsel %vm2433, %v2418, %v2307
      %v2436 = vsel %vm2433, %v2419, %v2309
      %v2437 = vsel %vm2433, %v2420, %v2311
      %v2438 = vsel %vm2433, %v2421, %v2313
      %v2439 = vsel %vm2433, %v2422, %v2315
      %v2440 = vsel %vm2433, %v2423, %v2317
      %v2441 = vsel %vm2433, %v2424, %v2319
      %v2442 = vsel %vm2433, %v2425, %v2321
      %v2443 = vsel %vm2433, %v2426, %v2323
      %v2444 = vsel %vm2433, %v2427, %v2325
      %v2445 = vsel %vm2433, %v2428, %v2327
      %v2446 = vsel %vm2433, %v2429, %v2329
      %v2447 = vsel %vm2433, %v2430, %v2331
      %v2448 = vsel %vm2433, %v2431, %v2333
      %v2449 = vsel %vm2433, %v2432, %v2335
      %vm2450 = vcmask 785408
      %v2451 = vsel %vm2450, %v2434, %v2369
      %v2452 = vsel %vm2450, %v2435, %v2371
      %v2453 = vsel %vm2450, %v2436, %v2373
      %v2454 = vsel %vm2450, %v2437, %v2375
      %v2455 = vsel %vm2450, %v2438, %v2377
      %v2456 = vsel %vm2450, %v2439, %v2379
      %v2457 = vsel %vm2450, %v2440, %v2381
      %v2458 = vsel %vm2450, %v2441, %v2383
      %v2459 = vsel %vm2450, %v2442, %v2385
      %v2460 = vsel %vm2450, %v2443, %v2387
      %v2461 = vsel %vm2450, %v2444, %v2389
      %v2462 = vsel %vm2450, %v2445, %v2391
      %v2463 = vsel %vm2450, %v2446, %v2393
      %v2464 = vsel %vm2450, %v2447, %v2395
      %v2465 = vsel %vm2450, %v2448, %v2397
      %v2466 = vsel %vm2450, %v2449, %v2399
      %v2467 = vld [vmem:[%s2] sm:$0x1]
      %v2469 = vlaneseq
      %v2470 = vshrl.u32 %v2469, 7
      %v2471 = vsub.s32 0, %v2470
      %v2472 = vrot.slane %v2467, %v2471
      %v2474 = vadd.f32 %v2451, %v2472
      %v2475 = vadd.f32 %v2452, %v2472
      %v2476 = vadd.f32 %v2453, %v2472
      %v2477 = vadd.f32 %v2454, %v2472
      %v2478 = vadd.f32 %v2455, %v2472
      %v2479 = vadd.f32 %v2456, %v2472
      %v2480 = vadd.f32 %v2457, %v2472
      %v2481 = vadd.f32 %v2458, %v2472
      %v2482 = vadd.f32 %v2459, %v2472
      %v2483 = vadd.f32 %v2460, %v2472
      %v2484 = vadd.f32 %v2461, %v2472
      %v2485 = vadd.f32 %v2462, %v2472
      %v2486 = vadd.f32 %v2463, %v2472
      %v2487 = vadd.f32 %v2464, %v2472
      %v2488 = vadd.f32 %v2465, %v2472
      %v2489 = vadd.f32 %v2466, %v2472
      %v2490 = vmax.f32 %v2474, 0.0
      %v2491 = vmax.f32 %v2475, 0.0
      %v2492 = vmax.f32 %v2476, 0.0
      %v2493 = vmax.f32 %v2477, 0.0
      %v2494 = vmax.f32 %v2478, 0.0
      %v2495 = vmax.f32 %v2479, 0.0
      %v2496 = vmax.f32 %v2480, 0.0
      %v2497 = vmax.f32 %v2481, 0.0
      %v2498 = vmax.f32 %v2482, 0.0
      %v2499 = vmax.f32 %v2483, 0.0
      %v2500 = vmax.f32 %v2484, 0.0
      %v2501 = vmax.f32 %v2485, 0.0
      %v2502 = vmax.f32 %v2486, 0.0
      %v2503 = vmax.f32 %v2487, 0.0
      %v2504 = vmax.f32 %v2488, 0.0
      %v2505 = vmax.f32 %v2489, 0.0
      %v2506 = vpack.c.bf16 %v2491, %v2490
      %v2507 = vpack.c.bf16 %v2493, %v2492
      %v2508 = vpack.c.bf16 %v2495, %v2494
      %v2509 = vpack.c.bf16 %v2497, %v2496
      %v2510 = vpack.c.bf16 %v2499, %v2498
      %v2511 = vpack.c.bf16 %v2501, %v2500
      %v2512 = vpack.c.bf16 %v2503, %v2502
      %v2513 = vpack.c.bf16 %v2505, %v2504
      %v2522 = vunpack.c.l.b16 %v2506
      %v2523 = vunpack.c.h.b16 %v2506
      %v2524 = vunpack.c.l.b16 %v2507
      %v2525 = vunpack.c.h.b16 %v2507
      %v2526 = vunpack.c.l.b16 %v2508
      %v2527 = vunpack.c.h.b16 %v2508
      %v2528 = vunpack.c.l.b16 %v2509
      %v2529 = vunpack.c.h.b16 %v2509
      %v2530 = vunpack.c.l.b16 %v2510
      %v2531 = vunpack.c.h.b16 %v2510
      %v2532 = vunpack.c.l.b16 %v2511
      %v2533 = vunpack.c.h.b16 %v2511
      %v2534 = vunpack.c.l.b16 %v2512
      %v2535 = vunpack.c.h.b16 %v2512
      %v2536 = vunpack.c.l.b16 %v2513
      %v2537 = vunpack.c.h.b16 %v2513
      %v2538 = vpack.c.b16 %v2522, %v2522
      %v2539 = vpack.c.b16 %v2523, %v2523
      %v2540 = vpack.c.b16 %v2524, %v2524
      %v2541 = vpack.c.b16 %v2525, %v2525
      %v2542 = vpack.c.b16 %v2526, %v2526
      %v2543 = vpack.c.b16 %v2527, %v2527
      %v2544 = vpack.c.b16 %v2528, %v2528
      %v2545 = vpack.c.b16 %v2529, %v2529
      %v2546 = vpack.c.b16 %v2530, %v2530
      %v2547 = vpack.c.b16 %v2531, %v2531
      %v2548 = vpack.c.b16 %v2532, %v2532
      %v2549 = vpack.c.b16 %v2533, %v2533
      %v2550 = vpack.c.b16 %v2534, %v2534
      %v2551 = vpack.c.b16 %v2535, %v2535
      %v2552 = vpack.c.b16 %v2536, %v2536
      %v2553 = vpack.c.b16 %v2537, %v2537
      %2570 = vst [vmem:[%s192] sm:$0xf] %v2538
      %2571 = vst [vmem:[%s192 + $0x4] sm:$0xf] %v2539
      %2572 = vst [vmem:[%s192 + $0x8] sm:$0xf] %v2540
      %2573 = vst [vmem:[%s192 + $0xc] sm:$0xf] %v2541
      %2574 = vst [vmem:[%s192 + $0x10] sm:$0xf] %v2542
      %2575 = vst [vmem:[%s192 + $0x14] sm:$0xf] %v2543
      %2576 = vst [vmem:[%s192 + $0x18] sm:$0xf] %v2544
      %2577 = vst [vmem:[%s192 + $0x1c] sm:$0xf] %v2545
      %2578 = vst [vmem:[%s192 + $0x20] sm:$0xf] %v2546
      %2579 = vst [vmem:[%s192 + $0x24] sm:$0xf] %v2547
      %2580 = vst [vmem:[%s192 + $0x28] sm:$0xf] %v2548
      %2581 = vst [vmem:[%s192 + $0x2c] sm:$0xf] %v2549
      %2582 = vst [vmem:[%s192 + $0x30] sm:$0xf] %v2550
      %2583 = vst [vmem:[%s192 + $0x34] sm:$0xf] %v2551
      %2584 = vst [vmem:[%s192 + $0x38] sm:$0xf] %v2552
      %2585 = vst [vmem:[%s192 + $0x3c] sm:$0xf] %v2553
      %s2586 = smul.u32 16, %s19
      %p2587 = scmp.lt.s32.totalorder %s18, 1
      %s2588 = scalar_select %p2587, %s18, 1
      %p2589 = scmp.lt.s32.totalorder %s2586, 31
      %s2590 = scalar_select %p2589, %s2586, 31
      %s2591 = smul.addr %s2588, 32
      %s2592 = sadd.s32 %s2590, %s2591
      %s2593 = smul.addr %s2592, 4
      %s2594 = scalar_lea.vmem %s3, %s2593
      // Predicated region
      $region33: #{up_forward.1} parent=31 // pred_check
        %p2595 = pneg %p114
      $region34: #{up_forward.1} parent=31 // pred_check_branch
        %2597 = sbr.rel (%p2595) target = $region36
      $region35: #{up_forward.1} parent=31 // pred_region
        %s2598 = smul.u32 16, %s19
      $region36: #{up_forward.1} parent=31 // pred_fallthru
        _
    $region32: #{up_forward.1} parent=5 // pred_fallthru
      _
    %p2599 = scmp.le.s32.totalorder 2, %s9
    // Predicated region
    $region37: #{up_forward.1} parent=5 // pred_check
      %p2600 = pneg %p2599
    $region38: #{up_forward.1} parent=5 // pred_check_branch
      %2602 = sbr.rel (%p2600) target = $region40
    $region39: #{up_forward.1} parent=5 // pred_region
      %s2603 = ssub.s32 %s9, 2
      // Predicated region
      $region41: #{up_forward.1} parent=39 // pred_check
        %p2604 = pneg %p120
      $region42: #{up_forward.1} parent=39 // pred_check_branch
        %2606 = sbr.rel (%p2604) target = $region44
      $region43: #{up_forward.1} parent=39 // pred_region
        %s2607 = smul.u32 16, %s21
        %p2608 = scmp.lt.s32.totalorder %s20, 1
        %s2609 = scalar_select %p2608, %s20, 1
        %p2610 = scmp.lt.s32.totalorder %s2607, 31
        %s2611 = scalar_select %p2610, %s2607, 31
        %s2612 = smul.addr %s2609, 32
        %s2613 = sadd.s32 %s2611, %s2612
        %s2614 = smul.addr %s2613, 4
        %s2615 = scalar_lea.vmem %s3, %s2614
      $region44: #{up_forward.1} parent=39 // pred_fallthru
        _
    $region40: #{up_forward.1} parent=5 // pred_fallthru
      _
  $region6: #{up_forward.1} parent=0 // loop_footer
    %s13 = sadd.s32 1, %s9
  $region7: #{up_forward.1} parent=0 // loop_footer_branch
    %8 = sbr.rel target = $region3
  $region8: #{up_forward.1} parent=0 // loop_exit
    _

// kernel: tile.9
$region0: #{tile.9}
  %s0 = inlined_call_operand.vmem [shape: f32[4,32], index: 0, kind: input, shape index: {}]
  %s1 = inlined_call_operand.vmem [shape: f32[1,128], index: 1, kind: output, shape index: {}]
  $region1: #{tile.9} parent=0
    #allocation0 [shape = 'u8[4096]{0}', space=vmem, size = 0x1000, scoped, tag = 'scoped mem for output reshape']
    #allocation1 [shape = 'u8[4096]{0}', space=vmem, size = 0x1000, scoped, tag = 'scoped mem for input reshape']
    %s3 = sshllo.u32 0, 4
    %v4 = vld [vmem:[%s0] sm:%s3]
    %5 = vst [vmem:[#allocation1] sm:%s3] %v4
    %v6 = vld [vmem:[#allocation1] sm:$0x1]
    %vm7 = vcmask 261120
    %8 = vst.msk [vmem:[#allocation0] sm:$0x1] %vm7, %v6
    %s9 = scalar_lea.vmem [#allocation1], 3
    %v10 = vld [vmem:[%s9] sm:$0x1]
    %11 = vrot.lane.b32.xlu0 %v10, 96
    %v12 = vpop.permute.xlu0 %11
    %vm13 = vcmask 1048320
    %14 = vst.msk [vmem:[#allocation0] sm:$0x1] %vm13, %v12
    %s15 = scalar_lea.vmem [#allocation1], 2
    %v16 = vld [vmem:[%s15] sm:$0x1]
    %17 = vrot.lane.b32.xlu0 %v16, 64
    %v18 = vpop.permute.xlu0 %17
    %vm19 = vcmask 785920
    %20 = vst.msk [vmem:[#allocation0] sm:$0x1] %vm19, %v18
    %s21 = scalar_lea.vmem [#allocation1], 1
    %v22 = vld [vmem:[%s21] sm:$0x1]
    %23 = vrot.lane.b32.xlu0 %v22, 32
    %v24 = vpop.permute.xlu0 %23
    %vm25 = vcmask 523520
    %26 = vst.msk [vmem:[#allocation0] sm:$0x1] %vm25, %v24
    %s28 = sshllo.u32 0, 1
    %v30 = vld [vmem:[#allocation0] sm:%s28]
    %s31 = sshllo.u32 0, 1
    %32 = vst [vmem:[%s1] sm:%s31] %v30

// kernel: tile.8
$region0: #{tile.8}
  #allocation0 [shape = 's32[1]{0}', space=sflag, size = 0x4, scoped, tag = 'scoped memory for tile.8']
  %s0 = inlined_call_operand.vmem [shape: f32[32], index: 0, kind: input, shape index: {}]
  %s1 = inlined_call_operand.vmem [shape: f32[4,32], index: 1, kind: output, shape index: {}]
  // Predicated region
  $region2: #{tile.8} parent=0 // pred_check
    _
  $region3: #{tile.8} parent=0 // pred_check_branch
    %3 = sbr.rel (0) target = $region5
  $region4: #{tile.8} parent=0 // pred_region
    _
  $region5: #{tile.8} parent=0 // pred_fallthru
    _
  %v4 = vld [vmem:[%s0] ss:$0 sm:$0xff]
  %5 = vst [vmem:[%s1] sm:$0xf] %v4

// kernel: up_forward.1
$region0: #{up_forward.1}
  #allocation0 [shape = 'u32[]', space=smem, size = 0x4, offset = 0x4, fixed_abs, tag = 'smem constant byte address 0x4 - core index']
  #allocation1 [shape = 'u32[144,128]{1,0:T(1,128)}', space=vmem, size = 0x12000, scoped, tag = 'internal scratch']
  %s0 = inlined_call_operand.vmem [shape: bf16[2,18,18,4], index: 0, kind: input, shape index: {}]
  %s1 = inlined_call_operand.vmem [shape: bf16[4,16,32], index: 1, kind: input, shape index: {}]
  %s2 = inlined_call_operand.vmem [shape: f32[1,128], index: 2, kind: input, shape index: {}]
  %s3 = inlined_call_operand.vmem [shape: bf16[2,256,128], index: 3, kind: output, shape index: {}]
  %s4 = sld [smem:[#allocation0]]
  $region45: #{up_forward.1} parent=0
    _
  %s6 = ssub.s32 1, %s4
  %s7 = scalar_select 0, %s6, %s4
  loop: start=0, step=1, limit=6
  $region2: #{up_forward.1} parent=0 // loop_pre_header
    _
  $region3: #{up_forward.1} parent=0 // loop_header
    %s9 = sphi 0, %s13
    %p10 = scmp.ge.s32.totalorder %s9, 6
    %s16 = sphi 0, %s28
    %s17 = sphi 0, %s24
    %s18 = sphi 0, %s16
    %s19 = sphi 0, %s17
    %s20 = sphi 0, %s18
    %s21 = sphi 0, %s19
    %s31 = sphi 0, %s33
    %s34 = sphi 0, %s31
    %s35 = sphi 0, %s34
    %s51 = sphi 0, %s35
    %s55 = sphi 0, %s55
    %s57 = sphi 0, %s55
    %s58 = sphi 0, %s57
    %s72 = sphi 0, %s58
    %s76 = sphi 0, %s76
    %s78 = sphi 0, %s76
    %s79 = sphi 0, %s78
    %s93 = sphi 0, %s79
    %s101 = sphi 0, %s103
    %s104 = sphi 0, %s101
    %s105 = sphi 0, %s104
    %s121 = sphi 0, %s105
  $region4: #{up_forward.1} parent=0 // loop_header_branch
    %12 = sbr.rel (%p10) target = $region8
  $region5: #{up_forward.1} parent=0 // loop_body
    %s14 = ssub.s32 %s9, 1
    %s15 = ssub.s32 %s9, 2
    %s22 = sadd.s32 1, %s17
    %p23 = scmp.ge.s32.totalorder %s22, 2
    %s24 = scalar_select %p23, 0, %s22
    %s25 = sadd.s32 1, %s16
    %s26 = scalar_select %p23, %s25, %s16
    %p27 = scmp.ge.s32.totalorder %s26, 2
    %s28 = scalar_select %p27, 0, %s26
    %s29 = ssub.s32 %s16, %s28
    %p30 = scmp.eq.s32.totalorder %s29, 0
    %s32 = sadd.s32 %s31, 1
    %s33 = scalar_select %p30, %s31, %s32
    %p36 = pneg %p30
    %p37 = scmp.eq.s32.totalorder %s9, 3
    %p38 = por %p36, %p37
    %p39 = scmp.ne.s32.totalorder %s31, %s34
    %p40 = scmp.eq.s32.totalorder %s9, 0
    %p41 = por %p39, %p40
    %p42 = scmp.ne.s32.totalorder %s31, %s34
    %p43 = scmp.eq.s32.totalorder %s14, 3
    %p44 = por %p42, %p43
    %p45 = scmp.ne.s32.totalorder %s34, %s35
    %p46 = scmp.eq.s32.totalorder %s14, 0
    %p47 = por %p45, %p46
    %p48 = scmp.ne.s32.totalorder %s34, %s35
    %p49 = scmp.eq.s32.totalorder %s15, 3
    %p50 = por %p48, %p49
    %p52 = scmp.ne.s32.totalorder %s35, %s51
    %p53 = scmp.eq.s32.totalorder %s15, 0
    %p54 = por %p52, %p53
    %s56 = sadd.s32 %s55, 1
    %p59 = scmp.eq.s32.totalorder %s9, 3
    %p60 = scmp.ne.s32.totalorder %s55, %s57
    %p61 = scmp.eq.s32.totalorder %s9, 0
    %p62 = por %p60, %p61
    %p63 = scmp.ne.s32.totalorder %s55, %s57
    %p64 = scmp.eq.s32.totalorder %s14, 3
    %p65 = por %p63, %p64
    %p66 = scmp.ne.s32.totalorder %s57, %s58
    %p67 = scmp.eq.s32.totalorder %s14, 0
    %p68 = por %p66, %p67
    %p69 = scmp.ne.s32.totalorder %s57, %s58
    %p70 = scmp.eq.s32.totalorder %s15, 3
    %p71 = por %p69, %p70
    %p73 = scmp.ne.s32.totalorder %s58, %s72
    %p74 = scmp.eq.s32.totalorder %s15, 0
    %p75 = por %p73, %p74
    %s77 = sadd.s32 %s76, 1
    %p80 = scmp.eq.s32.totalorder %s9, 3
    %p81 = scmp.ne.s32.totalorder %s76, %s78
    %p82 = scmp.eq.s32.totalorder %s9, 0
    %p83 = por %p81, %p82
    %p84 = scmp.ne.s32.totalorder %s76, %s78
    %p85 = scmp.eq.s32.totalorder %s14, 3
    %p86 = por %p84, %p85
    %p87 = scmp.ne.s32.totalorder %s78, %s79
    %p88 = scmp.eq.s32.totalorder %s14, 0
    %p89 = por %p87, %p88
    %p90 = scmp.ne.s32.totalorder %s78, %s79
    %p91 = scmp.eq.s32.totalorder %s15, 3
    %p92 = por %p90, %p91
    %p94 = scmp.ne.s32.totalorder %s79, %s93
    %p95 = scmp.eq.s32.totalorder %s15, 0
    %p96 = por %p94, %p95
    %s97 = ssub.s32 %s16, %s28
    %s98 = ssub.s32 %s17, %s24
    %s99 = sor.u32 %s97, %s98
    %p100 = scmp.eq.s32.totalorder %s99, 0
    %s102 = sadd.s32 %s101, 1
    %s103 = scalar_select %p100, %s101, %s102
    %p106 = pneg %p100
    %p107 = scmp.eq.s32.totalorder %s9, 3
    %p108 = por %p106, %p107
    %p109 = scmp.ne.s32.totalorder %s101, %s104
    %p110 = scmp.eq.s32.totalorder %s9, 0
    %p111 = por %p109, %p110
    %p112 = scmp.ne.s32.totalorder %s101, %s104
    %p113 = scmp.eq.s32.totalorder %s14, 3
    %p114 = por %p112, %p113
    %p115 = scmp.ne.s32.totalorder %s104, %s105
    %p116 = scmp.eq.s32.totalorder %s14, 0
    %p117 = por %p115, %p116
    %p118 = scmp.ne.s32.totalorder %s104, %s105
    %p119 = scmp.eq.s32.totalorder %s15, 3
    %p120 = por %p118, %p119
    %p122 = scmp.ne.s32.totalorder %s105, %s121
    %p123 = scmp.eq.s32.totalorder %s15, 0
    %p124 = por %p122, %p123
    %p125 = scmp.le.s32.totalorder 1, %s9
    %p126 = scmp.lt.s32.totalorder %s9, 5
    %p127 = pnand %p125, %p126
    %p128 = pneg %p127
    // Predicated region
    $region9: #{up_forward.1} parent=5 // pred_check
      _
    $region10: #{up_forward.1} parent=5 // pred_check_branch
      %130 = sbr.rel (%p127) target = $region12
    $region11: #{up_forward.1} parent=5 // pred_region
      %s131 = ssub.s32 %s9, 1
      // Predicated region
      $region13: #{up_forward.1} parent=11 // pred_check
        %p132 = pneg %p68
      $region14: #{up_forward.1} parent=11 // pred_check_branch
        %134 = sbr.rel (%p132) target = $region16
      $region15: #{up_forward.1} parent=11 // pred_region
        _
      $region16: #{up_forward.1} parent=11 // pred_fallthru
        _
      // Predicated region
      $region17: #{up_forward.1} parent=11 // pred_check
        %p135 = pneg %p89
      $region18: #{up_forward.1} parent=11 // pred_check_branch
        %137 = sbr.rel (%p135) target = $region20
      $region19: #{up_forward.1} parent=11 // pred_region
        _
      $region20: #{up_forward.1} parent=11 // pred_fallthru
        _
    $region12: #{up_forward.1} parent=5 // pred_fallthru
      _
    %p138 = scmp.lt.s32.totalorder %s9, 4
    // Predicated region
    $region21: #{up_forward.1} parent=5 // pred_check
      %p139 = pneg %p138
    $region22: #{up_forward.1} parent=5 // pred_check_branch
      %141 = sbr.rel (%p139) target = $region24
    $region23: #{up_forward.1} parent=5 // pred_region
      // Predicated region
      $region25: #{up_forward.1} parent=23 // pred_check
        %p142 = pneg %p41
      $region26: #{up_forward.1} parent=23 // pred_check_branch
        %144 = sbr.rel (%p142) target = $region28
      $region27: #{up_forward.1} parent=23 // pred_region
        %p145 = scmp.lt.s32.totalorder %s16, 1
        %s146 = scalar_select %p145, %s16, 1
        %s147 = smul.addr %s146, 54
        %s148 = smul.addr %s147, 4
        %s149 = scalar_lea.vmem %s0, %s148
      $region28: #{up_forward.1} parent=23 // pred_fallthru
        _
    $region24: #{up_forward.1} parent=5 // pred_fallthru
      _
    %p150 = scmp.le.s32.totalorder 1, %s9
    %p151 = scmp.lt.s32.totalorder %s9, 5
    %p152 = pnand %p150, %p151
    %p153 = pneg %p152
    // Predicated region
    $region29: #{up_forward.1} parent=5 // pred_check
      _
    $region30: #{up_forward.1} parent=5 // pred_check_branch
      %155 = sbr.rel (%p152) target = $region32
    $region31: #{up_forward.1} parent=5 // pred_region
      %s156 = ssub.s32 %s9, 1
      %p157 = scmp.lt.s32.totalorder %s18, 1
      %s158 = scalar_select %p157, %s18, 1
      %s159 = smul.addr %s158, 54
      %s160 = smul.addr %s159, 4
      %s161 = scalar_lea.vmem %s0, %s160
      %p162 = pneg %p47
      %p163 = pneg %p44
      %p164 = pneg %p68
      %p165 = pneg %p65
      %p166 = pneg %p89
      %p167 = pneg %p86
      %p168 = pneg %p117
      %p169 = pneg %p114
      %s170 = smul.u32 16, %s19
      %p171 = scmp.lt.s32.totalorder %s18, 1
      %s172 = scalar_select %p171, %s18, 1
      %p173 = scmp.lt.s32.totalorder %s170, 31
      %s174 = scalar_select %p173, %s170, 31
      %s175 = smul.addr %s172, 32
      %s176 = sadd.s32 %s174, %s175
      %s177 = smul.addr %s176, 4
      %s178 = scalar_lea.vmem %s3, %s177
      %p179 = scmp.lt.s32.totalorder %s18, 1
      %s180 = scalar_select %p179, %s18, 1
      %s181 = smul.addr %s180, 54
      %s182 = smul.addr %s181, 4
      %s183 = scalar_lea.vmem %s0, %s182
      %s184 = smul.u32 16, %s19
      %p185 = scmp.lt.s32.totalorder %s18, 1
      %s186 = scalar_select %p185, %s18, 1
      %p187 = scmp.lt.s32.totalorder %s184, 31
      %s188 = scalar_select %p187, %s184, 31
      %s189 = smul.addr %s186, 32
      %s190 = sadd.s32 %s188, %s189
      %s191 = smul.addr %s190, 4
      %s192 = scalar_lea.vmem %s3, %s191
      %s193 = smul.u32 16, %s19
      %s195 = smul.u32 %s19, 8
      %s196 = smul.u32 %s195, 3
      %s197 = smul.addr %s196, 4
      %s198 = scalar_lea.vmem %s183, %s197
      %v199 = vld [vmem:[%s198] sm:$0xf]
      %v200 = vld [vmem:[%s198 + $0x4] sm:$0xf]
      %v201 = vld [vmem:[%s198 + $0x8] sm:$0x1]
      %v202 = vld [vmem:[%s198 + $0xc] sm:$0xf]
      %v203 = vld [vmem:[%s198 + $0x10] sm:$0xf]
      %v204 = vld [vmem:[%s198 + $0x14] sm:$0x1]
      %v205 = vld [vmem:[%s198 + $0x18] sm:$0xf]
      %v206 = vld [vmem:[%s198 + $0x1c] sm:$0xf]
      %v207 = vld [vmem:[%s198 + $0x20] sm:$0x1]
      %v208 = vld [vmem:[%s198 + $0x24] sm:$0xf]
      %v209 = vld [vmem:[%s198 + $0x28] sm:$0xf]
      %v210 = vld [vmem:[%s198 + $0x2c] sm:$0x1]
      %v211 = vld [vmem:[%s198 + $0x30] sm:$0xf]
      %v212 = vld [vmem:[%s198 + $0x34] sm:$0xf]
      %v213 = vld [vmem:[%s198 + $0x38] sm:$0x1]
      %v214 = vld [vmem:[%s198 + $0x3c] sm:$0xf]
      %v215 = vld [vmem:[%s198 + $0x40] sm:$0xf]
      %v216 = vld [vmem:[%s198 + $0x44] sm:$0x1]
      %v217 = vld [vmem:[%s198 + $0x48] sm:$0xf]
      %v218 = vld [vmem:[%s198 + $0x4c] sm:$0xf]
      %v219 = vld [vmem:[%s198 + $0x50] sm:$0x1]
      %v220 = vld [vmem:[%s198 + $0x54] sm:$0xf]
      %v221 = vld [vmem:[%s198 + $0x58] sm:$0xf]
      %v222 = vld [vmem:[%s198 + $0x5c] sm:$0x1]
      %s223 = sadd.s32 %s195, 1
      %s224 = smul.u32 %s223, 3
      %s225 = smul.addr %s224, 4
      %s226 = scalar_lea.vmem %s183, %s225
      %v227 = vld [vmem:[%s226] sm:$0xf]
      %v228 = vld [vmem:[%s226 + $0x4] sm:$0xf]
      %v229 = vld [vmem:[%s226 + $0x8] sm:$0x1]
      %v230 = vld [vmem:[%s226 + $0xc] sm:$0xf]
      %v231 = vld [vmem:[%s226 + $0x10] sm:$0xf]
      %v232 = vld [vmem:[%s226 + $0x14] sm:$0x1]
      %v233 = vld [vmem:[%s226 + $0x18] sm:$0xf]
      %v234 = vld [vmem:[%s226 + $0x1c] sm:$0xf]
      %v235 = vld [vmem:[%s226 + $0x20] sm:$0x1]
      %v236 = vld [vmem:[%s226 + $0x24] sm:$0xf]
      %v237 = vld [vmem:[%s226 + $0x28] sm:$0xf]
      %v238 = vld [vmem:[%s226 + $0x2c] sm:$0x1]
      %v239 = vld [vmem:[%s226 + $0x30] sm:$0xf]
      %v240 = vld [vmem:[%s226 + $0x34] sm:$0xf]
      %v241 = vld [vmem:[%s226 + $0x38] sm:$0x1]
      %v242 = vld [vmem:[%s226 + $0x3c] sm:$0xf]
      %v243 = vld [vmem:[%s226 + $0x40] sm:$0xf]
      %v244 = vld [vmem:[%s226 + $0x44] sm:$0x1]
      %v245 = vld [vmem:[%s226 + $0x48] sm:$0xf]
      %v246 = vld [vmem:[%s226 + $0x4c] sm:$0xf]
      %v247 = vld [vmem:[%s226 + $0x50] sm:$0x1]
      %v248 = vld [vmem:[%s226 + $0x54] sm:$0xf]
      %v249 = vld [vmem:[%s226 + $0x58] sm:$0xf]
      %v250 = vld [vmem:[%s226 + $0x5c] sm:$0x1]
      %s251 = sadd.s32 %s195, 2
      %s252 = smul.u32 %s251, 3
      %s253 = smul.addr %s252, 4
      %s254 = scalar_lea.vmem %s183, %s253
      %v255 = vld [vmem:[%s254] sm:$0xf]
      %v256 = vld [vmem:[%s254 + $0x4] sm:$0xf]
      %v257 = vld [vmem:[%s254 + $0x8] sm:$0x1]
      %v258 = vld [vmem:[%s254 + $0xc] sm:$0xf]
      %v259 = vld [vmem:[%s254 + $0x10] sm:$0xf]
      %v260 = vld [vmem:[%s254 + $0x14] sm:$0x1]
      %v261 = vld [vmem:[%s254 + $0x18] sm:$0xf]
      %v262 = vld [vmem:[%s254 + $0x1c] sm:$0xf]
      %v263 = vld [vmem:[%s254 + $0x20] sm:$0x1]
      %v264 = vld [vmem:[%s254 + $0x24] sm:$0xf]
      %v265 = vld [vmem:[%s254 + $0x28] sm:$0xf]
      %v266 = vld [vmem:[%s254 + $0x2c] sm:$0x1]
      %v267 = vld [vmem:[%s254 + $0x30] sm:$0xf]
      %v268 = vld [vmem:[%s254 + $0x34] sm:$0xf]
      %v269 = vld [vmem:[%s254 + $0x38] sm:$0x1]
      %v270 = vld [vmem:[%s254 + $0x3c] sm:$0xf]
      %v271 = vld [vmem:[%s254 + $0x40] sm:$0xf]
      %v272 = vld [vmem:[%s254 + $0x44] sm:$0x1]
      %v273 = vld [vmem:[%s254 + $0x48] sm:$0xf]
      %v274 = vld [vmem:[%s254 + $0x4c] sm:$0xf]
      %v275 = vld [vmem:[%s254 + $0x50] sm:$0x1]
      %v276 = vld [vmem:[%s254 + $0x54] sm:$0xf]
      %v277 = vld [vmem:[%s254 + $0x58] sm:$0xf]
      %v278 = vld [vmem:[%s254 + $0x5c] sm:$0x1]
      %vm279 = vsmask.f32 3328
      %vm280 = vsmask.f32 7440
      %vm281 = vmor %vm279, %vm280
      %v283 = vshrl.u32 %v199, 16
      %v285 = vrot.slane %v283, 4
      %v286 = vshll.u32 %v199, 16
      %v288 = vrot.slane %v286, 5
      %v289 = vor.u32 %v285, %v288
      %v290 = vrot.slane %v289, 4
      %v292 = vshll.u32 %v200, 16
      %v294 = vrot.slane %v292, 5
      %v295 = vsel %vm281, %v290, %v294
      %v296 = vshrl.u32 %v200, 16
      %v298 = vrot.slane %v296, 4
      %v299 = vor.u32 %v298, %v294
      %v300 = vrot.slane %v299, 4
      %v302 = vshll.u32 %v201, 16
      %v304 = vrot.slane %v302, 5
      %v305 = vsel %vm281, %v300, %v304
      %v307 = vshrl.u32 %v202, 16
      %v309 = vrot.slane %v307, 4
      %v310 = vshll.u32 %v202, 16
      %v312 = vrot.slane %v310, 5
      %v313 = vor.u32 %v309, %v312
      %v314 = vrot.slane %v313, 4
      %v316 = vshll.u32 %v203, 16
      %v318 = vrot.slane %v316, 5
      %v319 = vsel %vm281, %v314, %v318
      %v320 = vshrl.u32 %v203, 16
      %v322 = vrot.slane %v320, 4
      %v323 = vor.u32 %v322, %v318
      %v324 = vrot.slane %v323, 4
      %v326 = vshll.u32 %v204, 16
      %v328 = vrot.slane %v326, 5
      %v329 = vsel %vm281, %v324, %v328
      %v331 = vshrl.u32 %v205, 16
      %v333 = vrot.slane %v331, 4
      %v334 = vshll.u32 %v205, 16
      %v336 = vrot.slane %v334, 5
      %v337 = vor.u32 %v333, %v336
      %v338 = vrot.slane %v337, 4
      %v340 = vshll.u32 %v206, 16
      %v342 = vrot.slane %v340, 5
      %v343 = vsel %vm281, %v338, %v342
      %v344 = vshrl.u32 %v206, 16
      %v346 = vrot.slane %v344, 4
      %v347 = vor.u32 %v346, %v342
      %v348 = vrot.slane %v347, 4
      %v350 = vshll.u32 %v207, 16
      %v352 = vrot.slane %v350, 5
      %v353 = vsel %vm281, %v348, %v352
      %v355 = vshrl.u32 %v208, 16
      %v357 = vrot.slane %v355, 4
      %v358 = vshll.u32 %v208, 16
      %v360 = vrot.slane %v358, 5
      %v361 = vor.u32 %v357, %v360
      %v362 = vrot.slane %v361, 4
      %v364 = vshll.u32 %v209, 16
      %v366 = vrot.slane %v364, 5
      %v367 = vsel %vm281, %v362, %v366
      %v368 = vshrl.u32 %v209, 16
      %v370 = vrot.slane %v368, 4
      %v371 = vor.u32 %v370, %v366
      %v372 = vrot.slane %v371, 4
      %v374 = vshll.u32 %v210, 16
      %v376 = vrot.slane %v374, 5
      %v377 = vsel %vm281, %v372, %v376
      %v379 = vshrl.u32 %v211, 16
      %v381 = vrot.slane %v379, 4
      %v382 = vshll.u32 %v211, 16
      %v384 = vrot.slane %v382, 5
      %v385 = vor.u32 %v381, %v384
      %v386 = vrot.slane %v385, 4
      %v388 = vshll.u32 %v212, 16
      %v390 = vrot.slane %v388, 5
      %v391 = vsel %vm281, %v386, %v390
      %v392 = vshrl.u32 %v212, 16
      %v394 = vrot.slane %v392, 4
      %v395 = vor.u32 %v394, %v390
      %v396 = vrot.slane %v395, 4
      %v398 = vshll.u32 %v213, 16
      %v400 = vrot.slane %v398, 5
      %v401 = vsel %vm281, %v396, %v400
      %v403 = vshrl.u32 %v214, 16
      %v405 = vrot.slane %v403, 4
      %v406 = vshll.u32 %v214, 16
      %v408 = vrot.slane %v406, 5
      %v409 = vor.u32 %v405, %v408
      %v410 = vrot.slane %v409, 4
      %v412 = vshll.u32 %v215, 16
      %v414 = vrot.slane %v412, 5
      %v415 = vsel %vm281, %v410, %v414
      %v416 = vshrl.u32 %v215, 16
      %v418 = vrot.slane %v416, 4
      %v419 = vor.u32 %v418, %v414
      %v420 = vrot.slane %v419, 4
      %v422 = vshll.u32 %v216, 16
      %v424 = vrot.slane %v422, 5
      %v425 = vsel %vm281, %v420, %v424
      %v427 = vshrl.u32 %v217, 16
      %v429 = vrot.slane %v427, 4
      %v430 = vshll.u32 %v217, 16
      %v432 = vrot.slane %v430, 5
      %v433 = vor.u32 %v429, %v432
      %v434 = vrot.slane %v433, 4
      %v436 = vshll.u32 %v218, 16
      %v438 = vrot.slane %v436, 5
      %v439 = vsel %vm281, %v434, %v438
      %v440 = vshrl.u32 %v218, 16
      %v442 = vrot.slane %v440, 4
      %v443 = vor.u32 %v442, %v438
      %v444 = vrot.slane %v443, 4
      %v446 = vshll.u32 %v219, 16
      %v448 = vrot.slane %v446, 5
      %v449 = vsel %vm281, %v444, %v448
      %v451 = vshrl.u32 %v220, 16
      %v453 = vrot.slane %v451, 4
      %v454 = vshll.u32 %v220, 16
      %v456 = vrot.slane %v454, 5
      %v457 = vor.u32 %v453, %v456
      %v458 = vrot.slane %v457, 4
      %v460 = vshll.u32 %v221, 16
      %v462 = vrot.slane %v460, 5
      %v463 = vsel %vm281, %v458, %v462
      %v464 = vshrl.u32 %v221, 16
      %v466 = vrot.slane %v464, 4
      %v467 = vor.u32 %v466, %v462
      %v468 = vrot.slane %v467, 4
      %v470 = vshll.u32 %v222, 16
      %v472 = vrot.slane %v470, 5
      %v473 = vsel %vm281, %v468, %v472
      %vm498 = vcmask 1042432
      %vm499 = vcmask 1046532
      %vm500 = vmor %vm498, %vm499
      %v501 = vrot.slane %v199, 5
      %v502 = vrot.slane %v501, 4
      %v503 = vrot.slane %v200, 5
      %v504 = vsel %vm500, %v502, %v503
      %v505 = vrot.slane %v503, 4
      %v506 = vrot.slane %v201, 5
      %v507 = vsel %vm500, %v505, %v506
      %v508 = vrot.slane %v202, 5
      %v509 = vrot.slane %v508, 4
      %v510 = vrot.slane %v203, 5
      %v511 = vsel %vm500, %v509, %v510
      %v512 = vrot.slane %v510, 4
      %v513 = vrot.slane %v204, 5
      %v514 = vsel %vm500, %v512, %v513
      %v515 = vrot.slane %v205, 5
      %v516 = vrot.slane %v515, 4
      %v517 = vrot.slane %v206, 5
      %v518 = vsel %vm500, %v516, %v517
      %v519 = vrot.slane %v517, 4
      %v520 = vrot.slane %v207, 5
      %v521 = vsel %vm500, %v519, %v520
      %v522 = vrot.slane %v208, 5
      %v523 = vrot.slane %v522, 4
      %v524 = vrot.slane %v209, 5
      %v525 = vsel %vm500, %v523, %v524
      %v526 = vrot.slane %v524, 4
      %v527 = vrot.slane %v210, 5
      %v528 = vsel %vm500, %v526, %v527
      %v529 = vrot.slane %v211, 5
      %v530 = vrot.slane %v529, 4
      %v531 = vrot.slane %v212, 5
      %v532 = vsel %vm500, %v530, %v531
      %v533 = vrot.slane %v531, 4
      %v534 = vrot.slane %v213, 5
      %v535 = vsel %vm500, %v533, %v534
      %v536 = vrot.slane %v214, 5
      %v537 = vrot.slane %v536, 4
      %v538 = vrot.slane %v215, 5
      %v539 = vsel %vm500, %v537, %v538
      %v540 = vrot.slane %v538, 4
      %v541 = vrot.slane %v216, 5
      %v542 = vsel %vm500, %v540, %v541
      %v543 = vrot.slane %v217, 5
      %v544 = vrot.slane %v543, 4
      %v545 = vrot.slane %v218, 5
      %v546 = vsel %vm500, %v544, %v545
      %v547 = vrot.slane %v545, 4
      %v548 = vrot.slane %v219, 5
      %v549 = vsel %vm500, %v547, %v548
      %v550 = vrot.slane %v220, 5
      %v551 = vrot.slane %v550, 4
      %v552 = vrot.slane %v221, 5
      %v553 = vsel %vm500, %v551, %v552
      %v554 = vrot.slane %v552, 4
      %v555 = vrot.slane %v222, 5
      %v556 = vsel %vm500, %v554, %v555
      %v558 = vshrl.u32 %v227, 16
      %v560 = vrot.slane %v558, 4
      %v561 = vshll.u32 %v227, 16
      %v563 = vrot.slane %v561, 5
      %v564 = vor.u32 %v560, %v563
      %v565 = vrot.slane %v564, 4
      %v567 = vshll.u32 %v228, 16
      %v569 = vrot.slane %v567, 5
      %v570 = vsel %vm281, %v565, %v569
      %v571 = vshrl.u32 %v228, 16
      %v573 = vrot.slane %v571, 4
      %v574 = vor.u32 %v573, %v569
      %v575 = vrot.slane %v574, 4
      %v577 = vshll.u32 %v229, 16
      %v579 = vrot.slane %v577, 5
      %v580 = vsel %vm281, %v575, %v579
      %v582 = vshrl.u32 %v230, 16
      %v584 = vrot.slane %v582, 4
      %v585 = vshll.u32 %v230, 16
      %v587 = vrot.slane %v585, 5
      %v588 = vor.u32 %v584, %v587
      %v589 = vrot.slane %v588, 4
      %v591 = vshll.u32 %v231, 16
      %v593 = vrot.slane %v591, 5
      %v594 = vsel %vm281, %v589, %v593
      %v595 = vshrl.u32 %v231, 16
      %v597 = vrot.slane %v595, 4
      %v598 = vor.u32 %v597, %v593
      %v599 = vrot.slane %v598, 4
      %v601 = vshll.u32 %v232, 16
      %v603 = vrot.slane %v601, 5
      %v604 = vsel %vm281, %v599, %v603
      %v606 = vshrl.u32 %v233, 16
      %v608 = vrot.slane %v606, 4
      %v609 = vshll.u32 %v233, 16
      %v611 = vrot.slane %v609, 5
      %v612 = vor.u32 %v608, %v611
      %v613 = vrot.slane %v612, 4
      %v615 = vshll.u32 %v234, 16
      %v617 = vrot.slane %v615, 5
      %v618 = vsel %vm281, %v613, %v617
      %v619 = vshrl.u32 %v234, 16
      %v621 = vrot.slane %v619, 4
      %v622 = vor.u32 %v621, %v617
      %v623 = vrot.slane %v622, 4
      %v625 = vshll.u32 %v235, 16
      %v627 = vrot.slane %v625, 5
      %v628 = vsel %vm281, %v623, %v627
      %v630 = vshrl.u32 %v236, 16
      %v632 = vrot.slane %v630, 4
      %v633 = vshll.u32 %v236, 16
      %v635 = vrot.slane %v633, 5
      %v636 = vor.u32 %v632, %v635
      %v637 = vrot.slane %v636, 4
      %v639 = vshll.u32 %v237, 16
      %v641 = vrot.slane %v639, 5
      %v642 = vsel %vm281, %v637, %v641
      %v643 = vshrl.u32 %v237, 16
      %v645 = vrot.slane %v643, 4
      %v646 = vor.u32 %v645, %v641
      %v647 = vrot.slane %v646, 4
      %v649 = vshll.u32 %v238, 16
      %v651 = vrot.slane %v649, 5
      %v652 = vsel %vm281, %v647, %v651
      %v654 = vshrl.u32 %v239, 16
      %v656 = vrot.slane %v654, 4
      %v657 = vshll.u32 %v239, 16
      %v659 = vrot.slane %v657, 5
      %v660 = vor.u32 %v656, %v659
      %v661 = vrot.slane %v660, 4
      %v663 = vshll.u32 %v240, 16
      %v665 = vrot.slane %v663, 5
      %v666 = vsel %vm281, %v661, %v665
      %v667 = vshrl.u32 %v240, 16
      %v669 = vrot.slane %v667, 4
      %v670 = vor.u32 %v669, %v665
      %v671 = vrot.slane %v670, 4
      %v673 = vshll.u32 %v241, 16
      %v675 = vrot.slane %v673, 5
      %v676 = vsel %vm281, %v671, %v675
      %v678 = vshrl.u32 %v242, 16
      %v680 = vrot.slane %v678, 4
      %v681 = vshll.u32 %v242, 16
      %v683 = vrot.slane %v681, 5
      %v684 = vor.u32 %v680, %v683
      %v685 = vrot.slane %v684, 4
      %v687 = vshll.u32 %v243, 16
      %v689 = vrot.slane %v687, 5
      %v690 = vsel %vm281, %v685, %v689
      %v691 = vshrl.u32 %v243, 16
      %v693 = vrot.slane %v691, 4
      %v694 = vor.u32 %v693, %v689
      %v695 = vrot.slane %v694, 4
      %v697 = vshll.u32 %v244, 16
      %v699 = vrot.slane %v697, 5
      %v700 = vsel %vm281, %v695, %v699
      %v702 = vshrl.u32 %v245, 16
      %v704 = vrot.slane %v702, 4
      %v705 = vshll.u32 %v245, 16
      %v707 = vrot.slane %v705, 5
      %v708 = vor.u32 %v704, %v707
      %v709 = vrot.slane %v708, 4
      %v711 = vshll.u32 %v246, 16
      %v713 = vrot.slane %v711, 5
      %v714 = vsel %vm281, %v709, %v713
      %v715 = vshrl.u32 %v246, 16
      %v717 = vrot.slane %v715, 4
      %v718 = vor.u32 %v717, %v713
      %v719 = vrot.slane %v718, 4
      %v721 = vshll.u32 %v247, 16
      %v723 = vrot.slane %v721, 5
      %v724 = vsel %vm281, %v719, %v723
      %v726 = vshrl.u32 %v248, 16
      %v728 = vrot.slane %v726, 4
      %v729 = vshll.u32 %v248, 16
      %v731 = vrot.slane %v729, 5
      %v732 = vor.u32 %v728, %v731
      %v733 = vrot.slane %v732, 4
      %v735 = vshll.u32 %v249, 16
      %v737 = vrot.slane %v735, 5
      %v738 = vsel %vm281, %v733, %v737
      %v739 = vshrl.u32 %v249, 16
      %v741 = vrot.slane %v739, 4
      %v742 = vor.u32 %v741, %v737
      %v743 = vrot.slane %v742, 4
      %v745 = vshll.u32 %v250, 16
      %v747 = vrot.slane %v745, 5
      %v748 = vsel %vm281, %v743, %v747
      %v773 = vrot.slane %v227, 5
      %v774 = vrot.slane %v773, 4
      %v775 = vrot.slane %v228, 5
      %v776 = vsel %vm500, %v774, %v775
      %v777 = vrot.slane %v775, 4
      %v778 = vrot.slane %v229, 5
      %v779 = vsel %vm500, %v777, %v778
      %v780 = vrot.slane %v230, 5
      %v781 = vrot.slane %v780, 4
      %v782 = vrot.slane %v231, 5
      %v783 = vsel %vm500, %v781, %v782
      %v784 = vrot.slane %v782, 4
      %v785 = vrot.slane %v232, 5
      %v786 = vsel %vm500, %v784, %v785
      %v787 = vrot.slane %v233, 5
      %v788 = vrot.slane %v787, 4
      %v789 = vrot.slane %v234, 5
      %v790 = vsel %vm500, %v788, %v789
      %v791 = vrot.slane %v789, 4
      %v792 = vrot.slane %v235, 5
      %v793 = vsel %vm500, %v791, %v792
      %v794 = vrot.slane %v236, 5
      %v795 = vrot.slane %v794, 4
      %v796 = vrot.slane %v237, 5
      %v797 = vsel %vm500, %v795, %v796
      %v798 = vrot.slane %v796, 4
      %v799 = vrot.slane %v238, 5
      %v800 = vsel %vm500, %v798, %v799
      %v801 = vrot.slane %v239, 5
      %v802 = vrot.slane %v801, 4
      %v803 = vrot.slane %v240, 5
      %v804 = vsel %vm500, %v802, %v803
      %v805 = vrot.slane %v803, 4
      %v806 = vrot.slane %v241, 5
      %v807 = vsel %vm500, %v805, %v806
      %v808 = vrot.slane %v242, 5
      %v809 = vrot.slane %v808, 4
      %v810 = vrot.slane %v243, 5
      %v811 = vsel %vm500, %v809, %v810
      %v812 = vrot.slane %v810, 4
      %v813 = vrot.slane %v244, 5
      %v814 = vsel %vm500, %v812, %v813
      %v815 = vrot.slane %v245, 5
      %v816 = vrot.slane %v815, 4
      %v817 = vrot.slane %v246, 5
      %v818 = vsel %vm500, %v816, %v817
      %v819 = vrot.slane %v817, 4
      %v820 = vrot.slane %v247, 5
      %v821 = vsel %vm500, %v819, %v820
      %v822 = vrot.slane %v248, 5
      %v823 = vrot.slane %v822, 4
      %v824 = vrot.slane %v249, 5
      %v825 = vsel %vm500, %v823, %v824
      %v826 = vrot.slane %v824, 4
      %v827 = vrot.slane %v250, 5
      %v828 = vsel %vm500, %v826, %v827
      %v830 = vshrl.u32 %v255, 16
      %v832 = vrot.slane %v830, 4
      %v833 = vshll.u32 %v255, 16
      %v835 = vrot.slane %v833, 5
      %v836 = vor.u32 %v832, %v835
      %v837 = vrot.slane %v836, 4
      %v839 = vshll.u32 %v256, 16
      %v841 = vrot.slane %v839, 5
      %v842 = vsel %vm281, %v837, %v841
      %v843 = vshrl.u32 %v256, 16
      %v845 = vrot.slane %v843, 4
      %v846 = vor.u32 %v845, %v841
      %v847 = vrot.slane %v846, 4
      %v849 = vshll.u32 %v257, 16
      %v851 = vrot.slane %v849, 5
      %v852 = vsel %vm281, %v847, %v851
      %v854 = vshrl.u32 %v258, 16
      %v856 = vrot.slane %v854, 4
      %v857 = vshll.u32 %v258, 16
      %v859 = vrot.slane %v857, 5
      %v860 = vor.u32 %v856, %v859
      %v861 = vrot.slane %v860, 4
      %v863 = vshll.u32 %v259, 16
      %v865 = vrot.slane %v863, 5
      %v866 = vsel %vm281, %v861, %v865
      %v867 = vshrl.u32 %v259, 16
      %v869 = vrot.slane %v867, 4
      %v870 = vor.u32 %v869, %v865
      %v871 = vrot.slane %v870, 4
      %v873 = vshll.u32 %v260, 16
      %v875 = vrot.slane %v873, 5
      %v876 = vsel %vm281, %v871, %v875
      %v878 = vshrl.u32 %v261, 16
      %v880 = vrot.slane %v878, 4
      %v881 = vshll.u32 %v261, 16
      %v883 = vrot.slane %v881, 5
      %v884 = vor.u32 %v880, %v883
      %v885 = vrot.slane %v884, 4
      %v887 = vshll.u32 %v262, 16
      %v889 = vrot.slane %v887, 5
      %v890 = vsel %vm281, %v885, %v889
      %v891 = vshrl.u32 %v262, 16
      %v893 = vrot.slane %v891, 4
      %v894 = vor.u32 %v893, %v889
      %v895 = vrot.slane %v894, 4
      %v897 = vshll.u32 %v263, 16
      %v899 = vrot.slane %v897, 5
      %v900 = vsel %vm281, %v895, %v899
      %v902 = vshrl.u32 %v264, 16
      %v904 = vrot.slane %v902, 4
      %v905 = vshll.u32 %v264, 16
      %v907 = vrot.slane %v905, 5
      %v908 = vor.u32 %v904, %v907
      %v909 = vrot.slane %v908, 4
      %v911 = vshll.u32 %v265, 16
      %v913 = vrot.slane %v911, 5
      %v914 = vsel %vm281, %v909, %v913
      %v915 = vshrl.u32 %v265, 16
      %v917 = vrot.slane %v915, 4
      %v918 = vor.u32 %v917, %v913
      %v919 = vrot.slane %v918, 4
      %v921 = vshll.u32 %v266, 16
      %v923 = vrot.slane %v921, 5
      %v924 = vsel %vm281, %v919, %v923
      %v926 = vshrl.u32 %v267, 16
      %v928 = vrot.slane %v926, 4
      %v929 = vshll.u32 %v267, 16
      %v931 = vrot.slane %v929, 5
      %v932 = vor.u32 %v928, %v931
      %v933 = vrot.slane %v932, 4
      %v935 = vshll.u32 %v268, 16
      %v937 = vrot.slane %v935, 5
      %v938 = vsel %vm281, %v933, %v937
      %v939 = vshrl.u32 %v268, 16
      %v941 = vrot.slane %v939, 4
      %v942 = vor.u32 %v941, %v937
      %v943 = vrot.slane %v942, 4
      %v945 = vshll.u32 %v269, 16
      %v947 = vrot.slane %v945, 5
      %v948 = vsel %vm281, %v943, %v947
      %v950 = vshrl.u32 %v270, 16
      %v952 = vrot.slane %v950, 4
      %v953 = vshll.u32 %v270, 16
      %v955 = vrot.slane %v953, 5
      %v956 = vor.u32 %v952, %v955
      %v957 = vrot.slane %v956, 4
      %v959 = vshll.u32 %v271, 16
      %v961 = vrot.slane %v959, 5
      %v962 = vsel %vm281, %v957, %v961
      %v963 = vshrl.u32 %v271, 16
      %v965 = vrot.slane %v963, 4
      %v966 = vor.u32 %v965, %v961
      %v967 = vrot.slane %v966, 4
      %v969 = vshll.u32 %v272, 16
      %v971 = vrot.slane %v969, 5
      %v972 = vsel %vm281, %v967, %v971
      %v974 = vshrl.u32 %v273, 16
      %v976 = vrot.slane %v974, 4
      %v977 = vshll.u32 %v273, 16
      %v979 = vrot.slane %v977, 5
      %v980 = vor.u32 %v976, %v979
      %v981 = vrot.slane %v980, 4
      %v983 = vshll.u32 %v274, 16
      %v985 = vrot.slane %v983, 5
      %v986 = vsel %vm281, %v981, %v985
      %v987 = vshrl.u32 %v274, 16
      %v989 = vrot.slane %v987, 4
      %v990 = vor.u32 %v989, %v985
      %v991 = vrot.slane %v990, 4
      %v993 = vshll.u32 %v275, 16
      %v995 = vrot.slane %v993, 5
      %v996 = vsel %vm281, %v991, %v995
      %v998 = vshrl.u32 %v276, 16
      %v1000 = vrot.slane %v998, 4
      %v1001 = vshll.u32 %v276, 16
      %v1003 = vrot.slane %v1001, 5
      %v1004 = vor.u32 %v1000, %v1003
      %v1005 = vrot.slane %v1004, 4
      %v1007 = vshll.u32 %v277, 16
      %v1009 = vrot.slane %v1007, 5
      %v1010 = vsel %vm281, %v1005, %v1009
      %v1011 = vshrl.u32 %v277, 16
      %v1013 = vrot.slane %v1011, 4
      %v1014 = vor.u32 %v1013, %v1009
      %v1015 = vrot.slane %v1014, 4
      %v1017 = vshll.u32 %v278, 16
      %v1019 = vrot.slane %v1017, 5
      %v1020 = vsel %vm281, %v1015, %v1019
      %v1045 = vrot.slane %v255, 5
      %v1046 = vrot.slane %v1045, 4
      %v1047 = vrot.slane %v256, 5
      %v1048 = vsel %vm500, %v1046, %v1047
      %v1049 = vrot.slane %v1047, 4
      %v1050 = vrot.slane %v257, 5
      %v1051 = vsel %vm500, %v1049, %v1050
      %v1052 = vrot.slane %v258, 5
      %v1053 = vrot.slane %v1052, 4
      %v1054 = vrot.slane %v259, 5
      %v1055 = vsel %vm500, %v1053, %v1054
      %v1056 = vrot.slane %v1054, 4
      %v1057 = vrot.slane %v260, 5
      %v1058 = vsel %vm500, %v1056, %v1057
      %v1059 = vrot.slane %v261, 5
      %v1060 = vrot.slane %v1059, 4
      %v1061 = vrot.slane %v262, 5
      %v1062 = vsel %vm500, %v1060, %v1061
      %v1063 = vrot.slane %v1061, 4
      %v1064 = vrot.slane %v263, 5
      %v1065 = vsel %vm500, %v1063, %v1064
      %v1066 = vrot.slane %v264, 5
      %v1067 = vrot.slane %v1066, 4
      %v1068 = vrot.slane %v265, 5
      %v1069 = vsel %vm500, %v1067, %v1068
      %v1070 = vrot.slane %v1068, 4
      %v1071 = vrot.slane %v266, 5
      %v1072 = vsel %vm500, %v1070, %v1071
      %v1073 = vrot.slane %v267, 5
      %v1074 = vrot.slane %v1073, 4
      %v1075 = vrot.slane %v268, 5
      %v1076 = vsel %vm500, %v1074, %v1075
      %v1077 = vrot.slane %v1075, 4
      %v1078 = vrot.slane %v269, 5
      %v1079 = vsel %vm500, %v1077, %v1078
      %v1080 = vrot.slane %v270, 5
      %v1081 = vrot.slane %v1080, 4
      %v1082 = vrot.slane %v271, 5
      %v1083 = vsel %vm500, %v1081, %v1082
      %v1084 = vrot.slane %v1082, 4
      %v1085 = vrot.slane %v272, 5
      %v1086 = vsel %vm500, %v1084, %v1085
      %v1087 = vrot.slane %v273, 5
      %v1088 = vrot.slane %v1087, 4
      %v1089 = vrot.slane %v274, 5
      %v1090 = vsel %vm500, %v1088, %v1089
      %v1091 = vrot.slane %v1089, 4
      %v1092 = vrot.slane %v275, 5
      %v1093 = vsel %vm500, %v1091, %v1092
      %v1094 = vrot.slane %v276, 5
      %v1095 = vrot.slane %v1094, 4
      %v1096 = vrot.slane %v277, 5
      %v1097 = vsel %vm500, %v1095, %v1096
      %v1098 = vrot.slane %v1096, 4
      %v1099 = vrot.slane %v278, 5
      %v1100 = vsel %vm500, %v1098, %v1099
      %v1101 = vunpack.c.l.b16 %v199
      %v1102 = vunpack.c.l.b16 %v200
      %v1103 = vunpack.c.l.b16 %v202
      %v1104 = vunpack.c.l.b16 %v203
      %v1105 = vunpack.c.l.b16 %v205
      %v1106 = vunpack.c.l.b16 %v206
      %v1107 = vunpack.c.l.b16 %v208
      %v1108 = vunpack.c.l.b16 %v209
      %v1109 = vunpack.c.l.b16 %v211
      %v1110 = vunpack.c.l.b16 %v212
      %v1111 = vunpack.c.l.b16 %v214
      %v1112 = vunpack.c.l.b16 %v215
      %v1113 = vunpack.c.l.b16 %v217
      %v1114 = vunpack.c.l.b16 %v218
      %v1115 = vunpack.c.l.b16 %v220
      %v1116 = vunpack.c.l.b16 %v221
      %v1117 = vpack.c.b16 %v1102, %v1101
      %v1118 = vpack.c.b16 %v1104, %v1103
      %v1119 = vpack.c.b16 %v1106, %v1105
      %v1120 = vpack.c.b16 %v1108, %v1107
      %v1121 = vpack.c.b16 %v1110, %v1109
      %v1122 = vpack.c.b16 %v1112, %v1111
      %v1123 = vpack.c.b16 %v1114, %v1113
      %v1124 = vpack.c.b16 %v1116, %v1115
      %v1125 = vunpack.c.l.b16 %v295
      %v1126 = vunpack.c.l.b16 %v305
      %v1127 = vunpack.c.l.b16 %v319
      %v1128 = vunpack.c.l.b16 %v329
      %v1129 = vunpack.c.l.b16 %v343
      %v1130 = vunpack.c.l.b16 %v353
      %v1131 = vunpack.c.l.b16 %v367
      %v1132 = vunpack.c.l.b16 %v377
      %v1133 = vunpack.c.l.b16 %v391
      %v1134 = vunpack.c.l.b16 %v401
      %v1135 = vunpack.c.l.b16 %v415
      %v1136 = vunpack.c.l.b16 %v425
      %v1137 = vunpack.c.l.b16 %v439
      %v1138 = vunpack.c.l.b16 %v449
      %v1139 = vunpack.c.l.b16 %v463
      %v1140 = vunpack.c.l.b16 %v473
      %v1141 = vpack.c.b16 %v1126, %v1125
      %v1142 = vpack.c.b16 %v1128, %v1127
      %v1143 = vpack.c.b16 %v1130, %v1129
      %v1144 = vpack.c.b16 %v1132, %v1131
      %v1145 = vpack.c.b16 %v1134, %v1133
      %v1146 = vpack.c.b16 %v1136, %v1135
      %v1147 = vpack.c.b16 %v1138, %v1137
      %v1148 = vpack.c.b16 %v1140, %v1139
      %1149 = vrot.lane.b32.xlu0 %v1141, 4
      %v1150 = vpop.permute.xlu0 %1149
      %1151 = vrot.lane.b32.xlu0 %v1142, 4
      %v1152 = vpop.permute.xlu0 %1151
      %1153 = vrot.lane.b32.xlu0 %v1143, 4
      %v1154 = vpop.permute.xlu0 %1153
      %1155 = vrot.lane.b32.xlu0 %v1144, 4
      %v1156 = vpop.permute.xlu0 %1155
      %1157 = vrot.lane.b32.xlu0 %v1145, 4
      %v1158 = vpop.permute.xlu0 %1157
      %1159 = vrot.lane.b32.xlu0 %v1146, 4
      %v1160 = vpop.permute.xlu0 %1159
      %1161 = vrot.lane.b32.xlu0 %v1147, 4
      %v1162 = vpop.permute.xlu0 %1161
      %1163 = vrot.lane.b32.xlu0 %v1148, 4
      %v1164 = vpop.permute.xlu0 %1163
      %v1165 = vunpack.c.l.b16 %v227
      %v1166 = vunpack.c.l.b16 %v228
      %v1167 = vunpack.c.l.b16 %v230
      %v1168 = vunpack.c.l.b16 %v231
      %v1169 = vunpack.c.l.b16 %v233
      %v1170 = vunpack.c.l.b16 %v234
      %v1171 = vunpack.c.l.b16 %v236
      %v1172 = vunpack.c.l.b16 %v237
      %v1173 = vunpack.c.l.b16 %v239
      %v1174 = vunpack.c.l.b16 %v240
      %v1175 = vunpack.c.l.b16 %v242
      %v1176 = vunpack.c.l.b16 %v243
      %v1177 = vunpack.c.l.b16 %v245
      %v1178 = vunpack.c.l.b16 %v246
      %v1179 = vunpack.c.l.b16 %v248
      %v1180 = vunpack.c.l.b16 %v249
      %v1181 = vpack.c.b16 %v1166, %v1165
      %v1182 = vpack.c.b16 %v1168, %v1167
      %v1183 = vpack.c.b16 %v1170, %v1169
      %v1184 = vpack.c.b16 %v1172, %v1171
      %v1185 = vpack.c.b16 %v1174, %v1173
      %v1186 = vpack.c.b16 %v1176, %v1175
      %v1187 = vpack.c.b16 %v1178, %v1177
      %v1188 = vpack.c.b16 %v1180, %v1179
      %1189 = vrot.lane.b32.xlu0 %v1181, 8
      %v1190 = vpop.permute.xlu0 %1189
      %1191 = vrot.lane.b32.xlu0 %v1182, 8
      %v1192 = vpop.permute.xlu0 %1191
      %1193 = vrot.lane.b32.xlu0 %v1183, 8
      %v1194 = vpop.permute.xlu0 %1193
      %1195 = vrot.lane.b32.xlu0 %v1184, 8
      %v1196 = vpop.permute.xlu0 %1195
      %1197 = vrot.lane.b32.xlu0 %v1185, 8
      %v1198 = vpop.permute.xlu0 %1197
      %1199 = vrot.lane.b32.xlu0 %v1186, 8
      %v1200 = vpop.permute.xlu0 %1199
      %1201 = vrot.lane.b32.xlu0 %v1187, 8
      %v1202 = vpop.permute.xlu0 %1201
      %1203 = vrot.lane.b32.xlu0 %v1188, 8
      %v1204 = vpop.permute.xlu0 %1203
      %v1205 = vunpack.c.l.b16 %v570
      %v1206 = vunpack.c.l.b16 %v580
      %v1207 = vunpack.c.l.b16 %v594
      %v1208 = vunpack.c.l.b16 %v604
      %v1209 = vunpack.c.l.b16 %v618
      %v1210 = vunpack.c.l.b16 %v628
      %v1211 = vunpack.c.l.b16 %v642
      %v1212 = vunpack.c.l.b16 %v652
      %v1213 = vunpack.c.l.b16 %v666
      %v1214 = vunpack.c.l.b16 %v676
      %v1215 = vunpack.c.l.b16 %v690
      %v1216 = vunpack.c.l.b16 %v700
      %v1217 = vunpack.c.l.b16 %v714
      %v1218 = vunpack.c.l.b16 %v724
      %v1219 = vunpack.c.l.b16 %v738
      %v1220 = vunpack.c.l.b16 %v748
      %v1221 = vpack.c.b16 %v1206, %v1205
      %v1222 = vpack.c.b16 %v1208, %v1207
      %v1223 = vpack.c.b16 %v1210, %v1209
      %v1224 = vpack.c.b16 %v1212, %v1211
      %v1225 = vpack.c.b16 %v1214, %v1213
      %v1226 = vpack.c.b16 %v1216, %v1215
      %v1227 = vpack.c.b16 %v1218, %v1217
      %v1228 = vpack.c.b16 %v1220, %v1219
      %1229 = vrot.lane.b32.xlu0 %v1221, 12
      %v1230 = vpop.permute.xlu0 %1229
      %1231 = vrot.lane.b32.xlu0 %v1222, 12
      %v1232 = vpop.permute.xlu0 %1231
      %1233 = vrot.lane.b32.xlu0 %v1223, 12
      %v1234 = vpop.permute.xlu0 %1233
      %1235 = vrot.lane.b32.xlu0 %v1224, 12
      %v1236 = vpop.permute.xlu0 %1235
      %1237 = vrot.lane.b32.xlu0 %v1225, 12
      %v1238 = vpop.permute.xlu0 %1237
      %1239 = vrot.lane.b32.xlu0 %v1226, 12
      %v1240 = vpop.permute.xlu0 %1239
      %1241 = vrot.lane.b32.xlu0 %v1227, 12
      %v1242 = vpop.permute.xlu0 %1241
      %1243 = vrot.lane.b32.xlu0 %v1228, 12
      %v1244 = vpop.permute.xlu0 %1243
      %vm1245 = vcmask 31744
      %v1248 = vsel %vm1245, %v1117, %v1150
      %v1251 = vsel %vm1245, %v1118, %v1152
      %v1254 = vsel %vm1245, %v1119, %v1154
      %v1257 = vsel %vm1245, %v1120, %v1156
      %v1260 = vsel %vm1245, %v1121, %v1158
      %v1263 = vsel %vm1245, %v1122, %v1160
      %v1266 = vsel %vm1245, %v1123, %v1162
      %v1269 = vsel %vm1245, %v1124, %v1164
      %vm1270 = vcmask 64512
      %v1272 = vsel %vm1270, %v1248, %v1190
      %v1274 = vsel %vm1270, %v1251, %v1192
      %v1276 = vsel %vm1270, %v1254, %v1194
      %v1278 = vsel %vm1270, %v1257, %v1196
      %v1280 = vsel %vm1270, %v1260, %v1198
      %v1282 = vsel %vm1270, %v1263, %v1200
      %v1284 = vsel %vm1270, %v1266, %v1202
      %v1286 = vsel %vm1270, %v1269, %v1204
      %vm1287 = vcmask 97280
      %v1289 = vsel %vm1287, %v1272, %v1230
      %v1291 = vsel %vm1287, %v1274, %v1232
      %v1293 = vsel %vm1287, %v1276, %v1234
      %v1295 = vsel %vm1287, %v1278, %v1236
      %v1297 = vsel %vm1287, %v1280, %v1238
      %v1299 = vsel %vm1287, %v1282, %v1240
      %v1301 = vsel %vm1287, %v1284, %v1242
      %v1303 = vsel %vm1287, %v1286, %v1244
      %v1304 = vld [vmem:[%s1] sm:$0xf]
      %v1305 = vld [vmem:[%s1 + $0x4] sm:$0xf]
      %v1308 = vunpack.c.l.b16 %v1304
      %v1309 = vunpack.c.l.b16 %v1305
      %v1310 = vpack.c.b16 %v1309, %v1308
      %vm1312 = vcmask 130048
      %v1313 = vsel %vm1312, %v1289, 0
      %v1315 = vsel %vm1312, %v1291, 0
      %v1317 = vsel %vm1312, %v1293, 0
      %v1319 = vsel %vm1312, %v1295, 0
      %v1321 = vsel %vm1312, %v1297, 0
      %v1323 = vsel %vm1312, %v1299, 0
      %v1325 = vsel %vm1312, %v1301, 0
      %v1327 = vsel %vm1312, %v1303, 0
      %1329 = vmatprep.subr.bf16.mxu0 0
      %1330 = vmatpush1.bf16.msra.mxu0 %v1310
      %1331 = vmatprep.subr.bf16.mxu0 0
      %1332 = vmatpush1.bf16.msra.mxu0 0
      %1333 = vmatprep.subr.bf16.mxu0 0
      %1334 = vmatpush1.bf16.msra.mxu0 0
      %1335 = vmatprep.subr.bf16.mxu0 0
      %1336 = vmatpush1.bf16.msra.mxu0 0
      %1337 = vmatprep.subr.bf16.mxu0 0
      %1338 = vmatpush1.bf16.msra.mxu0 0
      %1339 = vmatprep.subr.bf16.mxu0 0
      %1340 = vmatpush1.bf16.msra.mxu0 0
      %1341 = vmatprep.subr.bf16.mxu0 0
      %1342 = vmatpush1.bf16.msra.mxu0 0
      %1343 = vmatprep.subr.bf16.mxu0 0
      %1344 = vmatpush1.bf16.msra.mxu0 0
      %1345 = vmatprep.subr.bf16.mxu0 0
      %1346 = vmatpush1.bf16.msra.mxu0 0
      %1347 = vmatprep.subr.bf16.mxu0 0
      %1348 = vmatpush1.bf16.msra.mxu0 0
      %1349 = vmatprep.subr.bf16.mxu0 0
      %1350 = vmatpush1.bf16.msra.mxu0 0
      %1351 = vmatprep.subr.bf16.mxu0 0
      %1352 = vmatpush1.bf16.msra.mxu0 0
      %1353 = vmatprep.subr.bf16.mxu0 0
      %1354 = vmatpush1.bf16.msra.mxu0 0
      %1355 = vmatprep.subr.bf16.mxu0 0
      %1356 = vmatpush1.bf16.msra.mxu0 0
      %1357 = vmatprep.subr.bf16.mxu0 0
      %1358 = vmatpush1.bf16.msra.mxu0 0
      %1359 = vmatprep.subr.bf16.mxu0 0
      %1360 = vmatpush1.bf16.msra.mxu0 0
      %1361 = vmatprep.mubr.bf16.mxu0 0
      %1362 = vmatmul.mubr.bf16.gmra.mrb[0].mxu0 %v1313
      %v1363 = vpop.f32.mrb[0].mxu0
      %v1364 = vadd.f32 0.0, %v1363
      %v1365 = vpop.f32.mrb[0].mxu0
      %v1366 = vpop.f32.mrb[0].mxu0
      %v1367 = vadd.f32 0.0, %v1366
      %v1368 = vpop.f32.mrb[0].mxu0
      %1369 = vmatprep.mubr.bf16.mxu0 0
      %1370 = vmatmul.mubr.bf16.gmra.mrb[0].mxu0 %v1315
      %v1371 = vpop.f32.mrb[0].mxu0
      %v1372 = vadd.f32 0.0, %v1371
      %v1373 = vpop.f32.mrb[0].mxu0
      %v1374 = vpop.f32.mrb[0].mxu0
      %v1375 = vadd.f32 0.0, %v1374
      %v1376 = vpop.f32.mrb[0].mxu0
      %1377 = vmatprep.mubr.bf16.mxu0 0
      %1378 = vmatmul.mubr.bf16.gmra.mrb[0].mxu0 %v1317
      %v1379 = vpop.f32.mrb[0].mxu0
      %v1380 = vadd.f32 0.0, %v1379
      %v1381 = vpop.f32.mrb[0].mxu0
      %v1382 = vpop.f32.mrb[0].mxu0
      %v1383 = vadd.f32 0.0, %v1382
      %v1384 = vpop.f32.mrb[0].mxu0
      %1385 = vmatprep.mubr.bf16.mxu0 0
      %1386 = vmatmul.mubr.bf16.gmra.mrb[0].mxu0 %v1319
      %v1387 = vpop.f32.mrb[0].mxu0
      %v1388 = vadd.f32 0.0, %v1387
      %v1389 = vpop.f32.mrb[0].mxu0
      %v1390 = vpop.f32.mrb[0].mxu0
      %v1391 = vadd.f32 0.0, %v1390
      %v1392 = vpop.f32.mrb[0].mxu0
      %1393 = vmatprep.mubr.bf16.mxu0 0
      %1394 = vmatmul.mubr.bf16.gmra.mrb[0].mxu0 %v1321
      %v1395 = vpop.f32.mrb[0].mxu0
      %v1396 = vadd.f32 0.0, %v1395
      %v1397 = vpop.f32.mrb[0].mxu0
      %v1398 = vpop.f32.mrb[0].mxu0
      %v1399 = vadd.f32 0.0, %v1398
      %v1400 = vpop.f32.mrb[0].mxu0
      %1401 = vmatprep.mubr.bf16.mxu0 0
      %1402 = vmatmul.mubr.bf16.gmra.mrb[0].mxu0 %v1323
      %v1403 = vpop.f32.mrb[0].mxu0
      %v1404 = vadd.f32 0.0, %v1403
      %v1405 = vpop.f32.mrb[0].mxu0
      %v1406 = vpop.f32.mrb[0].mxu0
      %v1407 = vadd.f32 0.0, %v1406
      %v1408 = vpop.f32.mrb[0].mxu0
      %1409 = vmatprep.mubr.bf16.mxu0 0
      %1410 = vmatmul.mubr.bf16.gmra.mrb[0].mxu0 %v1325
      %v1411 = vpop.f32.mrb[0].mxu0
      %v1412 = vadd.f32 0.0, %v1411
      %v1413 = vpop.f32.mrb[0].mxu0
      %v1414 = vpop.f32.mrb[0].mxu0
      %v1415 = vadd.f32 0.0, %v1414
      %v1416 = vpop.f32.mrb[0].mxu0
      %1417 = vmatprep.mubr.bf16.mxu0 0
      %1418 = vmatmul.mubr.bf16.gmra.mrb[0].mxu0 %v1327
      %v1419 = vpop.f32.mrb[0].mxu0
      %v1420 = vadd.f32 0.0, %v1419
      %v1421 = vpop.f32.mrb[0].mxu0
      %v1422 = vpop.f32.mrb[0].mxu0
      %v1423 = vadd.f32 0.0, %v1422
      %v1424 = vpop.f32.mrb[0].mxu0
      %1425 = vdwg.mxu0
      %v1426 = vunpack.c.l.b16 %v504
      %v1427 = vunpack.c.l.b16 %v507
      %v1428 = vunpack.c.l.b16 %v511
      %v1429 = vunpack.c.l.b16 %v514
      %v1430 = vunpack.c.l.b16 %v518
      %v1431 = vunpack.c.l.b16 %v521
      %v1432 = vunpack.c.l.b16 %v525
      %v1433 = vunpack.c.l.b16 %v528
      %v1434 = vunpack.c.l.b16 %v532
      %v1435 = vunpack.c.l.b16 %v535
      %v1436 = vunpack.c.l.b16 %v539
      %v1437 = vunpack.c.l.b16 %v542
      %v1438 = vunpack.c.l.b16 %v546
      %v1439 = vunpack.c.l.b16 %v549
      %v1440 = vunpack.c.l.b16 %v553
      %v1441 = vunpack.c.l.b16 %v556
      %v1442 = vpack.c.b16 %v1427, %v1426
      %v1443 = vpack.c.b16 %v1429, %v1428
      %v1444 = vpack.c.b16 %v1431, %v1430
      %v1445 = vpack.c.b16 %v1433, %v1432
      %v1446 = vpack.c.b16 %v1435, %v1434
      %v1447 = vpack.c.b16 %v1437, %v1436
      %v1448 = vpack.c.b16 %v1439, %v1438
      %v1449 = vpack.c.b16 %v1441, %v1440
      %1450 = vrot.lane.b32.xlu0 %v1442, 4
      %v1451 = vpop.permute.xlu0 %1450
      %1452 = vrot.lane.b32.xlu0 %v1443, 4
      %v1453 = vpop.permute.xlu0 %1452
      %1454 = vrot.lane.b32.xlu0 %v1444, 4
      %v1455 = vpop.permute.xlu0 %1454
      %1456 = vrot.lane.b32.xlu0 %v1445, 4
      %v1457 = vpop.permute.xlu0 %1456
      %1458 = vrot.lane.b32.xlu0 %v1446, 4
      %v1459 = vpop.permute.xlu0 %1458
      %1460 = vrot.lane.b32.xlu0 %v1447, 4
      %v1461 = vpop.permute.xlu0 %1460
      %1462 = vrot.lane.b32.xlu0 %v1448, 4
      %v1463 = vpop.permute.xlu0 %1462
      %1464 = vrot.lane.b32.xlu0 %v1449, 4
      %v1465 = vpop.permute.xlu0 %1464
      %1466 = vrot.lane.b32.xlu0 %v1221, 8
      %v1467 = vpop.permute.xlu0 %1466
      %1468 = vrot.lane.b32.xlu0 %v1222, 8
      %v1469 = vpop.permute.xlu0 %1468
      %1470 = vrot.lane.b32.xlu0 %v1223, 8
      %v1471 = vpop.permute.xlu0 %1470
      %1472 = vrot.lane.b32.xlu0 %v1224, 8
      %v1473 = vpop.permute.xlu0 %1472
      %1474 = vrot.lane.b32.xlu0 %v1225, 8
      %v1475 = vpop.permute.xlu0 %1474
      %1476 = vrot.lane.b32.xlu0 %v1226, 8
      %v1477 = vpop.permute.xlu0 %1476
      %1478 = vrot.lane.b32.xlu0 %v1227, 8
      %v1479 = vpop.permute.xlu0 %1478
      %1480 = vrot.lane.b32.xlu0 %v1228, 8
      %v1481 = vpop.permute.xlu0 %1480
      %v1482 = vunpack.c.l.b16 %v776
      %v1483 = vunpack.c.l.b16 %v779
      %v1484 = vunpack.c.l.b16 %v783
      %v1485 = vunpack.c.l.b16 %v786
      %v1486 = vunpack.c.l.b16 %v790
      %v1487 = vunpack.c.l.b16 %v793
      %v1488 = vunpack.c.l.b16 %v797
      %v1489 = vunpack.c.l.b16 %v800
      %v1490 = vunpack.c.l.b16 %v804
      %v1491 = vunpack.c.l.b16 %v807
      %v1492 = vunpack.c.l.b16 %v811
      %v1493 = vunpack.c.l.b16 %v814
      %v1494 = vunpack.c.l.b16 %v818
      %v1495 = vunpack.c.l.b16 %v821
      %v1496 = vunpack.c.l.b16 %v825
      %v1497 = vunpack.c.l.b16 %v828
      %v1498 = vpack.c.b16 %v1483, %v1482
      %v1499 = vpack.c.b16 %v1485, %v1484
      %v1500 = vpack.c.b16 %v1487, %v1486
      %v1501 = vpack.c.b16 %v1489, %v1488
      %v1502 = vpack.c.b16 %v1491, %v1490
      %v1503 = vpack.c.b16 %v1493, %v1492
      %v1504 = vpack.c.b16 %v1495, %v1494
      %v1505 = vpack.c.b16 %v1497, %v1496
      %1506 = vrot.lane.b32.xlu0 %v1498, 12
      %v1507 = vpop.permute.xlu0 %1506
      %1508 = vrot.lane.b32.xlu0 %v1499, 12
      %v1509 = vpop.permute.xlu0 %1508
      %1510 = vrot.lane.b32.xlu0 %v1500, 12
      %v1511 = vpop.permute.xlu0 %1510
      %1512 = vrot.lane.b32.xlu0 %v1501, 12
      %v1513 = vpop.permute.xlu0 %1512
      %1514 = vrot.lane.b32.xlu0 %v1502, 12
      %v1515 = vpop.permute.xlu0 %1514
      %1516 = vrot.lane.b32.xlu0 %v1503, 12
      %v1517 = vpop.permute.xlu0 %1516
      %1518 = vrot.lane.b32.xlu0 %v1504, 12
      %v1519 = vpop.permute.xlu0 %1518
      %1520 = vrot.lane.b32.xlu0 %v1505, 12
      %v1521 = vpop.permute.xlu0 %1520
      %v1524 = vsel %vm1245, %v1141, %v1451
      %v1527 = vsel %vm1245, %v1142, %v1453
      %v1530 = vsel %vm1245, %v1143, %v1455
      %v1533 = vsel %vm1245, %v1144, %v1457
      %v1536 = vsel %vm1245, %v1145, %v1459
      %v1539 = vsel %vm1245, %v1146, %v1461
      %v1542 = vsel %vm1245, %v1147, %v1463
      %v1545 = vsel %vm1245, %v1148, %v1465
      %v1547 = vsel %vm1270, %v1524, %v1467
      %v1549 = vsel %vm1270, %v1527, %v1469
      %v1551 = vsel %vm1270, %v1530, %v1471
      %v1553 = vsel %vm1270, %v1533, %v1473
      %v1555 = vsel %vm1270, %v1536, %v1475
      %v1557 = vsel %vm1270, %v1539, %v1477
      %v1559 = vsel %vm1270, %v1542, %v1479
      %v1561 = vsel %vm1270, %v1545, %v1481
      %v1563 = vsel %vm1287, %v1547, %v1507
      %v1565 = vsel %vm1287, %v1549, %v1509
      %v1567 = vsel %vm1287, %v1551, %v1511
      %v1569 = vsel %vm1287, %v1553, %v1513
      %v1571 = vsel %vm1287, %v1555, %v1515
      %v1573 = vsel %vm1287, %v1557, %v1517
      %v1575 = vsel %vm1287, %v1559, %v1519
      %v1577 = vsel %vm1287, %v1561, %v1521
      %s1578 = scalar_lea.vmem %s1, 8
      %v1579 = vld [vmem:[%s1578] sm:$0xf]
      %v1580 = vld [vmem:[%s1578 + $0x4] sm:$0xf]
      %v1583 = vunpack.c.l.b16 %v1579
      %v1584 = vunpack.c.l.b16 %v1580
      %v1585 = vpack.c.b16 %v1584, %v1583
      %v1587 = vsel %vm1312, %v1563, 0
      %v1589 = vsel %vm1312, %v1565, 0
      %v1591 = vsel %vm1312, %v1567, 0
      %v1593 = vsel %vm1312, %v1569, 0
      %v1595 = vsel %vm1312, %v1571, 0
      %v1597 = vsel %vm1312, %v1573, 0
      %v1599 = vsel %vm1312, %v1575, 0
      %v1601 = vsel %vm1312, %v1577, 0
      %1603 = vmatprep.subr.bf16.mxu0 0
      %1604 = vmatpush1.bf16.msra.mxu0 %v1585
      %1605 = vmatprep.subr.bf16.mxu0 0
      %1606 = vmatpush1.bf16.msra.mxu0 0
      %1607 = vmatprep.subr.bf16.mxu0 0
      %1608 = vmatpush1.bf16.msra.mxu0 0
      %1609 = vmatprep.subr.bf16.mxu0 0
      %1610 = vmatpush1.bf16.msra.mxu0 0
      %1611 = vmatprep.subr.bf16.mxu0 0
      %1612 = vmatpush1.bf16.msra.mxu0 0
      %1613 = vmatprep.subr.bf16.mxu0 0
      %1614 = vmatpush1.bf16.msra.mxu0 0
      %1615 = vmatprep.subr.bf16.mxu0 0
      %1616 = vmatpush1.bf16.msra.mxu0 0
      %1617 = vmatprep.subr.bf16.mxu0 0
      %1618 = vmatpush1.bf16.msra.mxu0 0
      %1619 = vmatprep.subr.bf16.mxu0 0
      %1620 = vmatpush1.bf16.msra.mxu0 0
      %1621 = vmatprep.subr.bf16.mxu0 0
      %1622 = vmatpush1.bf16.msra.mxu0 0
      %1623 = vmatprep.subr.bf16.mxu0 0
      %1624 = vmatpush1.bf16.msra.mxu0 0
      %1625 = vmatprep.subr.bf16.mxu0 0
      %1626 = vmatpush1.bf16.msra.mxu0 0
      %1627 = vmatprep.subr.bf16.mxu0 0
      %1628 = vmatpush1.bf16.msra.mxu0 0
      %1629 = vmatprep.subr.bf16.mxu0 0
      %1630 = vmatpush1.bf16.msra.mxu0 0
      %1631 = vmatprep.subr.bf16.mxu0 0
      %1632 = vmatpush1.bf16.msra.mxu0 0
      %1633 = vmatprep.subr.bf16.mxu0 0
      %1634 = vmatpush1.bf16.msra.mxu0 0
      %1635 = vmatprep.mubr.bf16.mxu0 0
      %1636 = vmatmul.mubr.bf16.gmra.mrb[0].mxu0 %v1587
      %v1637 = vpop.f32.mrb[0].mxu0
      %v1638 = vadd.f32 0.0, %v1637
      %v1639 = vpop.f32.mrb[0].mxu0
      %v1640 = vpop.f32.mrb[0].mxu0
      %v1641 = vadd.f32 0.0, %v1640
      %v1642 = vpop.f32.mrb[0].mxu0
      %1643 = vmatprep.mubr.bf16.mxu0 0
      %1644 = vmatmul.mubr.bf16.gmra.mrb[0].mxu0 %v1589
      %v1645 = vpop.f32.mrb[0].mxu0
      %v1646 = vadd.f32 0.0, %v1645
      %v1647 = vpop.f32.mrb[0].mxu0
      %v1648 = vpop.f32.mrb[0].mxu0
      %v1649 = vadd.f32 0.0, %v1648
      %v1650 = vpop.f32.mrb[0].mxu0
      %1651 = vmatprep.mubr.bf16.mxu0 0
      %1652 = vmatmul.mubr.bf16.gmra.mrb[0].mxu0 %v1591
      %v1653 = vpop.f32.mrb[0].mxu0
      %v1654 = vadd.f32 0.0, %v1653
      %v1655 = vpop.f32.mrb[0].mxu0
      %v1656 = vpop.f32.mrb[0].mxu0
      %v1657 = vadd.f32 0.0, %v1656
      %v1658 = vpop.f32.mrb[0].mxu0
      %1659 = vmatprep.mubr.bf16.mxu0 0
      %1660 = vmatmul.mubr.bf16.gmra.mrb[0].mxu0 %v1593
      %v1661 = vpop.f32.mrb[0].mxu0
      %v1662 = vadd.f32 0.0, %v1661
      %v1663 = vpop.f32.mrb[0].mxu0
      %v1664 = vpop.f32.mrb[0].mxu0
      %v1665 = vadd.f32 0.0, %v1664
      %v1666 = vpop.f32.mrb[0].mxu0
      %1667 = vmatprep.mubr.bf16.mxu0 0
      %1668 = vmatmul.mubr.bf16.gmra.mrb[0].mxu0 %v1595
      %v1669 = vpop.f32.mrb[0].mxu0
      %v1670 = vadd.f32 0.0, %v1669
      %v1671 = vpop.f32.mrb[0].mxu0
      %v1672 = vpop.f32.mrb[0].mxu0
      %v1673 = vadd.f32 0.0, %v1672
      %v1674 = vpop.f32.mrb[0].mxu0
      %1675 = vmatprep.mubr.bf16.mxu0 0
      %1676 = vmatmul.mubr.bf16.gmra.mrb[0].mxu0 %v1597
      %v1677 = vpop.f32.mrb[0].mxu0
      %v1678 = vadd.f32 0.0, %v1677
      %v1679 = vpop.f32.mrb[0].mxu0
      %v1680 = vpop.f32.mrb[0].mxu0
      %v1681 = vadd.f32 0.0, %v1680
      %v1682 = vpop.f32.mrb[0].mxu0
      %1683 = vmatprep.mubr.bf16.mxu0 0
      %1684 = vmatmul.mubr.bf16.gmra.mrb[0].mxu0 %v1599
      %v1685 = vpop.f32.mrb[0].mxu0
      %v1686 = vadd.f32 0.0, %v1685
      %v1687 = vpop.f32.mrb[0].mxu0
      %v1688 = vpop.f32.mrb[0].mxu0
      %v1689 = vadd.f32 0.0, %v1688
      %v1690 = vpop.f32.mrb[0].mxu0
      %1691 = vmatprep.mubr.bf16.mxu0 0
      %1692 = vmatmul.mubr.bf16.gmra.mrb[0].mxu0 %v1601
      %v1693 = vpop.f32.mrb[0].mxu0
      %v1694 = vadd.f32 0.0, %v1693
      %v1695 = vpop.f32.mrb[0].mxu0
      %v1696 = vpop.f32.mrb[0].mxu0
      %v1697 = vadd.f32 0.0, %v1696
      %v1698 = vpop.f32.mrb[0].mxu0
      %1699 = vdwg.mxu0
      %1700 = vrot.lane.b32.xlu0 %v1221, 4
      %v1701 = vpop.permute.xlu0 %1700
      %1702 = vrot.lane.b32.xlu0 %v1222, 4
      %v1703 = vpop.permute.xlu0 %1702
      %1704 = vrot.lane.b32.xlu0 %v1223, 4
      %v1705 = vpop.permute.xlu0 %1704
      %1706 = vrot.lane.b32.xlu0 %v1224, 4
      %v1707 = vpop.permute.xlu0 %1706
      %1708 = vrot.lane.b32.xlu0 %v1225, 4
      %v1709 = vpop.permute.xlu0 %1708
      %1710 = vrot.lane.b32.xlu0 %v1226, 4
      %v1711 = vpop.permute.xlu0 %1710
      %1712 = vrot.lane.b32.xlu0 %v1227, 4
      %v1713 = vpop.permute.xlu0 %1712
      %1714 = vrot.lane.b32.xlu0 %v1228, 4
      %v1715 = vpop.permute.xlu0 %1714
      %v1716 = vunpack.c.l.b16 %v255
      %v1717 = vunpack.c.l.b16 %v256
      %v1718 = vunpack.c.l.b16 %v258
      %v1719 = vunpack.c.l.b16 %v259
      %v1720 = vunpack.c.l.b16 %v261
      %v1721 = vunpack.c.l.b16 %v262
      %v1722 = vunpack.c.l.b16 %v264
      %v1723 = vunpack.c.l.b16 %v265
      %v1724 = vunpack.c.l.b16 %v267
      %v1725 = vunpack.c.l.b16 %v268
      %v1726 = vunpack.c.l.b16 %v270
      %v1727 = vunpack.c.l.b16 %v271
      %v1728 = vunpack.c.l.b16 %v273
      %v1729 = vunpack.c.l.b16 %v274
      %v1730 = vunpack.c.l.b16 %v276
      %v1731 = vunpack.c.l.b16 %v277
      %v1732 = vpack.c.b16 %v1717, %v1716
      %v1733 = vpack.c.b16 %v1719, %v1718
      %v1734 = vpack.c.b16 %v1721, %v1720
      %v1735 = vpack.c.b16 %v1723, %v1722
      %v1736 = vpack.c.b16 %v1725, %v1724
      %v1737 = vpack.c.b16 %v1727, %v1726
      %v1738 = vpack.c.b16 %v1729, %v1728
      %v1739 = vpack.c.b16 %v1731, %v1730
      %1740 = vrot.lane.b32.xlu0 %v1732, 8
      %v1741 = vpop.permute.xlu0 %1740
      %1742 = vrot.lane.b32.xlu0 %v1733, 8
      %v1743 = vpop.permute.xlu0 %1742
      %1744 = vrot.lane.b32.xlu0 %v1734, 8
      %v1745 = vpop.permute.xlu0 %1744
      %1746 = vrot.lane.b32.xlu0 %v1735, 8
      %v1747 = vpop.permute.xlu0 %1746
      %1748 = vrot.lane.b32.xlu0 %v1736, 8
      %v1749 = vpop.permute.xlu0 %1748
      %1750 = vrot.lane.b32.xlu0 %v1737, 8
      %v1751 = vpop.permute.xlu0 %1750
      %1752 = vrot.lane.b32.xlu0 %v1738, 8
      %v1753 = vpop.permute.xlu0 %1752
      %1754 = vrot.lane.b32.xlu0 %v1739, 8
      %v1755 = vpop.permute.xlu0 %1754
      %v1756 = vunpack.c.l.b16 %v842
      %v1757 = vunpack.c.l.b16 %v852
      %v1758 = vunpack.c.l.b16 %v866
      %v1759 = vunpack.c.l.b16 %v876
      %v1760 = vunpack.c.l.b16 %v890
      %v1761 = vunpack.c.l.b16 %v900
      %v1762 = vunpack.c.l.b16 %v914
      %v1763 = vunpack.c.l.b16 %v924
      %v1764 = vunpack.c.l.b16 %v938
      %v1765 = vunpack.c.l.b16 %v948
      %v1766 = vunpack.c.l.b16 %v962
      %v1767 = vunpack.c.l.b16 %v972
      %v1768 = vunpack.c.l.b16 %v986
      %v1769 = vunpack.c.l.b16 %v996
      %v1770 = vunpack.c.l.b16 %v1010
      %v1771 = vunpack.c.l.b16 %v1020
      %v1772 = vpack.c.b16 %v1757, %v1756
      %v1773 = vpack.c.b16 %v1759, %v1758
      %v1774 = vpack.c.b16 %v1761, %v1760
      %v1775 = vpack.c.b16 %v1763, %v1762
      %v1776 = vpack.c.b16 %v1765, %v1764
      %v1777 = vpack.c.b16 %v1767, %v1766
      %v1778 = vpack.c.b16 %v1769, %v1768
      %v1779 = vpack.c.b16 %v1771, %v1770
      %1780 = vrot.lane.b32.xlu0 %v1772, 12
      %v1781 = vpop.permute.xlu0 %1780
      %1782 = vrot.lane.b32.xlu0 %v1773, 12
      %v1783 = vpop.permute.xlu0 %1782
      %1784 = vrot.lane.b32.xlu0 %v1774, 12
      %v1785 = vpop.permute.xlu0 %1784
      %1786 = vrot.lane.b32.xlu0 %v1775, 12
      %v1787 = vpop.permute.xlu0 %1786
      %1788 = vrot.lane.b32.xlu0 %v1776, 12
      %v1789 = vpop.permute.xlu0 %1788
      %1790 = vrot.lane.b32.xlu0 %v1777, 12
      %v1791 = vpop.permute.xlu0 %1790
      %1792 = vrot.lane.b32.xlu0 %v1778, 12
      %v1793 = vpop.permute.xlu0 %1792
      %1794 = vrot.lane.b32.xlu0 %v1779, 12
      %v1795 = vpop.permute.xlu0 %1794
      %v1798 = vsel %vm1245, %v1181, %v1701
      %v1801 = vsel %vm1245, %v1182, %v1703
      %v1804 = vsel %vm1245, %v1183, %v1705
      %v1807 = vsel %vm1245, %v1184, %v1707
      %v1810 = vsel %vm1245, %v1185, %v1709
      %v1813 = vsel %vm1245, %v1186, %v1711
      %v1816 = vsel %vm1245, %v1187, %v1713
      %v1819 = vsel %vm1245, %v1188, %v1715
      %v1821 = vsel %vm1270, %v1798, %v1741
      %v1823 = vsel %vm1270, %v1801, %v1743
      %v1825 = vsel %vm1270, %v1804, %v1745
      %v1827 = vsel %vm1270, %v1807, %v1747
      %v1829 = vsel %vm1270, %v1810, %v1749
      %v1831 = vsel %vm1270, %v1813, %v1751
      %v1833 = vsel %vm1270, %v1816, %v1753
      %v1835 = vsel %vm1270, %v1819, %v1755
      %v1837 = vsel %vm1287, %v1821, %v1781
      %v1839 = vsel %vm1287, %v1823, %v1783
      %v1841 = vsel %vm1287, %v1825, %v1785
      %v1843 = vsel %vm1287, %v1827, %v1787
      %v1845 = vsel %vm1287, %v1829, %v1789
      %v1847 = vsel %vm1287, %v1831, %v1791
      %v1849 = vsel %vm1287, %v1833, %v1793
      %v1851 = vsel %vm1287, %v1835, %v1795
      %s1852 = scalar_lea.vmem %s1, 16
      %v1853 = vld [vmem:[%s1852] sm:$0xf]
      %v1854 = vld [vmem:[%s1852 + $0x4] sm:$0xf]
      %v1857 = vunpack.c.l.b16 %v1853
      %v1858 = vunpack.c.l.b16 %v1854
      %v1859 = vpack.c.b16 %v1858, %v1857
      %v1861 = vsel %vm1312, %v1837, 0
      %v1863 = vsel %vm1312, %v1839, 0
      %v1865 = vsel %vm1312, %v1841, 0
      %v1867 = vsel %vm1312, %v1843, 0
      %v1869 = vsel %vm1312, %v1845, 0
      %v1871 = vsel %vm1312, %v1847, 0
      %v1873 = vsel %vm1312, %v1849, 0
      %v1875 = vsel %vm1312, %v1851, 0
      %1877 = vmatprep.subr.bf16.mxu0 0
      %1878 = vmatpush1.bf16.msra.mxu0 %v1859
      %1879 = vmatprep.subr.bf16.mxu0 0
      %1880 = vmatpush1.bf16.msra.mxu0 0
      %1881 = vmatprep.subr.bf16.mxu0 0
      %1882 = vmatpush1.bf16.msra.mxu0 0
      %1883 = vmatprep.subr.bf16.mxu0 0
      %1884 = vmatpush1.bf16.msra.mxu0 0
      %1885 = vmatprep.subr.bf16.mxu0 0
      %1886 = vmatpush1.bf16.msra.mxu0 0
      %1887 = vmatprep.subr.bf16.mxu0 0
      %1888 = vmatpush1.bf16.msra.mxu0 0
      %1889 = vmatprep.subr.bf16.mxu0 0
      %1890 = vmatpush1.bf16.msra.mxu0 0
      %1891 = vmatprep.subr.bf16.mxu0 0
      %1892 = vmatpush1.bf16.msra.mxu0 0
      %1893 = vmatprep.subr.bf16.mxu0 0
      %1894 = vmatpush1.bf16.msra.mxu0 0
      %1895 = vmatprep.subr.bf16.mxu0 0
      %1896 = vmatpush1.bf16.msra.mxu0 0
      %1897 = vmatprep.subr.bf16.mxu0 0
      %1898 = vmatpush1.bf16.msra.mxu0 0
      %1899 = vmatprep.subr.bf16.mxu0 0
      %1900 = vmatpush1.bf16.msra.mxu0 0
      %1901 = vmatprep.subr.bf16.mxu0 0
      %1902 = vmatpush1.bf16.msra.mxu0 0
      %1903 = vmatprep.subr.bf16.mxu0 0
      %1904 = vmatpush1.bf16.msra.mxu0 0
      %1905 = vmatprep.subr.bf16.mxu0 0
      %1906 = vmatpush1.bf16.msra.mxu0 0
      %1907 = vmatprep.subr.bf16.mxu0 0
      %1908 = vmatpush1.bf16.msra.mxu0 0
      %1909 = vmatprep.mubr.bf16.mxu0 0
      %1910 = vmatmul.mubr.bf16.gmra.mrb[0].mxu0 %v1861
      %v1911 = vpop.f32.mrb[0].mxu0
      %v1912 = vadd.f32 0.0, %v1911
      %v1913 = vpop.f32.mrb[0].mxu0
      %v1914 = vpop.f32.mrb[0].mxu0
      %v1915 = vadd.f32 0.0, %v1914
      %v1916 = vpop.f32.mrb[0].mxu0
      %1917 = vmatprep.mubr.bf16.mxu0 0
      %1918 = vmatmul.mubr.bf16.gmra.mrb[0].mxu0 %v1863
      %v1919 = vpop.f32.mrb[0].mxu0
      %v1920 = vadd.f32 0.0, %v1919
      %v1921 = vpop.f32.mrb[0].mxu0
      %v1922 = vpop.f32.mrb[0].mxu0
      %v1923 = vadd.f32 0.0, %v1922
      %v1924 = vpop.f32.mrb[0].mxu0
      %1925 = vmatprep.mubr.bf16.mxu0 0
      %1926 = vmatmul.mubr.bf16.gmra.mrb[0].mxu0 %v1865
      %v1927 = vpop.f32.mrb[0].mxu0
      %v1928 = vadd.f32 0.0, %v1927
      %v1929 = vpop.f32.mrb[0].mxu0
      %v1930 = vpop.f32.mrb[0].mxu0
      %v1931 = vadd.f32 0.0, %v1930
      %v1932 = vpop.f32.mrb[0].mxu0
      %1933 = vmatprep.mubr.bf16.mxu0 0
      %1934 = vmatmul.mubr.bf16.gmra.mrb[0].mxu0 %v1867
      %v1935 = vpop.f32.mrb[0].mxu0
      %v1936 = vadd.f32 0.0, %v1935
      %v1937 = vpop.f32.mrb[0].mxu0
      %v1938 = vpop.f32.mrb[0].mxu0
      %v1939 = vadd.f32 0.0, %v1938
      %v1940 = vpop.f32.mrb[0].mxu0
      %1941 = vmatprep.mubr.bf16.mxu0 0
      %1942 = vmatmul.mubr.bf16.gmra.mrb[0].mxu0 %v1869
      %v1943 = vpop.f32.mrb[0].mxu0
      %v1944 = vadd.f32 0.0, %v1943
      %v1945 = vpop.f32.mrb[0].mxu0
      %v1946 = vpop.f32.mrb[0].mxu0
      %v1947 = vadd.f32 0.0, %v1946
      %v1948 = vpop.f32.mrb[0].mxu0
      %1949 = vmatprep.mubr.bf16.mxu0 0
      %1950 = vmatmul.mubr.bf16.gmra.mrb[0].mxu0 %v1871
      %v1951 = vpop.f32.mrb[0].mxu0
      %v1952 = vadd.f32 0.0, %v1951
      %v1953 = vpop.f32.mrb[0].mxu0
      %v1954 = vpop.f32.mrb[0].mxu0
      %v1955 = vadd.f32 0.0, %v1954
      %v1956 = vpop.f32.mrb[0].mxu0
      %1957 = vmatprep.mubr.bf16.mxu0 0
      %1958 = vmatmul.mubr.bf16.gmra.mrb[0].mxu0 %v1873
      %v1959 = vpop.f32.mrb[0].mxu0
      %v1960 = vadd.f32 0.0, %v1959
      %v1961 = vpop.f32.mrb[0].mxu0
      %v1962 = vpop.f32.mrb[0].mxu0
      %v1963 = vadd.f32 0.0, %v1962
      %v1964 = vpop.f32.mrb[0].mxu0
      %1965 = vmatprep.mubr.bf16.mxu0 0
      %1966 = vmatmul.mubr.bf16.gmra.mrb[0].mxu0 %v1875
      %v1967 = vpop.f32.mrb[0].mxu0
      %v1968 = vadd.f32 0.0, %v1967
      %v1969 = vpop.f32.mrb[0].mxu0
      %v1970 = vpop.f32.mrb[0].mxu0
      %v1971 = vadd.f32 0.0, %v1970
      %v1972 = vpop.f32.mrb[0].mxu0
      %1973 = vdwg.mxu0
      %1974 = vrot.lane.b32.xlu0 %v1498, 4
      %v1975 = vpop.permute.xlu0 %1974
      %1976 = vrot.lane.b32.xlu0 %v1499, 4
      %v1977 = vpop.permute.xlu0 %1976
      %1978 = vrot.lane.b32.xlu0 %v1500, 4
      %v1979 = vpop.permute.xlu0 %1978
      %1980 = vrot.lane.b32.xlu0 %v1501, 4
      %v1981 = vpop.permute.xlu0 %1980
      %1982 = vrot.lane.b32.xlu0 %v1502, 4
      %v1983 = vpop.permute.xlu0 %1982
      %1984 = vrot.lane.b32.xlu0 %v1503, 4
      %v1985 = vpop.permute.xlu0 %1984
      %1986 = vrot.lane.b32.xlu0 %v1504, 4
      %v1987 = vpop.permute.xlu0 %1986
      %1988 = vrot.lane.b32.xlu0 %v1505, 4
      %v1989 = vpop.permute.xlu0 %1988
      %1990 = vrot.lane.b32.xlu0 %v1772, 8
      %v1991 = vpop.permute.xlu0 %1990
      %1992 = vrot.lane.b32.xlu0 %v1773, 8
      %v1993 = vpop.permute.xlu0 %1992
      %1994 = vrot.lane.b32.xlu0 %v1774, 8
      %v1995 = vpop.permute.xlu0 %1994
      %1996 = vrot.lane.b32.xlu0 %v1775, 8
      %v1997 = vpop.permute.xlu0 %1996
      %1998 = vrot.lane.b32.xlu0 %v1776, 8
      %v1999 = vpop.permute.xlu0 %1998
      %2000 = vrot.lane.b32.xlu0 %v1777, 8
      %v2001 = vpop.permute.xlu0 %2000
      %2002 = vrot.lane.b32.xlu0 %v1778, 8
      %v2003 = vpop.permute.xlu0 %2002
      %2004 = vrot.lane.b32.xlu0 %v1779, 8
      %v2005 = vpop.permute.xlu0 %2004
      %v2006 = vunpack.c.l.b16 %v1048
      %v2007 = vunpack.c.l.b16 %v1051
      %v2008 = vunpack.c.l.b16 %v1055
      %v2009 = vunpack.c.l.b16 %v1058
      %v2010 = vunpack.c.l.b16 %v1062
      %v2011 = vunpack.c.l.b16 %v1065
      %v2012 = vunpack.c.l.b16 %v1069
      %v2013 = vunpack.c.l.b16 %v1072
      %v2014 = vunpack.c.l.b16 %v1076
      %v2015 = vunpack.c.l.b16 %v1079
      %v2016 = vunpack.c.l.b16 %v1083
      %v2017 = vunpack.c.l.b16 %v1086
      %v2018 = vunpack.c.l.b16 %v1090
      %v2019 = vunpack.c.l.b16 %v1093
      %v2020 = vunpack.c.l.b16 %v1097
      %v2021 = vunpack.c.l.b16 %v1100
      %v2022 = vpack.c.b16 %v2007, %v2006
      %v2023 = vpack.c.b16 %v2009, %v2008
      %v2024 = vpack.c.b16 %v2011, %v2010
      %v2025 = vpack.c.b16 %v2013, %v2012
      %v2026 = vpack.c.b16 %v2015, %v2014
      %v2027 = vpack.c.b16 %v2017, %v2016
      %v2028 = vpack.c.b16 %v2019, %v2018
      %v2029 = vpack.c.b16 %v2021, %v2020
      %2030 = vrot.lane.b32.xlu0 %v2022, 12
      %v2031 = vpop.permute.xlu0 %2030
      %2032 = vrot.lane.b32.xlu0 %v2023, 12
      %v2033 = vpop.permute.xlu0 %2032
      %2034 = vrot.lane.b32.xlu0 %v2024, 12
      %v2035 = vpop.permute.xlu0 %2034
      %2036 = vrot.lane.b32.xlu0 %v2025, 12
      %v2037 = vpop.permute.xlu0 %2036
      %2038 = vrot.lane.b32.xlu0 %v2026, 12
      %v2039 = vpop.permute.xlu0 %2038
      %2040 = vrot.lane.b32.xlu0 %v2027, 12
      %v2041 = vpop.permute.xlu0 %2040
      %2042 = vrot.lane.b32.xlu0 %v2028, 12
      %v2043 = vpop.permute.xlu0 %2042
      %2044 = vrot.lane.b32.xlu0 %v2029, 12
      %v2045 = vpop.permute.xlu0 %2044
      %v2048 = vsel %vm1245, %v1221, %v1975
      %v2051 = vsel %vm1245, %v1222, %v1977
      %v2054 = vsel %vm1245, %v1223, %v1979
      %v2057 = vsel %vm1245, %v1224, %v1981
      %v2060 = vsel %vm1245, %v1225, %v1983
      %v2063 = vsel %vm1245, %v1226, %v1985
      %v2066 = vsel %vm1245, %v1227, %v1987
      %v2069 = vsel %vm1245, %v1228, %v1989
      %v2071 = vsel %vm1270, %v2048, %v1991
      %v2073 = vsel %vm1270, %v2051, %v1993
      %v2075 = vsel %vm1270, %v2054, %v1995
      %v2077 = vsel %vm1270, %v2057, %v1997
      %v2079 = vsel %vm1270, %v2060, %v1999
      %v2081 = vsel %vm1270, %v2063, %v2001
      %v2083 = vsel %vm1270, %v2066, %v2003
      %v2085 = vsel %vm1270, %v2069, %v2005
      %v2087 = vsel %vm1287, %v2071, %v2031
      %v2089 = vsel %vm1287, %v2073, %v2033
      %v2091 = vsel %vm1287, %v2075, %v2035
      %v2093 = vsel %vm1287, %v2077, %v2037
      %v2095 = vsel %vm1287, %v2079, %v2039
      %v2097 = vsel %vm1287, %v2081, %v2041
      %v2099 = vsel %vm1287, %v2083, %v2043
      %v2101 = vsel %vm1287, %v2085, %v2045
      %s2102 = scalar_lea.vmem %s1, 24
      %v2103 = vld [vmem:[%s2102] sm:$0xf]
      %v2104 = vld [vmem:[%s2102 + $0x4] sm:$0xf]
      %v2107 = vunpack.c.l.b16 %v2103
      %v2108 = vunpack.c.l.b16 %v2104
      %v2109 = vpack.c.b16 %v2108, %v2107
      %v2111 = vsel %vm1312, %v2087, 0
      %v2113 = vsel %vm1312, %v2089, 0
      %v2115 = vsel %vm1312, %v2091, 0
      %v2117 = vsel %vm1312, %v2093, 0
      %v2119 = vsel %vm1312, %v2095, 0
      %v2121 = vsel %vm1312, %v2097, 0
      %v2123 = vsel %vm1312, %v2099, 0
      %v2125 = vsel %vm1312, %v2101, 0
      %2127 = vmatprep.subr.bf16.mxu0 0
      %2128 = vmatpush1.bf16.msra.mxu0 %v2109
      %2129 = vmatprep.subr.bf16.mxu0 0
      %2130 = vmatpush1.bf16.msra.mxu0 0
      %2131 = vmatprep.subr.bf16.mxu0 0
      %2132 = vmatpush1.bf16.msra.mxu0 0
      %2133 = vmatprep.subr.bf16.mxu0 0
      %2134 = vmatpush1.bf16.msra.mxu0 0
      %2135 = vmatprep.subr.bf16.mxu0 0
      %2136 = vmatpush1.bf16.msra.mxu0 0
      %2137 = vmatprep.subr.bf16.mxu0 0
      %2138 = vmatpush1.bf16.msra.mxu0 0
      %2139 = vmatprep.subr.bf16.mxu0 0
      %2140 = vmatpush1.bf16.msra.mxu0 0
      %2141 = vmatprep.subr.bf16.mxu0 0
      %2142 = vmatpush1.bf16.msra.mxu0 0
      %2143 = vmatprep.subr.bf16.mxu0 0
      %2144 = vmatpush1.bf16.msra.mxu0 0
      %2145 = vmatprep.subr.bf16.mxu0 0
      %2146 = vmatpush1.bf16.msra.mxu0 0
      %2147 = vmatprep.subr.bf16.mxu0 0
      %2148 = vmatpush1.bf16.msra.mxu0 0
      %2149 = vmatprep.subr.bf16.mxu0 0
      %2150 = vmatpush1.bf16.msra.mxu0 0
      %2151 = vmatprep.subr.bf16.mxu0 0
      %2152 = vmatpush1.bf16.msra.mxu0 0
      %2153 = vmatprep.subr.bf16.mxu0 0
      %2154 = vmatpush1.bf16.msra.mxu0 0
      %2155 = vmatprep.subr.bf16.mxu0 0
      %2156 = vmatpush1.bf16.msra.mxu0 0
      %2157 = vmatprep.subr.bf16.mxu0 0
      %2158 = vmatpush1.bf16.msra.mxu0 0
      %2159 = vmatprep.mubr.bf16.mxu0 0
      %2160 = vmatmul.mubr.bf16.gmra.mrb[0].mxu0 %v2111
      %v2161 = vpop.f32.mrb[0].mxu0
      %v2162 = vadd.f32 0.0, %v2161
      %v2163 = vpop.f32.mrb[0].mxu0
      %v2164 = vpop.f32.mrb[0].mxu0
      %v2165 = vadd.f32 0.0, %v2164
      %v2166 = vpop.f32.mrb[0].mxu0
      %2167 = vmatprep.mubr.bf16.mxu0 0
      %2168 = vmatmul.mubr.bf16.gmra.mrb[0].mxu0 %v2113
      %v2169 = vpop.f32.mrb[0].mxu0
      %v2170 = vadd.f32 0.0, %v2169
      %v2171 = vpop.f32.mrb[0].mxu0
      %v2172 = vpop.f32.mrb[0].mxu0
      %v2173 = vadd.f32 0.0, %v2172
      %v2174 = vpop.f32.mrb[0].mxu0
      %2175 = vmatprep.mubr.bf16.mxu0 0
      %2176 = vmatmul.mubr.bf16.gmra.mrb[0].mxu0 %v2115
      %v2177 = vpop.f32.mrb[0].mxu0
      %v2178 = vadd.f32 0.0, %v2177
      %v2179 = vpop.f32.mrb[0].mxu0
      %v2180 = vpop.f32.mrb[0].mxu0
      %v2181 = vadd.f32 0.0, %v2180
      %v2182 = vpop.f32.mrb[0].mxu0
      %2183 = vmatprep.mubr.bf16.mxu0 0
      %2184 = vmatmul.mubr.bf16.gmra.mrb[0].mxu0 %v2117
      %v2185 = vpop.f32.mrb[0].mxu0
      %v2186 = vadd.f32 0.0, %v2185
      %v2187 = vpop.f32.mrb[0].mxu0
      %v2188 = vpop.f32.mrb[0].mxu0
      %v2189 = vadd.f32 0.0, %v2188
      %v2190 = vpop.f32.mrb[0].mxu0
      %2191 = vmatprep.mubr.bf16.mxu0 0
      %2192 = vmatmul.mubr.bf16.gmra.mrb[0].mxu0 %v2119
      %v2193 = vpop.f32.mrb[0].mxu0
      %v2194 = vadd.f32 0.0, %v2193
      %v2195 = vpop.f32.mrb[0].mxu0
      %v2196 = vpop.f32.mrb[0].mxu0
      %v2197 = vadd.f32 0.0, %v2196
      %v2198 = vpop.f32.mrb[0].mxu0
      %2199 = vmatprep.mubr.bf16.mxu0 0
      %2200 = vmatmul.mubr.bf16.gmra.mrb[0].mxu0 %v2121
      %v2201 = vpop.f32.mrb[0].mxu0
      %v2202 = vadd.f32 0.0, %v2201
      %v2203 = vpop.f32.mrb[0].mxu0
      %v2204 = vpop.f32.mrb[0].mxu0
      %v2205 = vadd.f32 0.0, %v2204
      %v2206 = vpop.f32.mrb[0].mxu0
      %2207 = vmatprep.mubr.bf16.mxu0 0
      %2208 = vmatmul.mubr.bf16.gmra.mrb[0].mxu0 %v2123
      %v2209 = vpop.f32.mrb[0].mxu0
      %v2210 = vadd.f32 0.0, %v2209
      %v2211 = vpop.f32.mrb[0].mxu0
      %v2212 = vpop.f32.mrb[0].mxu0
      %v2213 = vadd.f32 0.0, %v2212
      %v2214 = vpop.f32.mrb[0].mxu0
      %2215 = vmatprep.mubr.bf16.mxu0 0
      %2216 = vmatmul.mubr.bf16.gmra.mrb[0].mxu0 %v2125
      %v2217 = vpop.f32.mrb[0].mxu0
      %v2218 = vadd.f32 0.0, %v2217
      %v2219 = vpop.f32.mrb[0].mxu0
      %v2220 = vpop.f32.mrb[0].mxu0
      %v2221 = vadd.f32 0.0, %v2220
      %v2222 = vpop.f32.mrb[0].mxu0
      %2223 = vdwg.mxu0
      %2240 = vrot.lane.b32.xlu0 %v1638, 32
      %v2241 = vpop.permute.xlu0 %2240
      %2242 = vrot.lane.b32.xlu0 %v1641, 32
      %v2243 = vpop.permute.xlu0 %2242
      %2244 = vrot.lane.b32.xlu0 %v1646, 32
      %v2245 = vpop.permute.xlu0 %2244
      %2246 = vrot.lane.b32.xlu0 %v1649, 32
      %v2247 = vpop.permute.xlu0 %2246
      %2248 = vrot.lane.b32.xlu0 %v1654, 32
      %v2249 = vpop.permute.xlu0 %2248
      %2250 = vrot.lane.b32.xlu0 %v1657, 32
      %v2251 = vpop.permute.xlu0 %2250
      %2252 = vrot.lane.b32.xlu0 %v1662, 32
      %v2253 = vpop.permute.xlu0 %2252
      %2254 = vrot.lane.b32.xlu0 %v1665, 32
      %v2255 = vpop.permute.xlu0 %2254
      %2256 = vrot.lane.b32.xlu0 %v1670, 32
      %v2257 = vpop.permute.xlu0 %2256
      %2258 = vrot.lane.b32.xlu0 %v1673, 32
      %v2259 = vpop.permute.xlu0 %2258
      %2260 = vrot.lane.b32.xlu0 %v1678, 32
      %v2261 = vpop.permute.xlu0 %2260
      %2262 = vrot.lane.b32.xlu0 %v1681, 32
      %v2263 = vpop.permute.xlu0 %2262
      %2264 = vrot.lane.b32.xlu0 %v1686, 32
      %v2265 = vpop.permute.xlu0 %2264
      %2266 = vrot.lane.b32.xlu0 %v1689, 32
      %v2267 = vpop.permute.xlu0 %2266
      %2268 = vrot.lane.b32.xlu0 %v1694, 32
      %v2269 = vpop.permute.xlu0 %2268
      %2270 = vrot.lane.b32.xlu0 %v1697, 32
      %v2271 = vpop.permute.xlu0 %2270
      %2304 = vrot.lane.b32.xlu0 %v1912, 64
      %v2305 = vpop.permute.xlu0 %2304
      %2306 = vrot.lane.b32.xlu0 %v1915, 64
      %v2307 = vpop.permute.xlu0 %2306
      %2308 = vrot.lane.b32.xlu0 %v1920, 64
      %v2309 = vpop.permute.xlu0 %2308
      %2310 = vrot.lane.b32.xlu0 %v1923, 64
      %v2311 = vpop.permute.xlu0 %2310
      %2312 = vrot.lane.b32.xlu0 %v1928, 64
      %v2313 = vpop.permute.xlu0 %2312
      %2314 = vrot.lane.b32.xlu0 %v1931, 64
      %v2315 = vpop.permute.xlu0 %2314
      %2316 = vrot.lane.b32.xlu0 %v1936, 64
      %v2317 = vpop.permute.xlu0 %2316
      %2318 = vrot.lane.b32.xlu0 %v1939, 64
      %v2319 = vpop.permute.xlu0 %2318
      %2320 = vrot.lane.b32.xlu0 %v1944, 64
      %v2321 = vpop.permute.xlu0 %2320
      %2322 = vrot.lane.b32.xlu0 %v1947, 64
      %v2323 = vpop.permute.xlu0 %2322
      %2324 = vrot.lane.b32.xlu0 %v1952, 64
      %v2325 = vpop.permute.xlu0 %2324
      %2326 = vrot.lane.b32.xlu0 %v1955, 64
      %v2327 = vpop.permute.xlu0 %2326
      %2328 = vrot.lane.b32.xlu0 %v1960, 64
      %v2329 = vpop.permute.xlu0 %2328
      %2330 = vrot.lane.b32.xlu0 %v1963, 64
      %v2331 = vpop.permute.xlu0 %2330
      %2332 = vrot.lane.b32.xlu0 %v1968, 64
      %v2333 = vpop.permute.xlu0 %2332
      %2334 = vrot.lane.b32.xlu0 %v1971, 64
      %v2335 = vpop.permute.xlu0 %2334
      %2368 = vrot.lane.b32.xlu0 %v2162, 96
      %v2369 = vpop.permute.xlu0 %2368
      %2370 = vrot.lane.b32.xlu0 %v2165, 96
      %v2371 = vpop.permute.xlu0 %2370
      %2372 = vrot.lane.b32.xlu0 %v2170, 96
      %v2373 = vpop.permute.xlu0 %2372
      %2374 = vrot.lane.b32.xlu0 %v2173, 96
      %v2375 = vpop.permute.xlu0 %2374
      %2376 = vrot.lane.b32.xlu0 %v2178, 96
      %v2377 = vpop.permute.xlu0 %2376
      %2378 = vrot.lane.b32.xlu0 %v2181, 96
      %v2379 = vpop.permute.xlu0 %2378
      %2380 = vrot.lane.b32.xlu0 %v2186, 96
      %v2381 = vpop.permute.xlu0 %2380
      %2382 = vrot.lane.b32.xlu0 %v2189, 96
      %v2383 = vpop.permute.xlu0 %2382
      %2384 = vrot.lane.b32.xlu0 %v2194, 96
      %v2385 = vpop.permute.xlu0 %2384
      %2386 = vrot.lane.b32.xlu0 %v2197, 96
      %v2387 = vpop.permute.xlu0 %2386
      %2388 = vrot.lane.b32.xlu0 %v2202, 96
      %v2389 = vpop.permute.xlu0 %2388
      %2390 = vrot.lane.b32.xlu0 %v2205, 96
      %v2391 = vpop.permute.xlu0 %2390
      %2392 = vrot.lane.b32.xlu0 %v2210, 96
      %v2393 = vpop.permute.xlu0 %2392
      %2394 = vrot.lane.b32.xlu0 %v2213, 96
      %v2395 = vpop.permute.xlu0 %2394
      %2396 = vrot.lane.b32.xlu0 %v2218, 96
      %v2397 = vpop.permute.xlu0 %2396
      %2398 = vrot.lane.b32.xlu0 %v2221, 96
      %v2399 = vpop.permute.xlu0 %2398
      %vm2416 = vcmask 261120
      %v2417 = vsel %vm2416, %v1364, %v2241
      %v2418 = vsel %vm2416, %v1367, %v2243
      %v2419 = vsel %vm2416, %v1372, %v2245
      %v2420 = vsel %vm2416, %v1375, %v2247
      %v2421 = vsel %vm2416, %v1380, %v2249
      %v2422 = vsel %vm2416, %v1383, %v2251
      %v2423 = vsel %vm2416, %v1388, %v2253
      %v2424 = vsel %vm2416, %v1391, %v2255
      %v2425 = vsel %vm2416, %v1396, %v2257
      %v2426 = vsel %vm2416, %v1399, %v2259
      %v2427 = vsel %vm2416, %v1404, %v2261
      %v2428 = vsel %vm2416, %v1407, %v2263
      %v2429 = vsel %vm2416, %v1412, %v2265
      %v2430 = vsel %vm2416, %v1415, %v2267
      %v2431 = vsel %vm2416, %v1420, %v2269
      %v2432 = vsel %vm2416, %v1423, %v2271
      %vm2433 = vcmask 523264
      %v2434 = vsel %vm2433, %v2417, %v2305
      %v2435 = vsel %vm2433, %v2418, %v2307
      %v2436 = vsel %vm2433, %v2419, %v2309
      %v2437 = vsel %vm2433, %v2420, %v2311
      %v2438 = vsel %vm2433, %v2421, %v2313
      %v2439 = vsel %vm2433, %v2422, %v2315
      %v2440 = vsel %vm2433, %v2423, %v2317
      %v2441 = vsel %vm2433, %v2424, %v2319
      %v2442 = vsel %vm2433, %v2425, %v2321
      %v2443 = vsel %vm2433, %v2426, %v2323
      %v2444 = vsel %vm2433, %v2427, %v2325
      %v2445 = vsel %vm2433, %v2428, %v2327
      %v2446 = vsel %vm2433, %v2429, %v2329
      %v2447 = vsel %vm2433, %v2430, %v2331
      %v2448 = vsel %vm2433, %v2431, %v2333
      %v2449 = vsel %vm2433, %v2432, %v2335
      %vm2450 = vcmask 785408
      %v2451 = vsel %vm2450, %v2434, %v2369
      %v2452 = vsel %vm2450, %v2435, %v2371
      %v2453 = vsel %vm2450, %v2436, %v2373
      %v2454 = vsel %vm2450, %v2437, %v2375
      %v2455 = vsel %vm2450, %v2438, %v2377
      %v2456 = vsel %vm2450, %v2439, %v2379
      %v2457 = vsel %vm2450, %v2440, %v2381
      %v2458 = vsel %vm2450, %v2441, %v2383
      %v2459 = vsel %vm2450, %v2442, %v2385
      %v2460 = vsel %vm2450, %v2443, %v2387
      %v2461 = vsel %vm2450, %v2444, %v2389
      %v2462 = vsel %vm2450, %v2445, %v2391
      %v2463 = vsel %vm2450, %v2446, %v2393
      %v2464 = vsel %vm2450, %v2447, %v2395
      %v2465 = vsel %vm2450, %v2448, %v2397
      %v2466 = vsel %vm2450, %v2449, %v2399
      %v2467 = vld [vmem:[%s2] sm:$0x1]
      %v2469 = vlaneseq
      %v2470 = vshrl.u32 %v2469, 7
      %v2471 = vsub.s32 0, %v2470
      %v2472 = vrot.slane %v2467, %v2471
      %v2474 = vadd.f32 %v2451, %v2472
      %v2475 = vadd.f32 %v2452, %v2472
      %v2476 = vadd.f32 %v2453, %v2472
      %v2477 = vadd.f32 %v2454, %v2472
      %v2478 = vadd.f32 %v2455, %v2472
      %v2479 = vadd.f32 %v2456, %v2472
      %v2480 = vadd.f32 %v2457, %v2472
      %v2481 = vadd.f32 %v2458, %v2472
      %v2482 = vadd.f32 %v2459, %v2472
      %v2483 = vadd.f32 %v2460, %v2472
      %v2484 = vadd.f32 %v2461, %v2472
      %v2485 = vadd.f32 %v2462, %v2472
      %v2486 = vadd.f32 %v2463, %v2472
      %v2487 = vadd.f32 %v2464, %v2472
      %v2488 = vadd.f32 %v2465, %v2472
      %v2489 = vadd.f32 %v2466, %v2472
      %v2490 = vmax.f32 %v2474, 0.0
      %v2491 = vmax.f32 %v2475, 0.0
      %v2492 = vmax.f32 %v2476, 0.0
      %v2493 = vmax.f32 %v2477, 0.0
      %v2494 = vmax.f32 %v2478, 0.0
      %v2495 = vmax.f32 %v2479, 0.0
      %v2496 = vmax.f32 %v2480, 0.0
      %v2497 = vmax.f32 %v2481, 0.0
      %v2498 = vmax.f32 %v2482, 0.0
      %v2499 = vmax.f32 %v2483, 0.0
      %v2500 = vmax.f32 %v2484, 0.0
      %v2501 = vmax.f32 %v2485, 0.0
      %v2502 = vmax.f32 %v2486, 0.0
      %v2503 = vmax.f32 %v2487, 0.0
      %v2504 = vmax.f32 %v2488, 0.0
      %v2505 = vmax.f32 %v2489, 0.0
      %v2506 = vpack.c.bf16 %v2491, %v2490
      %v2507 = vpack.c.bf16 %v2493, %v2492
      %v2508 = vpack.c.bf16 %v2495, %v2494
      %v2509 = vpack.c.bf16 %v2497, %v2496
      %v2510 = vpack.c.bf16 %v2499, %v2498
      %v2511 = vpack.c.bf16 %v2501, %v2500
      %v2512 = vpack.c.bf16 %v2503, %v2502
      %v2513 = vpack.c.bf16 %v2505, %v2504
      %v2522 = vunpack.c.l.b16 %v2506
      %v2523 = vunpack.c.h.b16 %v2506
      %v2524 = vunpack.c.l.b16 %v2507
      %v2525 = vunpack.c.h.b16 %v2507
      %v2526 = vunpack.c.l.b16 %v2508
      %v2527 = vunpack.c.h.b16 %v2508
      %v2528 = vunpack.c.l.b16 %v2509
      %v2529 = vunpack.c.h.b16 %v2509
      %v2530 = vunpack.c.l.b16 %v2510
      %v2531 = vunpack.c.h.b16 %v2510
      %v2532 = vunpack.c.l.b16 %v2511
      %v2533 = vunpack.c.h.b16 %v2511
      %v2534 = vunpack.c.l.b16 %v2512
      %v2535 = vunpack.c.h.b16 %v2512
      %v2536 = vunpack.c.l.b16 %v2513
      %v2537 = vunpack.c.h.b16 %v2513
      %v2538 = vpack.c.b16 %v2522, %v2522
      %v2539 = vpack.c.b16 %v2523, %v2523
      %v2540 = vpack.c.b16 %v2524, %v2524
      %v2541 = vpack.c.b16 %v2525, %v2525
      %v2542 = vpack.c.b16 %v2526, %v2526
      %v2543 = vpack.c.b16 %v2527, %v2527
      %v2544 = vpack.c.b16 %v2528, %v2528
      %v2545 = vpack.c.b16 %v2529, %v2529
      %v2546 = vpack.c.b16 %v2530, %v2530
      %v2547 = vpack.c.b16 %v2531, %v2531
      %v2548 = vpack.c.b16 %v2532, %v2532
      %v2549 = vpack.c.b16 %v2533, %v2533
      %v2550 = vpack.c.b16 %v2534, %v2534
      %v2551 = vpack.c.b16 %v2535, %v2535
      %v2552 = vpack.c.b16 %v2536, %v2536
      %v2553 = vpack.c.b16 %v2537, %v2537
      %2570 = vst [vmem:[%s192] sm:$0xf] %v2538
      %2571 = vst [vmem:[%s192 + $0x4] sm:$0xf] %v2539
      %2572 = vst [vmem:[%s192 + $0x8] sm:$0xf] %v2540
      %2573 = vst [vmem:[%s192 + $0xc] sm:$0xf] %v2541
      %2574 = vst [vmem:[%s192 + $0x10] sm:$0xf] %v2542
      %2575 = vst [vmem:[%s192 + $0x14] sm:$0xf] %v2543
      %2576 = vst [vmem:[%s192 + $0x18] sm:$0xf] %v2544
      %2577 = vst [vmem:[%s192 + $0x1c] sm:$0xf] %v2545
      %2578 = vst [vmem:[%s192 + $0x20] sm:$0xf] %v2546
      %2579 = vst [vmem:[%s192 + $0x24] sm:$0xf] %v2547
      %2580 = vst [vmem:[%s192 + $0x28] sm:$0xf] %v2548
      %2581 = vst [vmem:[%s192 + $0x2c] sm:$0xf] %v2549
      %2582 = vst [vmem:[%s192 + $0x30] sm:$0xf] %v2550
      %2583 = vst [vmem:[%s192 + $0x34] sm:$0xf] %v2551
      %2584 = vst [vmem:[%s192 + $0x38] sm:$0xf] %v2552
      %2585 = vst [vmem:[%s192 + $0x3c] sm:$0xf] %v2553
      %s2586 = smul.u32 16, %s19
      %p2587 = scmp.lt.s32.totalorder %s18, 1
      %s2588 = scalar_select %p2587, %s18, 1
      %p2589 = scmp.lt.s32.totalorder %s2586, 31
      %s2590 = scalar_select %p2589, %s2586, 31
      %s2591 = smul.addr %s2588, 32
      %s2592 = sadd.s32 %s2590, %s2591
      %s2593 = smul.addr %s2592, 4
      %s2594 = scalar_lea.vmem %s3, %s2593
      // Predicated region
      $region33: #{up_forward.1} parent=31 // pred_check
        %p2595 = pneg %p114
      $region34: #{up_forward.1} parent=31 // pred_check_branch
        %2597 = sbr.rel (%p2595) target = $region36
      $region35: #{up_forward.1} parent=31 // pred_region
        %s2598 = smul.u32 16, %s19
      $region36: #{up_forward.1} parent=31 // pred_fallthru
        _
    $region32: #{up_forward.1} parent=5 // pred_fallthru
      _
    %p2599 = scmp.le.s32.totalorder 2, %s9
    // Predicated region
    $region37: #{up_forward.1} parent=5 // pred_check
      %p2600 = pneg %p2599
    $region38: #{up_forward.1} parent=5 // pred_check_branch
      %2602 = sbr.rel (%p2600) target = $region40
    $region39: #{up_forward.1} parent=5 // pred_region
      %s2603 = ssub.s32 %s9, 2
      // Predicated region
      $region41: #{up_forward.1} parent=39 // pred_check
        %p2604 = pneg %p120
      $region42: #{up_forward.1} parent=39 // pred_check_branch
        %2606 = sbr.rel (%p2604) target = $region44
      $region43: #{up_forward.1} parent=39 // pred_region
        %s2607 = smul.u32 16, %s21
        %p2608 = scmp.lt.s32.totalorder %s20, 1
        %s2609 = scalar_select %p2608, %s20, 1
        %p2610 = scmp.lt.s32.totalorder %s2607, 31
        %s2611 = scalar_select %p2610, %s2607, 31
        %s2612 = smul.addr %s2609, 32
        %s2613 = sadd.s32 %s2611, %s2612
        %s2614 = smul.addr %s2613, 4
        %s2615 = scalar_lea.vmem %s3, %s2614
      $region44: #{up_forward.1} parent=39 // pred_fallthru
        _
    $region40: #{up_forward.1} parent=5 // pred_fallthru
      _
  $region6: #{up_forward.1} parent=0 // loop_footer
    %s13 = sadd.s32 1, %s9
  $region7: #{up_forward.1} parent=0 // loop_footer_branch
    %8 = sbr.rel target = $region3
  $region8: #{up_forward.1} parent=0 // loop_exit
    _

</llo_original>
